<compile_context>
chip_gen: v5e
topology: v5e:2x2
jax: 0.10.0
libtpu: 0.0.40
codegen_flags: <defaults>
</compile_context>

<pallas_src>
import math

import jax
import jax.numpy as jnp
from jax import lax
from jax.experimental import pallas as pl
from jax.experimental.pallas import tpu as pltpu


def _round_up(x, m):
    return ((x + m - 1) // m) * m


def _lmhead_kernel(x_ref, wd_ref, bd_ref, gamma_ref, beta_ref,
                   wdec_ref, bdec_ref, o_ref, hn_ref):
    j = pl.program_id(1)

    # ---- dense -> gelu -> LayerNorm: once per row tile, cached in scratch ---
    @pl.when(j == 0)
    def _():
        x = x_ref[...]
        # dense: x @ Wd (Wd already transposed to [in, out] by the wrapper)
        h = jnp.dot(x, wd_ref[...], preferred_element_type=jnp.float32)
        h = h + bd_ref[...].astype(jnp.float32)

        # gelu (erf formulation, matches torch.erf-based gelu)
        inv_sqrt2 = jnp.float32(1.0 / math.sqrt(2.0))
        h = h * 0.5 * (1.0 + lax.erf(h * inv_sqrt2))

        # layer norm over last axis, eps=1e-12 (biased variance, f32 math)
        mean = jnp.mean(h, axis=-1, keepdims=True)
        centered = h - mean
        var = jnp.mean(centered * centered, axis=-1, keepdims=True)
        hn = centered * lax.rsqrt(var + jnp.float32(1e-12))
        hn = (hn * gamma_ref[...].astype(jnp.float32)
              + beta_ref[...].astype(jnp.float32))
        # single cast into the decoder-weight dtype (e.g. bf16) — reused for
        # every vocab tile, so no per-inner-step VPU cast.
        hn_ref[...] = hn.astype(hn_ref.dtype)

    # ---- decoder: hn @ Wemb_T + b_dec (Wemb_T tile is [H, tile_n]) ----------
    logits = jnp.dot(hn_ref[...], wdec_ref[...],
                     preferred_element_type=jnp.float32)
    logits = logits + bdec_ref[...].astype(jnp.float32)
    o_ref[...] = logits.astype(o_ref.dtype)


def visobert_lm_head(features, w_dense, b_dense, ln_gamma, ln_beta,
                     emb_weights, dec_bias, *, tile_m=512, tile_n=1024,
                     out_dtype=None):
    """features: [N, H]; w_dense: [H, H] (PyTorch [out,in]); emb_weights: [V, H]."""
    N, H = features.shape
    V, Hv = emb_weights.shape
    assert Hv == H, "embedding hidden dim must match features hidden dim"
    out_dtype = features.dtype if out_dtype is None else out_dtype

    # ---- row tiling: multiple of 8, and >=2 tiles when N allows (megacore) --
    tile_m = _round_up(min(tile_m, max(N, 8)), 8)
    if N >= 16:
        tile_m = min(tile_m, _round_up((N + 1) // 2, 8))
    n_pad = (-N) % tile_m
    if n_pad:
        features = jnp.pad(features, ((0, n_pad), (0, 0)))
    Np = N + n_pad

    # ---- vocab tiling: lane-dense tiles, pad V instead of asserting ---------
    tile_n = max(128, _round_up(min(tile_n, _round_up(V, 128)), 128))
    v_pad = (-V) % tile_n
    Vp = V + v_pad

    # One-time K-major transposes (outside the kernel / grid loop).
    wd_t = jnp.transpose(w_dense)            # [H_in, H_out]
    wdec_t = jnp.transpose(emb_weights)      # [H, V]
    bdec = dec_bias
    if v_pad:
        wdec_t = jnp.pad(wdec_t, ((0, 0), (0, v_pad)))
        bdec = jnp.pad(bdec, ((0, v_pad),))

    bd = b_dense.reshape(1, H)
    gamma = ln_gamma.reshape(1, H)
    beta = ln_beta.reshape(1, H)
    bdec = bdec.reshape(1, Vp)

    grid = (Np // tile_m, Vp // tile_n)

    in_itemsize = jnp.dtype(features.dtype).itemsize
    wd_itemsize = jnp.dtype(wd_t.dtype).itemsize
    emb_itemsize = jnp.dtype(wdec_t.dtype).itemsize
    out_itemsize = jnp.dtype(out_dtype).itemsize

    # VMEM budget: each pipelined tile counted once (with its 2 buffers),
    # plus the hn scratch; capped with headroom below v7x's 64 MiB.
    vmem_bytes = int(
        2 * tile_m * H * in_itemsize            # features tile (x2 buffers)
        + 2 * H * H * wd_itemsize               # dense weight (grid-invariant)
        + 2 * H * tile_n * emb_itemsize         # decoder weight tile
        + 2 * tile_m * tile_n * out_itemsize    # output tile
        + tile_m * H * emb_itemsize             # hn scratch (weight dtype)
        + (6 * H + 2 * Vp) * 4)                 # small vectors
    vmem_limit = max(min(int(vmem_bytes * 1.25) + (8 << 20), 56 << 20),
                     16 << 20)

    cost = pl.CostEstimate(
        flops=2 * Np * H * H + 2 * Np * H * Vp,
        transcendentals=Np * H,
        bytes_accessed=(Np * H * in_itemsize
                        + H * H * wd_itemsize
                        + (Np // tile_m) * Vp * H * emb_itemsize  # re-streamed
                        + Np * Vp * out_itemsize))

    out = pl.pallas_call(
        _lmhead_kernel,
        out_shape=jax.ShapeDtypeStruct((Np, Vp), out_dtype),
        grid_spec=pltpu.PrefetchScalarGridSpec(
            num_scalar_prefetch=0,
            grid=grid,
            in_specs=[
                pl.BlockSpec((tile_m, H), lambda i, j: (i, 0)),   # features tile
                pl.BlockSpec((H, H), lambda i, j: (0, 0)),        # dense W [in,out]
                pl.BlockSpec((1, H), lambda i, j: (0, 0)),        # dense bias
                pl.BlockSpec((1, H), lambda i, j: (0, 0)),        # LN gamma
                pl.BlockSpec((1, H), lambda i, j: (0, 0)),        # LN beta
                pl.BlockSpec((H, tile_n), lambda i, j: (0, j)),   # decoder W [H,V] tile
                pl.BlockSpec((1, tile_n), lambda i, j: (0, j)),   # decoder bias tile
            ],
            out_specs=pl.BlockSpec((tile_m, tile_n), lambda i, j: (i, j)),
            scratch_shapes=[pltpu.VMEM((tile_m, H), wdec_t.dtype)],
        ),
        compiler_params=pltpu.CompilerParams(
            dimension_semantics=("parallel", "arbitrary"),
            vmem_limit_bytes=vmem_limit),
        cost_estimate=cost,
    )(features, wd_t, bd, gamma, beta, wdec_t, bdec)

    if n_pad or v_pad:
        out = out[:N, :V]
    return out


def _reference(features, w_dense, b_dense, ln_gamma, ln_beta, emb_weights, dec_bias):
    x = features @ w_dense.T + b_dense
    x = x * 0.5 * (1.0 + lax.erf(x / jnp.sqrt(2.0)))
    mean = jnp.mean(x, axis=-1, keepdims=True)
    var = jnp.mean((x - mean) ** 2, axis=-1, keepdims=True)
    x = (x - mean) / jnp.sqrt(var + 1e-12)
    x = x * ln_gamma + ln_beta
    # match the kernel's bf16-operand / f32-accumulate decoder matmul
    logits = jnp.dot(x.astype(emb_weights.dtype), emb_weights.T.astype(emb_weights.dtype),
                     preferred_element_type=jnp.float32)
    return logits + dec_bias


if __name__ == "__main__":
    # Small shapes that still exercise a 2x2 grid (two row tiles x two vocab
    # tiles), the vocab-padding path (V=1000 -> 1024), and the bf16 decoder
    # weight path, so the hn-scratch caching across the vocab axis is tested.
    batch, seq, hidden, vocab = 2, 128, 256, 1000
    tile_m, tile_n = 512, 512   # tile_m auto-clamped to give >=2 row tiles

    key = jax.random.PRNGKey(0)
    k_feat, k_wd, k_bd, k_g, k_b, k_emb = jax.random.split(key, 6)

    features = jax.random.normal(k_feat, (batch, seq, hidden), dtype=jnp.float32)

    # Deterministic synthetic parameters (shapes from the module's __init__).
    w_dense = jax.random.normal(k_wd, (hidden, hidden), dtype=jnp.float32) * 0.02
    b_dense = jax.random.normal(k_bd, (hidden,), dtype=jnp.float32) * 0.02
    ln_gamma = 1.0 + 0.1 * jax.random.normal(k_g, (hidden,), dtype=jnp.float32)
    ln_beta = 0.1 * jax.random.normal(k_b, (hidden,), dtype=jnp.float32)
    emb_weights = (jax.random.normal(k_emb, (vocab, hidden), dtype=jnp.float32)
                   * 0.02).astype(jnp.bfloat16)           # bf16 MXU operands
    dec_bias = jnp.zeros((vocab,), dtype=jnp.float32)     # decoder.bias init zeros

    feats_2d = features.reshape(batch * seq, hidden)

    logits = visobert_lm_head(feats_2d, w_dense, b_dense, ln_gamma, ln_beta,
                              emb_weights, dec_bias,
                              tile_m=tile_m, tile_n=tile_n,
                              out_dtype=jnp.float32)
    logits = jax.block_until_ready(logits)
    logits = logits.reshape(batch, seq, vocab)

    ref = _reference(feats_2d, w_dense, b_dense, ln_gamma, ln_beta,
                     emb_weights, dec_bias).reshape(batch, seq, vocab)

    assert logits.shape == (batch, seq, vocab)
    max_err = float(jnp.max(jnp.abs(logits - ref)))
    assert jnp.allclose(logits, ref, atol=1e-2, rtol=1e-2), max_err

    print("KERNEL_OK")
</pallas_src>

<mosaic_0001>
module attributes {stable_mosaic.version = 11 : i64} {
  func.func @_lmhead_kernel(%arg0: i32, %arg1: i32, %arg2: memref<128x256xf32, #tpu.memory_space<vmem>>, %arg3: memref<256x256xf32, #tpu.memory_space<vmem>>, %arg4: memref<1x256xf32, #tpu.memory_space<vmem>>, %arg5: memref<1x256xf32, #tpu.memory_space<vmem>>, %arg6: memref<1x256xf32, #tpu.memory_space<vmem>>, %arg7: memref<256x512xbf16, #tpu.memory_space<vmem>>, %arg8: memref<1x512xf32, #tpu.memory_space<vmem>>, %arg9: memref<128x512xf32, #tpu.memory_space<vmem>>, %arg10: memref<128x256xbf16, #tpu.memory_space<vmem>>) attributes {dimension_semantics = [#tpu.dimension_semantics<parallel>, #tpu.dimension_semantics<arbitrary>], iteration_bounds = array<i64: 2, 2>, scalar_prefetch = 0 : i64, scratch_operands = 1 : i64, tpu.core_type = #tpu.core_type<tc>, window_params = [{transform_indices = @transform_0, window_bounds = array<i64: 128, 256>}, {pipeline_mode = #tpu.pipeline_mode<synchronous>, transform_indices = @transform_1, window_bounds = array<i64: 256, 256>}, {pipeline_mode = #tpu.pipeline_mode<synchronous>, transform_indices = @transform_2, window_bounds = array<i64: 1, 256>}, {pipeline_mode = #tpu.pipeline_mode<synchronous>, transform_indices = @transform_3, window_bounds = array<i64: 1, 256>}, {pipeline_mode = #tpu.pipeline_mode<synchronous>, transform_indices = @transform_4, window_bounds = array<i64: 1, 256>}, {transform_indices = @transform_5, window_bounds = array<i64: 256, 512>}, {transform_indices = @transform_6, window_bounds = array<i64: 1, 512>}, {transform_indices = @transform_7, window_bounds = array<i64: 128, 512>}]} {
    %c0_i32 = arith.constant 0 : i32
    %0 = arith.cmpi eq, %arg1, %c0_i32 : i32
    %1 = arith.extui %0 : i1 to i32
    %c0_i32_0 = arith.constant 0 : i32
    %2 = arith.cmpi ne, %1, %c0_i32_0 : i32
    scf.if %2 {
      %c0_8 = arith.constant 0 : index
      %c0_9 = arith.constant 0 : index
      %10 = vector.load %arg2[%c0_8, %c0_9] : memref<128x256xf32, #tpu.memory_space<vmem>>, vector<128x256xf32>
      %c0_10 = arith.constant 0 : index
      %c0_11 = arith.constant 0 : index
      %11 = vector.load %arg3[%c0_10, %c0_11] : memref<256x256xf32, #tpu.memory_space<vmem>>, vector<256x256xf32>
      %cst_12 = arith.constant dense<0.000000e+00> : vector<128x256xf32>
      %12 = tpu.matmul %10, %11, %cst_12 {dimension_numbers = #tpu.dot_dimension_numbers<[1], [0], [0], [1], [0, 0, 1, 1], [], []>} : vector<128x256xf32>, vector<256x256xf32>, vector<128x256xf32> -> vector<128x256xf32>
      %c0_13 = arith.constant 0 : index
      %c0_14 = arith.constant 0 : index
      %13 = vector.load %arg4[%c0_13, %c0_14] : memref<1x256xf32, #tpu.memory_space<vmem>>, vector<1x256xf32>
      %14 = vector.broadcast %13 : vector<1x256xf32> to vector<128x256xf32>
      %15 = arith.addf %12, %14 : vector<128x256xf32>
      %cst_15 = arith.constant 5.000000e-01 : f32
      %16 = vector.broadcast %cst_15 : f32 to vector<128x256xf32>
      %17 = arith.mulf %15, %16 : vector<128x256xf32>
      %cst_16 = arith.constant 0.707106769 : f32
      %18 = vector.broadcast %cst_16 : f32 to vector<128x256xf32>
      %19 = arith.mulf %15, %18 : vector<128x256xf32>
      %20 = math.erf %19 : vector<128x256xf32>
      %cst_17 = arith.constant 1.000000e+00 : f32
      %21 = vector.broadcast %cst_17 : f32 to vector<128x256xf32>
      %22 = arith.addf %21, %20 : vector<128x256xf32>
      %23 = arith.mulf %17, %22 : vector<128x256xf32>
      %cst_18 = arith.constant dense<0.000000e+00> : vector<128xf32>
      %24 = vector.multi_reduction <add>, %23, %cst_18 [1] : vector<128x256xf32> to vector<128xf32>
      %25 = vector.shape_cast %24 : vector<128xf32> to vector<128x1xf32>
      %cst_19 = arith.constant 2.560000e+02 : f32
      %26 = vector.broadcast %cst_19 : f32 to vector<128x1xf32>
      %27 = arith.divf %25, %26 : vector<128x1xf32>
      %28 = vector.broadcast %27 : vector<128x1xf32> to vector<128x256xf32>
      %29 = arith.subf %23, %28 : vector<128x256xf32>
      %30 = arith.mulf %29, %29 : vector<128x256xf32>
      %cst_20 = arith.constant dense<0.000000e+00> : vector<128xf32>
      %31 = vector.multi_reduction <add>, %30, %cst_20 [1] : vector<128x256xf32> to vector<128xf32>
      %32 = vector.shape_cast %31 : vector<128xf32> to vector<128x1xf32>
      %cst_21 = arith.constant 2.560000e+02 : f32
      %33 = vector.broadcast %cst_21 : f32 to vector<128x1xf32>
      %34 = arith.divf %32, %33 : vector<128x1xf32>
      %cst_22 = arith.constant 9.99999996E-13 : f32
      %35 = vector.broadcast %cst_22 : f32 to vector<128x1xf32>
      %36 = arith.addf %34, %35 : vector<128x1xf32>
      %37 = math.rsqrt %36 : vector<128x1xf32>
      %38 = vector.broadcast %37 : vector<128x1xf32> to vector<128x256xf32>
      %39 = arith.mulf %29, %38 : vector<128x256xf32>
      %c0_23 = arith.constant 0 : index
      %c0_24 = arith.constant 0 : index
      %40 = vector.load %arg5[%c0_23, %c0_24] : memref<1x256xf32, #tpu.memory_space<vmem>>, vector<1x256xf32>
      %41 = vector.broadcast %40 : vector<1x256xf32> to vector<128x256xf32>
      %42 = arith.mulf %39, %41 : vector<128x256xf32>
      %c0_25 = arith.constant 0 : index
      %c0_26 = arith.constant 0 : index
      %43 = vector.load %arg6[%c0_25, %c0_26] : memref<1x256xf32, #tpu.memory_space<vmem>>, vector<1x256xf32>
      %44 = vector.broadcast %43 : vector<1x256xf32> to vector<128x256xf32>
      %45 = arith.addf %42, %44 : vector<128x256xf32>
      %46 = arith.truncf %45 : vector<128x256xf32> to vector<128x256xbf16>
      %c0_27 = arith.constant 0 : index
      %c0_28 = arith.constant 0 : index
      %47 = vector.load %arg10[%c0_27, %c0_28] : memref<128x256xbf16, #tpu.memory_space<vmem>>, vector<128x256xbf16>
      tpu.vector_store %arg10[%c0_27, %c0_28], %46 {strides = array<i32>} : memref<128x256xbf16, #tpu.memory_space<vmem>>, vector<128x256xbf16>,
    } else {
    }
    %c0 = arith.constant 0 : index
    %c0_1 = arith.constant 0 : index
    %3 = vector.load %arg10[%c0, %c0_1] : memref<128x256xbf16, #tpu.memory_space<vmem>>, vector<128x256xbf16>
    %c0_2 = arith.constant 0 : index
    %c0_3 = arith.constant 0 : index
    %4 = vector.load %arg7[%c0_2, %c0_3] : memref<256x512xbf16, #tpu.memory_space<vmem>>, vector<256x512xbf16>
    %cst = arith.constant dense<0.000000e+00> : vector<128x512xf32>
    %5 = tpu.matmul %3, %4, %cst {dimension_numbers = #tpu.dot_dimension_numbers<[1], [0], [0], [1], [0, 0, 1, 1], [], []>} : vector<128x256xbf16>, vector<256x512xbf16>, vector<128x512xf32> -> vector<128x512xf32>
    %c0_4 = arith.constant 0 : index
    %c0_5 = arith.constant 0 : index
    %6 = vector.load %arg8[%c0_4, %c0_5] : memref<1x512xf32, #tpu.memory_space<vmem>>, vector<1x512xf32>
    %7 = vector.broadcast %6 : vector<1x512xf32> to vector<128x512xf32>
    %8 = arith.addf %5, %7 : vector<128x512xf32>
    %c0_6 = arith.constant 0 : index
    %c0_7 = arith.constant 0 : index
    %9 = vector.load %arg9[%c0_6, %c0_7] : memref<128x512xf32, #tpu.memory_space<vmem>>, vector<128x512xf32>
    tpu.vector_store %arg9[%c0_6, %c0_7], %8 {strides = array<i32>} : memref<128x512xf32, #tpu.memory_space<vmem>>, vector<128x512xf32>,
    return
  }
  func.func @transform_0(%arg0: i32, %arg1: i32) -> (i32, i32) {
    %c0_i32 = arith.constant 0 : i32
    %c0_i32_0 = arith.constant 0 : i32
    return %arg0, %c0_i32 : i32, i32
  }
  func.func @transform_1(%arg0: i32, %arg1: i32) -> (i32, i32) {
    %c0_i32 = arith.constant 0 : i32
    %c0_i32_0 = arith.constant 0 : i32
    %c0_i32_1 = arith.constant 0 : i32
    return %c0_i32, %c0_i32_0 : i32, i32
  }
  func.func @transform_2(%arg0: i32, %arg1: i32) -> (i32, i32) {
    %c0_i32 = arith.constant 0 : i32
    %c0_i32_0 = arith.constant 0 : i32
    %c0_i32_1 = arith.constant 0 : i32
    return %c0_i32, %c0_i32_0 : i32, i32
  }
  func.func @transform_3(%arg0: i32, %arg1: i32) -> (i32, i32) {
    %c0_i32 = arith.constant 0 : i32
    %c0_i32_0 = arith.constant 0 : i32
    %c0_i32_1 = arith.constant 0 : i32
    return %c0_i32, %c0_i32_0 : i32, i32
  }
  func.func @transform_4(%arg0: i32, %arg1: i32) -> (i32, i32) {
    %c0_i32 = arith.constant 0 : i32
    %c0_i32_0 = arith.constant 0 : i32
    %c0_i32_1 = arith.constant 0 : i32
    return %c0_i32, %c0_i32_0 : i32, i32
  }
  func.func @transform_5(%arg0: i32, %arg1: i32) -> (i32, i32) {
    %c0_i32 = arith.constant 0 : i32
    %c0_i32_0 = arith.constant 0 : i32
    return %c0_i32, %arg1 : i32, i32
  }
  func.func @transform_6(%arg0: i32, %arg1: i32) -> (i32, i32) {
    %c0_i32 = arith.constant 0 : i32
    %c0_i32_0 = arith.constant 0 : i32
    return %c0_i32, %arg1 : i32, i32
  }
  func.func @transform_7(%arg0: i32, %arg1: i32) -> (i32, i32) {
    %c0_i32 = arith.constant 0 : i32
    return %arg0, %arg1 : i32, i32
  }
}

</mosaic_0001>

<llo_original>
// kernel: tpu_custom_call.1
$region0: #{tpu_custom_call.1}
  #allocation0 [shape = 'u32[]', space=smem, size = 0x4, offset = 0x4, fixed_abs, tag = 'smem constant byte address 0x4 - core index']
  #allocation1 [shape = 'u32[72,128]{1,0:T(1,128)}', space=vmem, size = 0x9000, scoped, tag = 'internal scratch']
  #allocation2 [shape = 'bf16[128,256]{1,0:T(8,128)(2,1)}', space=vmem, size = 0x10000, scoped, tag = 'scratch operand']
  %s0 = inlined_call_operand.hbm [shape: f32[256,256], index: 0, kind: input, shape index: {}]
  %s1 = inlined_call_operand.hbm [shape: f32[256,256], index: 1, kind: input, shape index: {}]
  %s2 = inlined_call_operand.hbm [shape: f32[1,256], index: 2, kind: input, shape index: {}]
  %s3 = inlined_call_operand.vmem [shape: f32[1,256], index: 3, kind: input, shape index: {}]
  %s4 = inlined_call_operand.hbm [shape: f32[1,256], index: 4, kind: input, shape index: {}]
  %s5 = inlined_call_operand.hbm [shape: bf16[256,1024], index: 5, kind: input, shape index: {}]
  %s6 = inlined_call_operand.hbm [shape: f32[1,1024], index: 6, kind: input, shape index: {}]
  %s7 = inlined_call_operand.hbm [shape: f32[256,1024], index: 7, kind: output, shape index: {}]
  %s8 = sld [smem:[#allocation0]]
  $region89: #{tpu_custom_call.1} parent=0
    _
  %s10 = ssub.s32 1, %s8
  %s11 = scalar_select 0, %s10, %s8
  $region1: #{tpu_custom_call.1} parent=0
    #allocation3 [shape = 'u8[262144]{0}', space=vmem, size = 0x40000, scoped, tag = 'input window, operand 0']
    #allocation4 [shape = 's32[2]{0}', space=sflag, size = 0x8, scoped, tag = 'scoped memory for tpu_custom_call.1']
    #allocation5 [shape = 's32[2]{0}', space=sflag, size = 0x8, scoped, tag = 'scoped memory for tpu_custom_call.1']
    #allocation6 [shape = 'u8[262144]{0}', space=vmem, size = 0x40000, scoped, tag = 'input window, operand 1, single buffered']
    #allocation7 [shape = 's32[1]{0}', space=sflag, size = 0x4, scoped, tag = 'scoped memory for tpu_custom_call.1']
    #allocation8 [shape = 'u8[1024]{0}', space=vmem, size = 0x400, scoped, tag = 'input window, operand 2, single buffered']
    #allocation9 [shape = 'u8[1024]{0}', space=vmem, size = 0x400, scoped, tag = 'input window, operand 4, single buffered']
    #allocation10 [shape = 's32[1]{0}', space=sflag, size = 0x4, scoped, tag = 'scoped memory for tpu_custom_call.1']
    #allocation11 [shape = 'u8[524288]{0}', space=vmem, size = 0x80000, scoped, tag = 'input window, operand 5']
    #allocation12 [shape = 'u8[4096]{0}', space=vmem, size = 0x1000, scoped, tag = 'input window, operand 6']
    #allocation13 [shape = 'u8[524288]{0}', space=vmem, size = 0x80000, scoped, tag = 'output window, operand 0']
    %12 = vsyncpa [#allocation4], 0
    %s13 = scalar_lea.sflag [#allocation4], 1
    %14 = vsyncpa %s13, 0
    %15 = vsyncpa [#allocation7], 0
    %16 = vsyncpa [#allocation10], 0
    %17 = vsyncpa [#allocation5], 0
    %s18 = scalar_lea.sflag [#allocation5], 1
    %19 = vsyncpa %s18, 0
    loop: start=0, step=1, limit=6
    $region2: #{tpu_custom_call.1} parent=1 // loop_pre_header
      _
    $region3: #{tpu_custom_call.1} parent=1 // loop_header
      %s21 = sphi 0, %s25
      %p22 = scmp.ge.s32.totalorder %s21, 6
      %s28 = sphi 0, %s40
      %s29 = sphi 0, %s36
      %s30 = sphi 0, %s28
      %s31 = sphi 0, %s29
      %s32 = sphi 0, %s30
      %s33 = sphi 0, %s31
      %s43 = sphi 0, %s45
      %s46 = sphi 0, %s43
      %s47 = sphi 0, %s46
      %s63 = sphi 0, %s47
      %s67 = sphi 0, %s67
      %s69 = sphi 0, %s67
      %s70 = sphi 0, %s69
      %s84 = sphi 0, %s70
      %s88 = sphi 0, %s88
      %s90 = sphi 0, %s88
      %s91 = sphi 0, %s90
      %s105 = sphi 0, %s91
      %s109 = sphi 0, %s109
      %s111 = sphi 0, %s109
      %s112 = sphi 0, %s111
      %s126 = sphi 0, %s112
      %s130 = sphi 0, %s130
      %s132 = sphi 0, %s130
      %s133 = sphi 0, %s132
      %s147 = sphi 0, %s133
      %s153 = sphi 0, %s155
      %s156 = sphi 0, %s153
      %s157 = sphi 0, %s156
      %s173 = sphi 0, %s157
      %s179 = sphi 0, %s181
      %s182 = sphi 0, %s179
      %s183 = sphi 0, %s182
      %s199 = sphi 0, %s183
      %s207 = sphi 0, %s209
      %s210 = sphi 0, %s207
      %s211 = sphi 0, %s210
      %s227 = sphi 0, %s211
    $region4: #{tpu_custom_call.1} parent=1 // loop_header_branch
      %24 = sbr.rel (%p22) target = $region8
    $region5: #{tpu_custom_call.1} parent=1 // loop_body
      %s26 = ssub.s32 %s21, 1
      %s27 = ssub.s32 %s21, 2
      %s34 = sadd.s32 1, %s29
      %p35 = scmp.ge.s32.totalorder %s34, 2
      %s36 = scalar_select %p35, 0, %s34
      %s37 = sadd.s32 1, %s28
      %s38 = scalar_select %p35, %s37, %s28
      %p39 = scmp.ge.s32.totalorder %s38, 2
      %s40 = scalar_select %p39, 0, %s38
      %s41 = ssub.s32 %s28, %s40
      %p42 = scmp.eq.s32.totalorder %s41, 0
      %s44 = sadd.s32 %s43, 1
      %s45 = scalar_select %p42, %s43, %s44
      %p48 = pneg %p42
      %p49 = scmp.eq.s32.totalorder %s21, 3
      %p50 = por %p48, %p49
      %p51 = scmp.ne.s32.totalorder %s43, %s46
      %p52 = scmp.eq.s32.totalorder %s21, 0
      %p53 = por %p51, %p52
      %p54 = scmp.ne.s32.totalorder %s43, %s46
      %p55 = scmp.eq.s32.totalorder %s26, 3
      %p56 = por %p54, %p55
      %p57 = scmp.ne.s32.totalorder %s46, %s47
      %p58 = scmp.eq.s32.totalorder %s26, 0
      %p59 = por %p57, %p58
      %p60 = scmp.ne.s32.totalorder %s46, %s47
      %p61 = scmp.eq.s32.totalorder %s27, 3
      %p62 = por %p60, %p61
      %p64 = scmp.ne.s32.totalorder %s47, %s63
      %p65 = scmp.eq.s32.totalorder %s27, 0
      %p66 = por %p64, %p65
      %s68 = sadd.s32 %s67, 1
      %p71 = scmp.eq.s32.totalorder %s21, 3
      %p72 = scmp.ne.s32.totalorder %s67, %s69
      %p73 = scmp.eq.s32.totalorder %s21, 0
      %p74 = por %p72, %p73
      %p75 = scmp.ne.s32.totalorder %s67, %s69
      %p76 = scmp.eq.s32.totalorder %s26, 3
      %p77 = por %p75, %p76
      %p78 = scmp.ne.s32.totalorder %s69, %s70
      %p79 = scmp.eq.s32.totalorder %s26, 0
      %p80 = por %p78, %p79
      %p81 = scmp.ne.s32.totalorder %s69, %s70
      %p82 = scmp.eq.s32.totalorder %s27, 3
      %p83 = por %p81, %p82
      %p85 = scmp.ne.s32.totalorder %s70, %s84
      %p86 = scmp.eq.s32.totalorder %s27, 0
      %p87 = por %p85, %p86
      %s89 = sadd.s32 %s88, 1
      %p92 = scmp.eq.s32.totalorder %s21, 3
      %p93 = scmp.ne.s32.totalorder %s88, %s90
      %p94 = scmp.eq.s32.totalorder %s21, 0
      %p95 = por %p93, %p94
      %p96 = scmp.ne.s32.totalorder %s88, %s90
      %p97 = scmp.eq.s32.totalorder %s26, 3
      %p98 = por %p96, %p97
      %p99 = scmp.ne.s32.totalorder %s90, %s91
      %p100 = scmp.eq.s32.totalorder %s26, 0
      %p101 = por %p99, %p100
      %p102 = scmp.ne.s32.totalorder %s90, %s91
      %p103 = scmp.eq.s32.totalorder %s27, 3
      %p104 = por %p102, %p103
      %p106 = scmp.ne.s32.totalorder %s91, %s105
      %p107 = scmp.eq.s32.totalorder %s27, 0
      %p108 = por %p106, %p107
      %s110 = sadd.s32 %s109, 1
      %p113 = scmp.eq.s32.totalorder %s21, 3
      %p114 = scmp.ne.s32.totalorder %s109, %s111
      %p115 = scmp.eq.s32.totalorder %s21, 0
      %p116 = por %p114, %p115
      %p117 = scmp.ne.s32.totalorder %s109, %s111
      %p118 = scmp.eq.s32.totalorder %s26, 3
      %p119 = por %p117, %p118
      %p120 = scmp.ne.s32.totalorder %s111, %s112
      %p121 = scmp.eq.s32.totalorder %s26, 0
      %p122 = por %p120, %p121
      %p123 = scmp.ne.s32.totalorder %s111, %s112
      %p124 = scmp.eq.s32.totalorder %s27, 3
      %p125 = por %p123, %p124
      %p127 = scmp.ne.s32.totalorder %s112, %s126
      %p128 = scmp.eq.s32.totalorder %s27, 0
      %p129 = por %p127, %p128
      %s131 = sadd.s32 %s130, 1
      %p134 = scmp.eq.s32.totalorder %s21, 3
      %p135 = scmp.ne.s32.totalorder %s130, %s132
      %p136 = scmp.eq.s32.totalorder %s21, 0
      %p137 = por %p135, %p136
      %p138 = scmp.ne.s32.totalorder %s130, %s132
      %p139 = scmp.eq.s32.totalorder %s26, 3
      %p140 = por %p138, %p139
      %p141 = scmp.ne.s32.totalorder %s132, %s133
      %p142 = scmp.eq.s32.totalorder %s26, 0
      %p143 = por %p141, %p142
      %p144 = scmp.ne.s32.totalorder %s132, %s133
      %p145 = scmp.eq.s32.totalorder %s27, 3
      %p146 = por %p144, %p145
      %p148 = scmp.ne.s32.totalorder %s133, %s147
      %p149 = scmp.eq.s32.totalorder %s27, 0
      %p150 = por %p148, %p149
      %s151 = ssub.s32 %s29, %s36
      %p152 = scmp.eq.s32.totalorder %s151, 0
      %s154 = sadd.s32 %s153, 1
      %s155 = scalar_select %p152, %s153, %s154
      %p158 = pneg %p152
      %p159 = scmp.eq.s32.totalorder %s21, 3
      %p160 = por %p158, %p159
      %p161 = scmp.ne.s32.totalorder %s153, %s156
      %p162 = scmp.eq.s32.totalorder %s21, 0
      %p163 = por %p161, %p162
      %p164 = scmp.ne.s32.totalorder %s153, %s156
      %p165 = scmp.eq.s32.totalorder %s26, 3
      %p166 = por %p164, %p165
      %p167 = scmp.ne.s32.totalorder %s156, %s157
      %p168 = scmp.eq.s32.totalorder %s26, 0
      %p169 = por %p167, %p168
      %p170 = scmp.ne.s32.totalorder %s156, %s157
      %p171 = scmp.eq.s32.totalorder %s27, 3
      %p172 = por %p170, %p171
      %p174 = scmp.ne.s32.totalorder %s157, %s173
      %p175 = scmp.eq.s32.totalorder %s27, 0
      %p176 = por %p174, %p175
      %s177 = ssub.s32 %s29, %s36
      %p178 = scmp.eq.s32.totalorder %s177, 0
      %s180 = sadd.s32 %s179, 1
      %s181 = scalar_select %p178, %s179, %s180
      %p184 = pneg %p178
      %p185 = scmp.eq.s32.totalorder %s21, 3
      %p186 = por %p184, %p185
      %p187 = scmp.ne.s32.totalorder %s179, %s182
      %p188 = scmp.eq.s32.totalorder %s21, 0
      %p189 = por %p187, %p188
      %p190 = scmp.ne.s32.totalorder %s179, %s182
      %p191 = scmp.eq.s32.totalorder %s26, 3
      %p192 = por %p190, %p191
      %p193 = scmp.ne.s32.totalorder %s182, %s183
      %p194 = scmp.eq.s32.totalorder %s26, 0
      %p195 = por %p193, %p194
      %p196 = scmp.ne.s32.totalorder %s182, %s183
      %p197 = scmp.eq.s32.totalorder %s27, 3
      %p198 = por %p196, %p197
      %p200 = scmp.ne.s32.totalorder %s183, %s199
      %p201 = scmp.eq.s32.totalorder %s27, 0
      %p202 = por %p200, %p201
      %s203 = ssub.s32 %s28, %s40
      %s204 = ssub.s32 %s29, %s36
      %s205 = sor.u32 %s203, %s204
      %p206 = scmp.eq.s32.totalorder %s205, 0
      %s208 = sadd.s32 %s207, 1
      %s209 = scalar_select %p206, %s207, %s208
      %p212 = pneg %p206
      %p213 = scmp.eq.s32.totalorder %s21, 3
      %p214 = por %p212, %p213
      %p215 = scmp.ne.s32.totalorder %s207, %s210
      %p216 = scmp.eq.s32.totalorder %s21, 0
      %p217 = por %p215, %p216
      %p218 = scmp.ne.s32.totalorder %s207, %s210
      %p219 = scmp.eq.s32.totalorder %s26, 3
      %p220 = por %p218, %p219
      %p221 = scmp.ne.s32.totalorder %s210, %s211
      %p222 = scmp.eq.s32.totalorder %s26, 0
      %p223 = por %p221, %p222
      %p224 = scmp.ne.s32.totalorder %s210, %s211
      %p225 = scmp.eq.s32.totalorder %s27, 3
      %p226 = por %p224, %p225
      %p228 = scmp.ne.s32.totalorder %s211, %s227
      %p229 = scmp.eq.s32.totalorder %s27, 0
      %p230 = por %p228, %p229
      %p231 = scmp.le.s32.totalorder 1, %s21
      %p232 = scmp.lt.s32.totalorder %s21, 5
      %p233 = pnand %p231, %p232
      %p234 = pneg %p233
      // Predicated region
      $region9: #{tpu_custom_call.1} parent=5 // pred_check
        _
      $region10: #{tpu_custom_call.1} parent=5 // pred_check_branch
        %236 = sbr.rel (%p233) target = $region12
      $region11: #{tpu_custom_call.1} parent=5 // pred_region
        %s237 = ssub.s32 %s21, 1
        // Predicated region
        $region13: #{tpu_custom_call.1} parent=11 // pred_check
          %p238 = pneg %p80
        $region14: #{tpu_custom_call.1} parent=11 // pred_check_branch
          %240 = sbr.rel (%p238) target = $region16
        $region15: #{tpu_custom_call.1} parent=11 // pred_region
          %242 = vsyncadd [#allocation7], 0
          %s243 = sshll.u32 %s1, 4
          %s244 = int_to_ptr.hbm [resolvable:$true] %s243
          %s245 = sshll.u32 [#allocation6], 4
          %s246 = int_to_ptr.vmem [resolvable:$true] %s245
          %251 = dma.hbm_to_vmem [thread:$0]  %s244, 8192, %s246, [#allocation7], 256, 256, 16
        $region16: #{tpu_custom_call.1} parent=11 // pred_fallthru
          _
        // Predicated region
        $region17: #{tpu_custom_call.1} parent=11 // pred_check
          %p252 = pneg %p101
        $region18: #{tpu_custom_call.1} parent=11 // pred_check_branch
          %254 = sbr.rel (%p252) target = $region20
        $region19: #{tpu_custom_call.1} parent=11 // pred_region
          %256 = vsyncadd [#allocation7], 0
          %s258 = sshll.u32 %s2, 4
          %s259 = int_to_ptr.hbm [resolvable:$true] %s258
          %s260 = sshll.u32 [#allocation8], 4
          %s261 = int_to_ptr.vmem [resolvable:$true] %s260
          %263 = dma.hbm_to_vmem [thread:$0]  %s259, 32, %s261, [#allocation7]
        $region20: #{tpu_custom_call.1} parent=11 // pred_fallthru
          _
        // Predicated region
        $region21: #{tpu_custom_call.1} parent=11 // pred_check
          %p264 = pneg %p122
        $region22: #{tpu_custom_call.1} parent=11 // pred_check_branch
          %266 = sbr.rel (%p264) target = $region24
        $region23: #{tpu_custom_call.1} parent=11 // pred_region
          _
        $region24: #{tpu_custom_call.1} parent=11 // pred_fallthru
          _
        // Predicated region
        $region25: #{tpu_custom_call.1} parent=11 // pred_check
          %p267 = pneg %p143
        $region26: #{tpu_custom_call.1} parent=11 // pred_check_branch
          %269 = sbr.rel (%p267) target = $region28
        $region27: #{tpu_custom_call.1} parent=11 // pred_region
          %271 = vsyncadd [#allocation10], 0
          %s273 = sshll.u32 %s4, 4
          %s274 = int_to_ptr.hbm [resolvable:$true] %s273
          %s275 = sshll.u32 [#allocation9], 4
          %s276 = int_to_ptr.vmem [resolvable:$true] %s275
          %278 = dma.hbm_to_vmem [thread:$0]  %s274, 32, %s276, [#allocation10]
        $region28: #{tpu_custom_call.1} parent=11 // pred_fallthru
          _
      $region12: #{tpu_custom_call.1} parent=5 // pred_fallthru
        _
      %p279 = scmp.lt.s32.totalorder %s21, 4
      // Predicated region
      $region29: #{tpu_custom_call.1} parent=5 // pred_check
        %p280 = pneg %p279
      $region30: #{tpu_custom_call.1} parent=5 // pred_check_branch
        %282 = sbr.rel (%p280) target = $region32
      $region31: #{tpu_custom_call.1} parent=5 // pred_region
        // Predicated region
        $region33: #{tpu_custom_call.1} parent=31 // pred_check
          %p283 = pneg %p53
        $region34: #{tpu_custom_call.1} parent=31 // pred_check_branch
          %285 = sbr.rel (%p283) target = $region36
        $region35: #{tpu_custom_call.1} parent=31 // pred_region
          %s286 = sand.u32 %s21, 1
          %s287 = scalar_lea.sflag [#allocation4], %s286
          %s288 = sand.u32 %s43, 1
          %s289 = smul.addr %s288, 256
          %s290 = scalar_lea.vmem [#allocation3], %s289
          %s291 = smul.u32 16, %s28
          %293 = vsyncadd %s287, 0
          %s294 = smul.addr %s291, 2
          %s295 = smul.addr %s294, 8
          %s296 = scalar_lea.hbm %s0, %s295
          %s297 = sshll.u32 %s296, 4
          %s298 = int_to_ptr.hbm [resolvable:$true] %s297
          %s299 = sshll.u32 %s290, 4
          %s300 = int_to_ptr.vmem [resolvable:$true] %s299
          %305 = dma.hbm_to_vmem [thread:$0]  %s298, 4096, %s300, %s287, 256, 256, 16
        $region36: #{tpu_custom_call.1} parent=31 // pred_fallthru
          _
        // Predicated region
        $region37: #{tpu_custom_call.1} parent=31 // pred_check
          %p306 = pneg %p163
        $region38: #{tpu_custom_call.1} parent=31 // pred_check_branch
          %308 = sbr.rel (%p306) target = $region40
        $region39: #{tpu_custom_call.1} parent=31 // pred_region
          %s309 = sand.u32 %s21, 1
          %s310 = scalar_lea.sflag [#allocation4], %s309
          %s311 = sand.u32 %s153, 1
          %s312 = smul.addr %s311, 512
          %s313 = scalar_lea.vmem [#allocation11], %s312
          %s314 = smul.u32 4, %s29
          %316 = vsyncadd %s310, 0
          %s317 = smul.addr %s314, 4
          %s318 = scalar_lea.hbm %s5, %s317
          %s319 = sshll.u32 %s318, 4
          %s320 = int_to_ptr.hbm [resolvable:$true] %s319
          %s321 = sshll.u32 %s313, 4
          %s322 = int_to_ptr.vmem [resolvable:$true] %s321
          %327 = dma.hbm_to_vmem [thread:$0]  %s320, 8192, %s322, %s310, 512, 256, 16
        $region40: #{tpu_custom_call.1} parent=31 // pred_fallthru
          _
        // Predicated region
        $region41: #{tpu_custom_call.1} parent=31 // pred_check
          %p328 = pneg %p189
        $region42: #{tpu_custom_call.1} parent=31 // pred_check_branch
          %330 = sbr.rel (%p328) target = $region44
        $region43: #{tpu_custom_call.1} parent=31 // pred_region
          %s331 = sand.u32 %s21, 1
          %s332 = scalar_lea.sflag [#allocation4], %s331
          %s333 = sand.u32 %s179, 1
          %s334 = smul.addr %s333, 4
          %s335 = scalar_lea.vmem [#allocation12], %s334
          %s336 = smul.u32 4, %s29
          %338 = vsyncadd %s332, 0
          %s339 = scalar_lea.hbm %s6, %s336
          %s341 = sshll.u32 %s339, 4
          %s342 = int_to_ptr.hbm [resolvable:$true] %s341
          %s343 = sshll.u32 %s335, 4
          %s344 = int_to_ptr.vmem [resolvable:$true] %s343
          %346 = dma.hbm_to_vmem [thread:$0]  %s342, 64, %s344, %s332
        $region44: #{tpu_custom_call.1} parent=31 // pred_fallthru
          _
      $region32: #{tpu_custom_call.1} parent=5 // pred_fallthru
        _
      %p347 = scmp.le.s32.totalorder 1, %s21
      %p348 = scmp.lt.s32.totalorder %s21, 5
      %p349 = pnand %p347, %p348
      %p350 = pneg %p349
      // Predicated region
      $region45: #{tpu_custom_call.1} parent=5 // pred_check
        _
      $region46: #{tpu_custom_call.1} parent=5 // pred_check_branch
        %352 = sbr.rel (%p349) target = $region48
      $region47: #{tpu_custom_call.1} parent=5 // pred_region
        %s353 = ssub.s32 %s21, 1
        %s354 = sand.u32 %s26, 1
        %s355 = scalar_lea.sflag [#allocation4], %s354
        %s356 = sand.u32 %s46, 1
        %s357 = smul.addr %s356, 256
        %s358 = scalar_lea.vmem [#allocation3], %s357
        // Predicated region
        $region49: #{tpu_custom_call.1} parent=47 // pred_check
          %p359 = pneg %p59
        $region50: #{tpu_custom_call.1} parent=47 // pred_check_branch
          %361 = sbr.rel (%p359) target = $region52
        $region51: #{tpu_custom_call.1} parent=47 // pred_region
          %363 = dma.done %s355, 4096
        $region52: #{tpu_custom_call.1} parent=47 // pred_fallthru
          _
        // Predicated region
        $region53: #{tpu_custom_call.1} parent=47 // pred_check
          %p364 = pneg %p80
        $region54: #{tpu_custom_call.1} parent=47 // pred_check_branch
          %366 = sbr.rel (%p364) target = $region56
        $region55: #{tpu_custom_call.1} parent=47 // pred_region
          %368 = dma.done [#allocation7], 8192
        $region56: #{tpu_custom_call.1} parent=47 // pred_fallthru
          _
        // Predicated region
        $region57: #{tpu_custom_call.1} parent=47 // pred_check
          %p369 = pneg %p101
        $region58: #{tpu_custom_call.1} parent=47 // pred_check_branch
          %371 = sbr.rel (%p369) target = $region60
        $region59: #{tpu_custom_call.1} parent=47 // pred_region
          %373 = dma.done [#allocation7], 32
        $region60: #{tpu_custom_call.1} parent=47 // pred_fallthru
          _
        // Predicated region
        $region61: #{tpu_custom_call.1} parent=47 // pred_check
          %p374 = pneg %p143
        $region62: #{tpu_custom_call.1} parent=47 // pred_check_branch
          %376 = sbr.rel (%p374) target = $region64
        $region63: #{tpu_custom_call.1} parent=47 // pred_region
          %378 = dma.done [#allocation10], 32
        $region64: #{tpu_custom_call.1} parent=47 // pred_fallthru
          _
        %s379 = sand.u32 %s26, 1
        %s380 = scalar_lea.sflag [#allocation4], %s379
        %s381 = sand.u32 %s156, 1
        %s382 = smul.addr %s381, 512
        %s383 = scalar_lea.vmem [#allocation11], %s382
        // Predicated region
        $region65: #{tpu_custom_call.1} parent=47 // pred_check
          %p384 = pneg %p169
        $region66: #{tpu_custom_call.1} parent=47 // pred_check_branch
          %386 = sbr.rel (%p384) target = $region68
        $region67: #{tpu_custom_call.1} parent=47 // pred_region
          %388 = dma.done %s380, 8192
        $region68: #{tpu_custom_call.1} parent=47 // pred_fallthru
          _
        %s389 = sand.u32 %s26, 1
        %s390 = scalar_lea.sflag [#allocation4], %s389
        %s391 = sand.u32 %s182, 1
        %s392 = smul.addr %s391, 4
        %s393 = scalar_lea.vmem [#allocation12], %s392
        // Predicated region
        $region69: #{tpu_custom_call.1} parent=47 // pred_check
          %p394 = pneg %p195
        $region70: #{tpu_custom_call.1} parent=47 // pred_check_branch
          %396 = sbr.rel (%p394) target = $region72
        $region71: #{tpu_custom_call.1} parent=47 // pred_region
          %398 = dma.done %s390, 64
        $region72: #{tpu_custom_call.1} parent=47 // pred_fallthru
          _
        %s399 = sand.u32 %s26, 1
        %s400 = scalar_lea.sflag [#allocation4], %s399
        %s401 = sand.u32 %s46, 1
        %s402 = smul.addr %s401, 256
        %s403 = scalar_lea.vmem [#allocation3], %s402
        %p404 = pneg %p59
        %p405 = pneg %p56
        %p406 = pneg %p80
        %p407 = pneg %p77
        %p408 = pneg %p101
        %p409 = pneg %p98
        %p410 = pneg %p122
        %p411 = pneg %p119
        %p412 = pneg %p143
        %p413 = pneg %p140
        %s414 = sand.u32 %s26, 1
        %s415 = scalar_lea.sflag [#allocation4], %s414
        %s416 = sand.u32 %s156, 1
        %s417 = smul.addr %s416, 512
        %s418 = scalar_lea.vmem [#allocation11], %s417
        %p419 = pneg %p169
        %p420 = pneg %p166
        %s421 = sand.u32 %s26, 1
        %s422 = scalar_lea.sflag [#allocation4], %s421
        %s423 = sand.u32 %s182, 1
        %s424 = smul.addr %s423, 4
        %s425 = scalar_lea.vmem [#allocation12], %s424
        %p426 = pneg %p195
        %p427 = pneg %p192
        %p428 = pneg %p223
        %p429 = pneg %p220
        %s430 = sand.u32 %s210, 1
        %s431 = scalar_lea.sflag [#allocation5], %s430
        %s432 = sand.u32 %s210, 1
        %s433 = smul.addr %s432, 512
        %s434 = scalar_lea.vmem [#allocation13], %s433
        %s435 = smul.u32 16, %s30
        %s436 = smul.u32 4, %s31
        %s437 = smul.u32 4, %s31
        %s438 = smul.u32 16, %s30
        %s439 = smul.u32 4, %s31
        %p440 = scmp.eq.s32.totalorder %s31, 0
        // Predicated region
        $region73: #{tpu_custom_call.1} parent=47 // pred_check
          %p441 = pneg %p440
        $region74: #{tpu_custom_call.1} parent=47 // pred_check_branch
          %443 = sbr.rel (%p441) target = $region76
        $region75: #{tpu_custom_call.1} parent=47 // pred_region
          %v444 = vld [vmem:[%s358] sm:$0xff]
          %v445 = vld [vmem:[%s358 + $0x8] sm:$0xff]
          %v446 = vld [vmem:[%s358 + $0x10] sm:$0xff]
          %v447 = vld [vmem:[%s358 + $0x18] sm:$0xff]
          %v448 = vld [vmem:[%s358 + $0x20] sm:$0xff]
          %v449 = vld [vmem:[%s358 + $0x28] sm:$0xff]
          %v450 = vld [vmem:[%s358 + $0x30] sm:$0xff]
          %v451 = vld [vmem:[%s358 + $0x38] sm:$0xff]
          %v452 = vld [vmem:[%s358 + $0x40] sm:$0xff]
          %v453 = vld [vmem:[%s358 + $0x48] sm:$0xff]
          %v454 = vld [vmem:[%s358 + $0x50] sm:$0xff]
          %v455 = vld [vmem:[%s358 + $0x58] sm:$0xff]
          %v456 = vld [vmem:[%s358 + $0x60] sm:$0xff]
          %v457 = vld [vmem:[%s358 + $0x68] sm:$0xff]
          %v458 = vld [vmem:[%s358 + $0x70] sm:$0xff]
          %v459 = vld [vmem:[%s358 + $0x78] sm:$0xff]
          %v460 = vld [vmem:[%s358 + $0x80] sm:$0xff]
          %v461 = vld [vmem:[%s358 + $0x88] sm:$0xff]
          %v462 = vld [vmem:[%s358 + $0x90] sm:$0xff]
          %v463 = vld [vmem:[%s358 + $0x98] sm:$0xff]
          %v464 = vld [vmem:[%s358 + $0xa0] sm:$0xff]
          %v465 = vld [vmem:[%s358 + $0xa8] sm:$0xff]
          %v466 = vld [vmem:[%s358 + $0xb0] sm:$0xff]
          %v467 = vld [vmem:[%s358 + $0xb8] sm:$0xff]
          %v468 = vld [vmem:[%s358 + $0xc0] sm:$0xff]
          %v469 = vld [vmem:[%s358 + $0xc8] sm:$0xff]
          %v470 = vld [vmem:[%s358 + $0xd0] sm:$0xff]
          %v471 = vld [vmem:[%s358 + $0xd8] sm:$0xff]
          %v472 = vld [vmem:[%s358 + $0xe0] sm:$0xff]
          %v473 = vld [vmem:[%s358 + $0xe8] sm:$0xff]
          %v474 = vld [vmem:[%s358 + $0xf0] sm:$0xff]
          %v475 = vld [vmem:[%s358 + $0xf8] sm:$0xff]
          %v476 = vld [vmem:[#allocation6] sm:$0xff]
          %v477 = vld [vmem:[#allocation6 + $0x8] sm:$0xff]
          %v478 = vld [vmem:[#allocation6 + $0x10] sm:$0xff]
          %v479 = vld [vmem:[#allocation6 + $0x18] sm:$0xff]
          %v480 = vld [vmem:[#allocation6 + $0x20] sm:$0xff]
          %v481 = vld [vmem:[#allocation6 + $0x28] sm:$0xff]
          %v482 = vld [vmem:[#allocation6 + $0x30] sm:$0xff]
          %v483 = vld [vmem:[#allocation6 + $0x38] sm:$0xff]
          %v484 = vld [vmem:[#allocation6 + $0x40] sm:$0xff]
          %v485 = vld [vmem:[#allocation6 + $0x48] sm:$0xff]
          %v486 = vld [vmem:[#allocation6 + $0x50] sm:$0xff]
          %v487 = vld [vmem:[#allocation6 + $0x58] sm:$0xff]
          %v488 = vld [vmem:[#allocation6 + $0x60] sm:$0xff]
          %v489 = vld [vmem:[#allocation6 + $0x68] sm:$0xff]
          %v490 = vld [vmem:[#allocation6 + $0x70] sm:$0xff]
          %v491 = vld [vmem:[#allocation6 + $0x78] sm:$0xff]
          %v492 = vld [vmem:[#allocation6 + $0x80] sm:$0xff]
          %v493 = vld [vmem:[#allocation6 + $0x88] sm:$0xff]
          %v494 = vld [vmem:[#allocation6 + $0x90] sm:$0xff]
          %v495 = vld [vmem:[#allocation6 + $0x98] sm:$0xff]
          %v496 = vld [vmem:[#allocation6 + $0xa0] sm:$0xff]
          %v497 = vld [vmem:[#allocation6 + $0xa8] sm:$0xff]
          %v498 = vld [vmem:[#allocation6 + $0xb0] sm:$0xff]
          %v499 = vld [vmem:[#allocation6 + $0xb8] sm:$0xff]
          %v500 = vld [vmem:[#allocation6 + $0xc0] sm:$0xff]
          %v501 = vld [vmem:[#allocation6 + $0xc8] sm:$0xff]
          %v502 = vld [vmem:[#allocation6 + $0xd0] sm:$0xff]
          %v503 = vld [vmem:[#allocation6 + $0xd8] sm:$0xff]
          %v504 = vld [vmem:[#allocation6 + $0xe0] sm:$0xff]
          %v505 = vld [vmem:[#allocation6 + $0xe8] sm:$0xff]
          %v506 = vld [vmem:[#allocation6 + $0xf0] sm:$0xff]
          %v507 = vld [vmem:[#allocation6 + $0xf8] sm:$0xff]
          %v508 = vld [vmem:[#allocation6 + $0x100] sm:$0xff]
          %v509 = vld [vmem:[#allocation6 + $0x108] sm:$0xff]
          %v510 = vld [vmem:[#allocation6 + $0x110] sm:$0xff]
          %v511 = vld [vmem:[#allocation6 + $0x118] sm:$0xff]
          %v512 = vld [vmem:[#allocation6 + $0x120] sm:$0xff]
          %v513 = vld [vmem:[#allocation6 + $0x128] sm:$0xff]
          %v514 = vld [vmem:[#allocation6 + $0x130] sm:$0xff]
          %v515 = vld [vmem:[#allocation6 + $0x138] sm:$0xff]
          %v516 = vld [vmem:[#allocation6 + $0x140] sm:$0xff]
          %v517 = vld [vmem:[#allocation6 + $0x148] sm:$0xff]
          %v518 = vld [vmem:[#allocation6 + $0x150] sm:$0xff]
          %v519 = vld [vmem:[#allocation6 + $0x158] sm:$0xff]
          %v520 = vld [vmem:[#allocation6 + $0x160] sm:$0xff]
          %v521 = vld [vmem:[#allocation6 + $0x168] sm:$0xff]
          %v522 = vld [vmem:[#allocation6 + $0x170] sm:$0xff]
          %v523 = vld [vmem:[#allocation6 + $0x178] sm:$0xff]
          %v524 = vld [vmem:[#allocation6 + $0x180] sm:$0xff]
          %v525 = vld [vmem:[#allocation6 + $0x188] sm:$0xff]
          %v526 = vld [vmem:[#allocation6 + $0x190] sm:$0xff]
          %v527 = vld [vmem:[#allocation6 + $0x198] sm:$0xff]
          %v528 = vld [vmem:[#allocation6 + $0x1a0] sm:$0xff]
          %v529 = vld [vmem:[#allocation6 + $0x1a8] sm:$0xff]
          %v530 = vld [vmem:[#allocation6 + $0x1b0] sm:$0xff]
          %v531 = vld [vmem:[#allocation6 + $0x1b8] sm:$0xff]
          %v532 = vld [vmem:[#allocation6 + $0x1c0] sm:$0xff]
          %v533 = vld [vmem:[#allocation6 + $0x1c8] sm:$0xff]
          %v534 = vld [vmem:[#allocation6 + $0x1d0] sm:$0xff]
          %v535 = vld [vmem:[#allocation6 + $0x1d8] sm:$0xff]
          %v536 = vld [vmem:[#allocation6 + $0x1e0] sm:$0xff]
          %v537 = vld [vmem:[#allocation6 + $0x1e8] sm:$0xff]
          %v538 = vld [vmem:[#allocation6 + $0x1f0] sm:$0xff]
          %v539 = vld [vmem:[#allocation6 + $0x1f8] sm:$0xff]
          %v540 = vld [vmem:[#allocation8] sm:$0x3]
          %v542 = vperm.slane %v540, 0
          %v543 = vperm.slane %v540, 1
          %546 = vmatpush.msra.mxu0 %v506
          %547 = vmatpush.msra.mxu0 %v504
          %548 = vmatpush.msra.mxu0 %v502
          %549 = vmatpush.msra.mxu0 %v500
          %550 = vmatpush.msra.mxu0 %v498
          %551 = vmatpush.msra.mxu0 %v496
          %552 = vmatpush.msra.mxu0 %v494
          %553 = vmatpush.msra.mxu0 %v492
          %554 = vmatpush.msra.mxu0 %v490
          %555 = vmatpush.msra.mxu0 %v488
          %556 = vmatpush.msra.mxu0 %v486
          %557 = vmatpush.msra.mxu0 %v484
          %558 = vmatpush.msra.mxu0 %v482
          %559 = vmatpush.msra.mxu0 %v480
          %560 = vmatpush.msra.mxu0 %v478
          %561 = vmatpush.msra.mxu0 %v476
          %562 = vmatmul.f32.gmra.mxu0 %v444
          %v563 = vpop.f32.mrf.mxu0
          %v564 = vadd.f32 %v542, %v563
          %565 = vmatmul.f32.gmra.mxu0 %v446
          %v566 = vpop.f32.mrf.mxu0
          %v567 = vadd.f32 %v542, %v566
          %568 = vmatmul.f32.gmra.mxu0 %v448
          %v569 = vpop.f32.mrf.mxu0
          %v570 = vadd.f32 %v542, %v569
          %571 = vmatmul.f32.gmra.mxu0 %v450
          %v572 = vpop.f32.mrf.mxu0
          %v573 = vadd.f32 %v542, %v572
          %574 = vmatmul.f32.gmra.mxu0 %v452
          %v575 = vpop.f32.mrf.mxu0
          %v576 = vadd.f32 %v542, %v575
          %577 = vmatmul.f32.gmra.mxu0 %v454
          %v578 = vpop.f32.mrf.mxu0
          %v579 = vadd.f32 %v542, %v578
          %580 = vmatmul.f32.gmra.mxu0 %v456
          %v581 = vpop.f32.mrf.mxu0
          %v582 = vadd.f32 %v542, %v581
          %583 = vmatmul.f32.gmra.mxu0 %v458
          %v584 = vpop.f32.mrf.mxu0
          %v585 = vadd.f32 %v542, %v584
          %586 = vmatmul.f32.gmra.mxu0 %v460
          %v587 = vpop.f32.mrf.mxu0
          %v588 = vadd.f32 %v542, %v587
          %589 = vmatmul.f32.gmra.mxu0 %v462
          %v590 = vpop.f32.mrf.mxu0
          %v591 = vadd.f32 %v542, %v590
          %592 = vmatmul.f32.gmra.mxu0 %v464
          %v593 = vpop.f32.mrf.mxu0
          %v594 = vadd.f32 %v542, %v593
          %595 = vmatmul.f32.gmra.mxu0 %v466
          %v596 = vpop.f32.mrf.mxu0
          %v597 = vadd.f32 %v542, %v596
          %598 = vmatmul.f32.gmra.mxu0 %v468
          %v599 = vpop.f32.mrf.mxu0
          %v600 = vadd.f32 %v542, %v599
          %601 = vmatmul.f32.gmra.mxu0 %v470
          %v602 = vpop.f32.mrf.mxu0
          %v603 = vadd.f32 %v542, %v602
          %604 = vmatmul.f32.gmra.mxu0 %v472
          %v605 = vpop.f32.mrf.mxu0
          %v606 = vadd.f32 %v542, %v605
          %607 = vmatmul.f32.gmra.mxu0 %v474
          %v608 = vpop.f32.mrf.mxu0
          %v609 = vadd.f32 %v542, %v608
          %610 = vdwg.mxu0
          %611 = vmatpush.msra.mxu0 %v538
          %612 = vmatpush.msra.mxu0 %v536
          %613 = vmatpush.msra.mxu0 %v534
          %614 = vmatpush.msra.mxu0 %v532
          %615 = vmatpush.msra.mxu0 %v530
          %616 = vmatpush.msra.mxu0 %v528
          %617 = vmatpush.msra.mxu0 %v526
          %618 = vmatpush.msra.mxu0 %v524
          %619 = vmatpush.msra.mxu0 %v522
          %620 = vmatpush.msra.mxu0 %v520
          %621 = vmatpush.msra.mxu0 %v518
          %622 = vmatpush.msra.mxu0 %v516
          %623 = vmatpush.msra.mxu0 %v514
          %624 = vmatpush.msra.mxu0 %v512
          %625 = vmatpush.msra.mxu0 %v510
          %626 = vmatpush.msra.mxu0 %v508
          %627 = vmatmul.f32.gmra.mxu0 %v445
          %v628 = vpop.f32.mrf.mxu0
          %v629 = vadd.f32 %v564, %v628
          %630 = vmatmul.f32.gmra.mxu0 %v447
          %v631 = vpop.f32.mrf.mxu0
          %v632 = vadd.f32 %v567, %v631
          %633 = vmatmul.f32.gmra.mxu0 %v449
          %v634 = vpop.f32.mrf.mxu0
          %v635 = vadd.f32 %v570, %v634
          %636 = vmatmul.f32.gmra.mxu0 %v451
          %v637 = vpop.f32.mrf.mxu0
          %v638 = vadd.f32 %v573, %v637
          %639 = vmatmul.f32.gmra.mxu0 %v453
          %v640 = vpop.f32.mrf.mxu0
          %v641 = vadd.f32 %v576, %v640
          %642 = vmatmul.f32.gmra.mxu0 %v455
          %v643 = vpop.f32.mrf.mxu0
          %v644 = vadd.f32 %v579, %v643
          %645 = vmatmul.f32.gmra.mxu0 %v457
          %v646 = vpop.f32.mrf.mxu0
          %v647 = vadd.f32 %v582, %v646
          %648 = vmatmul.f32.gmra.mxu0 %v459
          %v649 = vpop.f32.mrf.mxu0
          %v650 = vadd.f32 %v585, %v649
          %651 = vmatmul.f32.gmra.mxu0 %v461
          %v652 = vpop.f32.mrf.mxu0
          %v653 = vadd.f32 %v588, %v652
          %654 = vmatmul.f32.gmra.mxu0 %v463
          %v655 = vpop.f32.mrf.mxu0
          %v656 = vadd.f32 %v591, %v655
          %657 = vmatmul.f32.gmra.mxu0 %v465
          %v658 = vpop.f32.mrf.mxu0
          %v659 = vadd.f32 %v594, %v658
          %660 = vmatmul.f32.gmra.mxu0 %v467
          %v661 = vpop.f32.mrf.mxu0
          %v662 = vadd.f32 %v597, %v661
          %663 = vmatmul.f32.gmra.mxu0 %v469
          %v664 = vpop.f32.mrf.mxu0
          %v665 = vadd.f32 %v600, %v664
          %666 = vmatmul.f32.gmra.mxu0 %v471
          %v667 = vpop.f32.mrf.mxu0
          %v668 = vadd.f32 %v603, %v667
          %669 = vmatmul.f32.gmra.mxu0 %v473
          %v670 = vpop.f32.mrf.mxu0
          %v671 = vadd.f32 %v606, %v670
          %672 = vmatmul.f32.gmra.mxu0 %v475
          %v673 = vpop.f32.mrf.mxu0
          %v674 = vadd.f32 %v609, %v673
          %675 = vdwg.mxu0
          %676 = vmatpush.msra.mxu0 %v507
          %677 = vmatpush.msra.mxu0 %v505
          %678 = vmatpush.msra.mxu0 %v503
          %679 = vmatpush.msra.mxu0 %v501
          %680 = vmatpush.msra.mxu0 %v499
          %681 = vmatpush.msra.mxu0 %v497
          %682 = vmatpush.msra.mxu0 %v495
          %683 = vmatpush.msra.mxu0 %v493
          %684 = vmatpush.msra.mxu0 %v491
          %685 = vmatpush.msra.mxu0 %v489
          %686 = vmatpush.msra.mxu0 %v487
          %687 = vmatpush.msra.mxu0 %v485
          %688 = vmatpush.msra.mxu0 %v483
          %689 = vmatpush.msra.mxu0 %v481
          %690 = vmatpush.msra.mxu0 %v479
          %691 = vmatpush.msra.mxu0 %v477
          %692 = vmatmul.f32.gmra.mxu0 %v444
          %v693 = vpop.f32.mrf.mxu0
          %v694 = vadd.f32 %v543, %v693
          %695 = vmatmul.f32.gmra.mxu0 %v446
          %v696 = vpop.f32.mrf.mxu0
          %v697 = vadd.f32 %v543, %v696
          %698 = vmatmul.f32.gmra.mxu0 %v448
          %v699 = vpop.f32.mrf.mxu0
          %v700 = vadd.f32 %v543, %v699
          %701 = vmatmul.f32.gmra.mxu0 %v450
          %v702 = vpop.f32.mrf.mxu0
          %v703 = vadd.f32 %v543, %v702
          %704 = vmatmul.f32.gmra.mxu0 %v452
          %v705 = vpop.f32.mrf.mxu0
          %v706 = vadd.f32 %v543, %v705
          %707 = vmatmul.f32.gmra.mxu0 %v454
          %v708 = vpop.f32.mrf.mxu0
          %v709 = vadd.f32 %v543, %v708
          %710 = vmatmul.f32.gmra.mxu0 %v456
          %v711 = vpop.f32.mrf.mxu0
          %v712 = vadd.f32 %v543, %v711
          %713 = vmatmul.f32.gmra.mxu0 %v458
          %v714 = vpop.f32.mrf.mxu0
          %v715 = vadd.f32 %v543, %v714
          %716 = vmatmul.f32.gmra.mxu0 %v460
          %v717 = vpop.f32.mrf.mxu0
          %v718 = vadd.f32 %v543, %v717
          %719 = vmatmul.f32.gmra.mxu0 %v462
          %v720 = vpop.f32.mrf.mxu0
          %v721 = vadd.f32 %v543, %v720
          %722 = vmatmul.f32.gmra.mxu0 %v464
          %v723 = vpop.f32.mrf.mxu0
          %v724 = vadd.f32 %v543, %v723
          %725 = vmatmul.f32.gmra.mxu0 %v466
          %v726 = vpop.f32.mrf.mxu0
          %v727 = vadd.f32 %v543, %v726
          %728 = vmatmul.f32.gmra.mxu0 %v468
          %v729 = vpop.f32.mrf.mxu0
          %v730 = vadd.f32 %v543, %v729
          %731 = vmatmul.f32.gmra.mxu0 %v470
          %v732 = vpop.f32.mrf.mxu0
          %v733 = vadd.f32 %v543, %v732
          %734 = vmatmul.f32.gmra.mxu0 %v472
          %v735 = vpop.f32.mrf.mxu0
          %v736 = vadd.f32 %v543, %v735
          %737 = vmatmul.f32.gmra.mxu0 %v474
          %v738 = vpop.f32.mrf.mxu0
          %v739 = vadd.f32 %v543, %v738
          %740 = vdwg.mxu0
          %741 = vmatpush.msra.mxu0 %v539
          %742 = vmatpush.msra.mxu0 %v537
          %743 = vmatpush.msra.mxu0 %v535
          %744 = vmatpush.msra.mxu0 %v533
          %745 = vmatpush.msra.mxu0 %v531
          %746 = vmatpush.msra.mxu0 %v529
          %747 = vmatpush.msra.mxu0 %v527
          %748 = vmatpush.msra.mxu0 %v525
          %749 = vmatpush.msra.mxu0 %v523
          %750 = vmatpush.msra.mxu0 %v521
          %751 = vmatpush.msra.mxu0 %v519
          %752 = vmatpush.msra.mxu0 %v517
          %753 = vmatpush.msra.mxu0 %v515
          %754 = vmatpush.msra.mxu0 %v513
          %755 = vmatpush.msra.mxu0 %v511
          %756 = vmatpush.msra.mxu0 %v509
          %757 = vmatmul.f32.gmra.mxu0 %v445
          %v758 = vpop.f32.mrf.mxu0
          %v759 = vadd.f32 %v694, %v758
          %760 = vmatmul.f32.gmra.mxu0 %v447
          %v761 = vpop.f32.mrf.mxu0
          %v762 = vadd.f32 %v697, %v761
          %763 = vmatmul.f32.gmra.mxu0 %v449
          %v764 = vpop.f32.mrf.mxu0
          %v765 = vadd.f32 %v700, %v764
          %766 = vmatmul.f32.gmra.mxu0 %v451
          %v767 = vpop.f32.mrf.mxu0
          %v768 = vadd.f32 %v703, %v767
          %769 = vmatmul.f32.gmra.mxu0 %v453
          %v770 = vpop.f32.mrf.mxu0
          %v771 = vadd.f32 %v706, %v770
          %772 = vmatmul.f32.gmra.mxu0 %v455
          %v773 = vpop.f32.mrf.mxu0
          %v774 = vadd.f32 %v709, %v773
          %775 = vmatmul.f32.gmra.mxu0 %v457
          %v776 = vpop.f32.mrf.mxu0
          %v777 = vadd.f32 %v712, %v776
          %778 = vmatmul.f32.gmra.mxu0 %v459
          %v779 = vpop.f32.mrf.mxu0
          %v780 = vadd.f32 %v715, %v779
          %781 = vmatmul.f32.gmra.mxu0 %v461
          %v782 = vpop.f32.mrf.mxu0
          %v783 = vadd.f32 %v718, %v782
          %784 = vmatmul.f32.gmra.mxu0 %v463
          %v785 = vpop.f32.mrf.mxu0
          %v786 = vadd.f32 %v721, %v785
          %787 = vmatmul.f32.gmra.mxu0 %v465
          %v788 = vpop.f32.mrf.mxu0
          %v789 = vadd.f32 %v724, %v788
          %790 = vmatmul.f32.gmra.mxu0 %v467
          %v791 = vpop.f32.mrf.mxu0
          %v792 = vadd.f32 %v727, %v791
          %793 = vmatmul.f32.gmra.mxu0 %v469
          %v794 = vpop.f32.mrf.mxu0
          %v795 = vadd.f32 %v730, %v794
          %796 = vmatmul.f32.gmra.mxu0 %v471
          %v797 = vpop.f32.mrf.mxu0
          %v798 = vadd.f32 %v733, %v797
          %799 = vmatmul.f32.gmra.mxu0 %v473
          %v800 = vpop.f32.mrf.mxu0
          %v801 = vadd.f32 %v736, %v800
          %802 = vmatmul.f32.gmra.mxu0 %v475
          %v803 = vpop.f32.mrf.mxu0
          %v804 = vadd.f32 %v739, %v803
          %805 = vdwg.mxu0
          %v806 = vmul.f32 %v629, 0.5
          %v807 = vmul.f32 %v759, 0.5
          %v808 = vmul.f32 %v632, 0.5
          %v809 = vmul.f32 %v762, 0.5
          %v810 = vmul.f32 %v635, 0.5
          %v811 = vmul.f32 %v765, 0.5
          %v812 = vmul.f32 %v638, 0.5
          %v813 = vmul.f32 %v768, 0.5
          %v814 = vmul.f32 %v641, 0.5
          %v815 = vmul.f32 %v771, 0.5
          %v816 = vmul.f32 %v644, 0.5
          %v817 = vmul.f32 %v774, 0.5
          %v818 = vmul.f32 %v647, 0.5
          %v819 = vmul.f32 %v777, 0.5
          %v820 = vmul.f32 %v650, 0.5
          %v821 = vmul.f32 %v780, 0.5
          %v822 = vmul.f32 %v653, 0.5
          %v823 = vmul.f32 %v783, 0.5
          %v824 = vmul.f32 %v656, 0.5
          %v825 = vmul.f32 %v786, 0.5
          %v826 = vmul.f32 %v659, 0.5
          %v827 = vmul.f32 %v789, 0.5
          %v828 = vmul.f32 %v662, 0.5
          %v829 = vmul.f32 %v792, 0.5
          %v830 = vmul.f32 %v665, 0.5
          %v831 = vmul.f32 %v795, 0.5
          %v832 = vmul.f32 %v668, 0.5
          %v833 = vmul.f32 %v798, 0.5
          %v834 = vmul.f32 %v671, 0.5
          %v835 = vmul.f32 %v801, 0.5
          %v836 = vmul.f32 %v674, 0.5
          %v837 = vmul.f32 %v804, 0.5
          %v838 = vmul.f32 %v629, 0.70710677
          %v839 = vmul.f32 %v759, 0.70710677
          %v840 = vmul.f32 %v632, 0.70710677
          %v841 = vmul.f32 %v762, 0.70710677
          %v842 = vmul.f32 %v635, 0.70710677
          %v843 = vmul.f32 %v765, 0.70710677
          %v844 = vmul.f32 %v638, 0.70710677
          %v845 = vmul.f32 %v768, 0.70710677
          %v846 = vmul.f32 %v641, 0.70710677
          %v847 = vmul.f32 %v771, 0.70710677
          %v848 = vmul.f32 %v644, 0.70710677
          %v849 = vmul.f32 %v774, 0.70710677
          %v850 = vmul.f32 %v647, 0.70710677
          %v851 = vmul.f32 %v777, 0.70710677
          %v852 = vmul.f32 %v650, 0.70710677
          %v853 = vmul.f32 %v780, 0.70710677
          %v854 = vmul.f32 %v653, 0.70710677
          %v855 = vmul.f32 %v783, 0.70710677
          %v856 = vmul.f32 %v656, 0.70710677
          %v857 = vmul.f32 %v786, 0.70710677
          %v858 = vmul.f32 %v659, 0.70710677
          %v859 = vmul.f32 %v789, 0.70710677
          %v860 = vmul.f32 %v662, 0.70710677
          %v861 = vmul.f32 %v792, 0.70710677
          %v862 = vmul.f32 %v665, 0.70710677
          %v863 = vmul.f32 %v795, 0.70710677
          %v864 = vmul.f32 %v668, 0.70710677
          %v865 = vmul.f32 %v798, 0.70710677
          %v866 = vmul.f32 %v671, 0.70710677
          %v867 = vmul.f32 %v801, 0.70710677
          %v868 = vmul.f32 %v674, 0.70710677
          %v869 = vmul.f32 %v804, 0.70710677
          %v870 = vmul.f32 %v838, %v838
          %v871 = vmin.f32 16.0, %v870
          %v872 = vmul.f32 %v871, 2.1237322e-06
          %v873 = vadd.f32 %v872, 0.00028619796
          %v874 = vmul.f32 %v871, %v873
          %v875 = vadd.f32 %v874, 0.0036580483
          %v876 = vmul.f32 %v871, %v875
          %v877 = vadd.f32 %v876, 0.05243302
          %v878 = vmul.f32 %v871, %v877
          %v879 = vadd.f32 %v878, 0.18741608
          %v880 = vmul.f32 %v871, %v879
          %v881 = vadd.f32 %v880, 1.1283791
          %v882 = vmul.f32 %v838, %v881
          %v883 = vmul.f32 %v871, 3.8918573e-05
          %v884 = vadd.f32 %v883, 0.001143296
          %v885 = vmul.f32 %v871, %v884
          %v886 = vadd.f32 %v885, 0.014752088
          %v887 = vmul.f32 %v871, %v886
          %v888 = vadd.f32 %v887, 0.112945676
          %v889 = vmul.f32 %v871, %v888
          %v890 = vadd.f32 %v889, 0.4994258
          %v891 = vmul.f32 %v871, %v890
          %v892 = vadd.f32 %v891, 1.0
          %v893 = vrcp.pop %v892
          %v894 = vmul.f32 %v892, %v893
          %v895 = vsub.f32 1.0, %v894
          %v896 = vmul.f32 %v893, %v895
          %v897 = vadd.f32 %v893, %v896
          %vm898 = vweird.f32 %v892
          %vm899 = vweird.f32 %v893
          %vm900 = vmor %vm898, %vm899
          %v901 = vsel %vm900, %v893, %v897
          %v902 = vand.u32 2147483647, %v892
          %vm903 = vcmp.eq.f32.partialorder %v902, 8.507059e+37
          %v904 = vand.u32 %v892, 2147483648
          %v905 = vor.u32 1.1754944e-38, %v904
          %v906 = vsel %vm903, %v905, %v901
          %v907 = vmul.f32 %v882, %v906
          %v908 = vmin.f32 %v907, 1.0
          %v909 = vmax.f32 %v908, -1.0
          %v910 = vmul.f32 %v839, %v839
          %v911 = vmin.f32 16.0, %v910
          %v912 = vmul.f32 %v911, 2.1237322e-06
          %v913 = vadd.f32 %v912, 0.00028619796
          %v914 = vmul.f32 %v911, %v913
          %v915 = vadd.f32 %v914, 0.0036580483
          %v916 = vmul.f32 %v911, %v915
          %v917 = vadd.f32 %v916, 0.05243302
          %v918 = vmul.f32 %v911, %v917
          %v919 = vadd.f32 %v918, 0.18741608
          %v920 = vmul.f32 %v911, %v919
          %v921 = vadd.f32 %v920, 1.1283791
          %v922 = vmul.f32 %v839, %v921
          %v923 = vmul.f32 %v911, 3.8918573e-05
          %v924 = vadd.f32 %v923, 0.001143296
          %v925 = vmul.f32 %v911, %v924
          %v926 = vadd.f32 %v925, 0.014752088
          %v927 = vmul.f32 %v911, %v926
          %v928 = vadd.f32 %v927, 0.112945676
          %v929 = vmul.f32 %v911, %v928
          %v930 = vadd.f32 %v929, 0.4994258
          %v931 = vmul.f32 %v911, %v930
          %v932 = vadd.f32 %v931, 1.0
          %v933 = vrcp.pop %v932
          %v934 = vmul.f32 %v932, %v933
          %v935 = vsub.f32 1.0, %v934
          %v936 = vmul.f32 %v933, %v935
          %v937 = vadd.f32 %v933, %v936
          %vm938 = vweird.f32 %v932
          %vm939 = vweird.f32 %v933
          %vm940 = vmor %vm938, %vm939
          %v941 = vsel %vm940, %v933, %v937
          %v942 = vand.u32 2147483647, %v932
          %vm943 = vcmp.eq.f32.partialorder %v942, 8.507059e+37
          %v944 = vand.u32 %v932, 2147483648
          %v945 = vor.u32 1.1754944e-38, %v944
          %v946 = vsel %vm943, %v945, %v941
          %v947 = vmul.f32 %v922, %v946
          %v948 = vmin.f32 %v947, 1.0
          %v949 = vmax.f32 %v948, -1.0
          %v950 = vmul.f32 %v840, %v840
          %v951 = vmin.f32 16.0, %v950
          %v952 = vmul.f32 %v951, 2.1237322e-06
          %v953 = vadd.f32 %v952, 0.00028619796
          %v954 = vmul.f32 %v951, %v953
          %v955 = vadd.f32 %v954, 0.0036580483
          %v956 = vmul.f32 %v951, %v955
          %v957 = vadd.f32 %v956, 0.05243302
          %v958 = vmul.f32 %v951, %v957
          %v959 = vadd.f32 %v958, 0.18741608
          %v960 = vmul.f32 %v951, %v959
          %v961 = vadd.f32 %v960, 1.1283791
          %v962 = vmul.f32 %v840, %v961
          %v963 = vmul.f32 %v951, 3.8918573e-05
          %v964 = vadd.f32 %v963, 0.001143296
          %v965 = vmul.f32 %v951, %v964
          %v966 = vadd.f32 %v965, 0.014752088
          %v967 = vmul.f32 %v951, %v966
          %v968 = vadd.f32 %v967, 0.112945676
          %v969 = vmul.f32 %v951, %v968
          %v970 = vadd.f32 %v969, 0.4994258
          %v971 = vmul.f32 %v951, %v970
          %v972 = vadd.f32 %v971, 1.0
          %v973 = vrcp.pop %v972
          %v974 = vmul.f32 %v972, %v973
          %v975 = vsub.f32 1.0, %v974
          %v976 = vmul.f32 %v973, %v975
          %v977 = vadd.f32 %v973, %v976
          %vm978 = vweird.f32 %v972
          %vm979 = vweird.f32 %v973
          %vm980 = vmor %vm978, %vm979
          %v981 = vsel %vm980, %v973, %v977
          %v982 = vand.u32 2147483647, %v972
          %vm983 = vcmp.eq.f32.partialorder %v982, 8.507059e+37
          %v984 = vand.u32 %v972, 2147483648
          %v985 = vor.u32 1.1754944e-38, %v984
          %v986 = vsel %vm983, %v985, %v981
          %v987 = vmul.f32 %v962, %v986
          %v988 = vmin.f32 %v987, 1.0
          %v989 = vmax.f32 %v988, -1.0
          %v990 = vmul.f32 %v841, %v841
          %v991 = vmin.f32 16.0, %v990
          %v992 = vmul.f32 %v991, 2.1237322e-06
          %v993 = vadd.f32 %v992, 0.00028619796
          %v994 = vmul.f32 %v991, %v993
          %v995 = vadd.f32 %v994, 0.0036580483
          %v996 = vmul.f32 %v991, %v995
          %v997 = vadd.f32 %v996, 0.05243302
          %v998 = vmul.f32 %v991, %v997
          %v999 = vadd.f32 %v998, 0.18741608
          %v1000 = vmul.f32 %v991, %v999
          %v1001 = vadd.f32 %v1000, 1.1283791
          %v1002 = vmul.f32 %v841, %v1001
          %v1003 = vmul.f32 %v991, 3.8918573e-05
          %v1004 = vadd.f32 %v1003, 0.001143296
          %v1005 = vmul.f32 %v991, %v1004
          %v1006 = vadd.f32 %v1005, 0.014752088
          %v1007 = vmul.f32 %v991, %v1006
          %v1008 = vadd.f32 %v1007, 0.112945676
          %v1009 = vmul.f32 %v991, %v1008
          %v1010 = vadd.f32 %v1009, 0.4994258
          %v1011 = vmul.f32 %v991, %v1010
          %v1012 = vadd.f32 %v1011, 1.0
          %v1013 = vrcp.pop %v1012
          %v1014 = vmul.f32 %v1012, %v1013
          %v1015 = vsub.f32 1.0, %v1014
          %v1016 = vmul.f32 %v1013, %v1015
          %v1017 = vadd.f32 %v1013, %v1016
          %vm1018 = vweird.f32 %v1012
          %vm1019 = vweird.f32 %v1013
          %vm1020 = vmor %vm1018, %vm1019
          %v1021 = vsel %vm1020, %v1013, %v1017
          %v1022 = vand.u32 2147483647, %v1012
          %vm1023 = vcmp.eq.f32.partialorder %v1022, 8.507059e+37
          %v1024 = vand.u32 %v1012, 2147483648
          %v1025 = vor.u32 1.1754944e-38, %v1024
          %v1026 = vsel %vm1023, %v1025, %v1021
          %v1027 = vmul.f32 %v1002, %v1026
          %v1028 = vmin.f32 %v1027, 1.0
          %v1029 = vmax.f32 %v1028, -1.0
          %v1030 = vmul.f32 %v842, %v842
          %v1031 = vmin.f32 16.0, %v1030
          %v1032 = vmul.f32 %v1031, 2.1237322e-06
          %v1033 = vadd.f32 %v1032, 0.00028619796
          %v1034 = vmul.f32 %v1031, %v1033
          %v1035 = vadd.f32 %v1034, 0.0036580483
          %v1036 = vmul.f32 %v1031, %v1035
          %v1037 = vadd.f32 %v1036, 0.05243302
          %v1038 = vmul.f32 %v1031, %v1037
          %v1039 = vadd.f32 %v1038, 0.18741608
          %v1040 = vmul.f32 %v1031, %v1039
          %v1041 = vadd.f32 %v1040, 1.1283791
          %v1042 = vmul.f32 %v842, %v1041
          %v1043 = vmul.f32 %v1031, 3.8918573e-05
          %v1044 = vadd.f32 %v1043, 0.001143296
          %v1045 = vmul.f32 %v1031, %v1044
          %v1046 = vadd.f32 %v1045, 0.014752088
          %v1047 = vmul.f32 %v1031, %v1046
          %v1048 = vadd.f32 %v1047, 0.112945676
          %v1049 = vmul.f32 %v1031, %v1048
          %v1050 = vadd.f32 %v1049, 0.4994258
          %v1051 = vmul.f32 %v1031, %v1050
          %v1052 = vadd.f32 %v1051, 1.0
          %v1053 = vrcp.pop %v1052
          %v1054 = vmul.f32 %v1052, %v1053
          %v1055 = vsub.f32 1.0, %v1054
          %v1056 = vmul.f32 %v1053, %v1055
          %v1057 = vadd.f32 %v1053, %v1056
          %vm1058 = vweird.f32 %v1052
          %vm1059 = vweird.f32 %v1053
          %vm1060 = vmor %vm1058, %vm1059
          %v1061 = vsel %vm1060, %v1053, %v1057
          %v1062 = vand.u32 2147483647, %v1052
          %vm1063 = vcmp.eq.f32.partialorder %v1062, 8.507059e+37
          %v1064 = vand.u32 %v1052, 2147483648
          %v1065 = vor.u32 1.1754944e-38, %v1064
          %v1066 = vsel %vm1063, %v1065, %v1061
          %v1067 = vmul.f32 %v1042, %v1066
          %v1068 = vmin.f32 %v1067, 1.0
          %v1069 = vmax.f32 %v1068, -1.0
          %v1070 = vmul.f32 %v843, %v843
          %v1071 = vmin.f32 16.0, %v1070
          %v1072 = vmul.f32 %v1071, 2.1237322e-06
          %v1073 = vadd.f32 %v1072, 0.00028619796
          %v1074 = vmul.f32 %v1071, %v1073
          %v1075 = vadd.f32 %v1074, 0.0036580483
          %v1076 = vmul.f32 %v1071, %v1075
          %v1077 = vadd.f32 %v1076, 0.05243302
          %v1078 = vmul.f32 %v1071, %v1077
          %v1079 = vadd.f32 %v1078, 0.18741608
          %v1080 = vmul.f32 %v1071, %v1079
          %v1081 = vadd.f32 %v1080, 1.1283791
          %v1082 = vmul.f32 %v843, %v1081
          %v1083 = vmul.f32 %v1071, 3.8918573e-05
          %v1084 = vadd.f32 %v1083, 0.001143296
          %v1085 = vmul.f32 %v1071, %v1084
          %v1086 = vadd.f32 %v1085, 0.014752088
          %v1087 = vmul.f32 %v1071, %v1086
          %v1088 = vadd.f32 %v1087, 0.112945676
          %v1089 = vmul.f32 %v1071, %v1088
          %v1090 = vadd.f32 %v1089, 0.4994258
          %v1091 = vmul.f32 %v1071, %v1090
          %v1092 = vadd.f32 %v1091, 1.0
          %v1093 = vrcp.pop %v1092
          %v1094 = vmul.f32 %v1092, %v1093
          %v1095 = vsub.f32 1.0, %v1094
          %v1096 = vmul.f32 %v1093, %v1095
          %v1097 = vadd.f32 %v1093, %v1096
          %vm1098 = vweird.f32 %v1092
          %vm1099 = vweird.f32 %v1093
          %vm1100 = vmor %vm1098, %vm1099
          %v1101 = vsel %vm1100, %v1093, %v1097
          %v1102 = vand.u32 2147483647, %v1092
          %vm1103 = vcmp.eq.f32.partialorder %v1102, 8.507059e+37
          %v1104 = vand.u32 %v1092, 2147483648
          %v1105 = vor.u32 1.1754944e-38, %v1104
          %v1106 = vsel %vm1103, %v1105, %v1101
          %v1107 = vmul.f32 %v1082, %v1106
          %v1108 = vmin.f32 %v1107, 1.0
          %v1109 = vmax.f32 %v1108, -1.0
          %v1110 = vmul.f32 %v844, %v844
          %v1111 = vmin.f32 16.0, %v1110
          %v1112 = vmul.f32 %v1111, 2.1237322e-06
          %v1113 = vadd.f32 %v1112, 0.00028619796
          %v1114 = vmul.f32 %v1111, %v1113
          %v1115 = vadd.f32 %v1114, 0.0036580483
          %v1116 = vmul.f32 %v1111, %v1115
          %v1117 = vadd.f32 %v1116, 0.05243302
          %v1118 = vmul.f32 %v1111, %v1117
          %v1119 = vadd.f32 %v1118, 0.18741608
          %v1120 = vmul.f32 %v1111, %v1119
          %v1121 = vadd.f32 %v1120, 1.1283791
          %v1122 = vmul.f32 %v844, %v1121
          %v1123 = vmul.f32 %v1111, 3.8918573e-05
          %v1124 = vadd.f32 %v1123, 0.001143296
          %v1125 = vmul.f32 %v1111, %v1124
          %v1126 = vadd.f32 %v1125, 0.014752088
          %v1127 = vmul.f32 %v1111, %v1126
          %v1128 = vadd.f32 %v1127, 0.112945676
          %v1129 = vmul.f32 %v1111, %v1128
          %v1130 = vadd.f32 %v1129, 0.4994258
          %v1131 = vmul.f32 %v1111, %v1130
          %v1132 = vadd.f32 %v1131, 1.0
          %v1133 = vrcp.pop %v1132
          %v1134 = vmul.f32 %v1132, %v1133
          %v1135 = vsub.f32 1.0, %v1134
          %v1136 = vmul.f32 %v1133, %v1135
          %v1137 = vadd.f32 %v1133, %v1136
          %vm1138 = vweird.f32 %v1132
          %vm1139 = vweird.f32 %v1133
          %vm1140 = vmor %vm1138, %vm1139
          %v1141 = vsel %vm1140, %v1133, %v1137
          %v1142 = vand.u32 2147483647, %v1132
          %vm1143 = vcmp.eq.f32.partialorder %v1142, 8.507059e+37
          %v1144 = vand.u32 %v1132, 2147483648
          %v1145 = vor.u32 1.1754944e-38, %v1144
          %v1146 = vsel %vm1143, %v1145, %v1141
          %v1147 = vmul.f32 %v1122, %v1146
          %v1148 = vmin.f32 %v1147, 1.0
          %v1149 = vmax.f32 %v1148, -1.0
          %v1150 = vmul.f32 %v845, %v845
          %v1151 = vmin.f32 16.0, %v1150
          %v1152 = vmul.f32 %v1151, 2.1237322e-06
          %v1153 = vadd.f32 %v1152, 0.00028619796
          %v1154 = vmul.f32 %v1151, %v1153
          %v1155 = vadd.f32 %v1154, 0.0036580483
          %v1156 = vmul.f32 %v1151, %v1155
          %v1157 = vadd.f32 %v1156, 0.05243302
          %v1158 = vmul.f32 %v1151, %v1157
          %v1159 = vadd.f32 %v1158, 0.18741608
          %v1160 = vmul.f32 %v1151, %v1159
          %v1161 = vadd.f32 %v1160, 1.1283791
          %v1162 = vmul.f32 %v845, %v1161
          %v1163 = vmul.f32 %v1151, 3.8918573e-05
          %v1164 = vadd.f32 %v1163, 0.001143296
          %v1165 = vmul.f32 %v1151, %v1164
          %v1166 = vadd.f32 %v1165, 0.014752088
          %v1167 = vmul.f32 %v1151, %v1166
          %v1168 = vadd.f32 %v1167, 0.112945676
          %v1169 = vmul.f32 %v1151, %v1168
          %v1170 = vadd.f32 %v1169, 0.4994258
          %v1171 = vmul.f32 %v1151, %v1170
          %v1172 = vadd.f32 %v1171, 1.0
          %v1173 = vrcp.pop %v1172
          %v1174 = vmul.f32 %v1172, %v1173
          %v1175 = vsub.f32 1.0, %v1174
          %v1176 = vmul.f32 %v1173, %v1175
          %v1177 = vadd.f32 %v1173, %v1176
          %vm1178 = vweird.f32 %v1172
          %vm1179 = vweird.f32 %v1173
          %vm1180 = vmor %vm1178, %vm1179
          %v1181 = vsel %vm1180, %v1173, %v1177
          %v1182 = vand.u32 2147483647, %v1172
          %vm1183 = vcmp.eq.f32.partialorder %v1182, 8.507059e+37
          %v1184 = vand.u32 %v1172, 2147483648
          %v1185 = vor.u32 1.1754944e-38, %v1184
          %v1186 = vsel %vm1183, %v1185, %v1181
          %v1187 = vmul.f32 %v1162, %v1186
          %v1188 = vmin.f32 %v1187, 1.0
          %v1189 = vmax.f32 %v1188, -1.0
          %v1190 = vmul.f32 %v846, %v846
          %v1191 = vmin.f32 16.0, %v1190
          %v1192 = vmul.f32 %v1191, 2.1237322e-06
          %v1193 = vadd.f32 %v1192, 0.00028619796
          %v1194 = vmul.f32 %v1191, %v1193
          %v1195 = vadd.f32 %v1194, 0.0036580483
          %v1196 = vmul.f32 %v1191, %v1195
          %v1197 = vadd.f32 %v1196, 0.05243302
          %v1198 = vmul.f32 %v1191, %v1197
          %v1199 = vadd.f32 %v1198, 0.18741608
          %v1200 = vmul.f32 %v1191, %v1199
          %v1201 = vadd.f32 %v1200, 1.1283791
          %v1202 = vmul.f32 %v846, %v1201
          %v1203 = vmul.f32 %v1191, 3.8918573e-05
          %v1204 = vadd.f32 %v1203, 0.001143296
          %v1205 = vmul.f32 %v1191, %v1204
          %v1206 = vadd.f32 %v1205, 0.014752088
          %v1207 = vmul.f32 %v1191, %v1206
          %v1208 = vadd.f32 %v1207, 0.112945676
          %v1209 = vmul.f32 %v1191, %v1208
          %v1210 = vadd.f32 %v1209, 0.4994258
          %v1211 = vmul.f32 %v1191, %v1210
          %v1212 = vadd.f32 %v1211, 1.0
          %v1213 = vrcp.pop %v1212
          %v1214 = vmul.f32 %v1212, %v1213
          %v1215 = vsub.f32 1.0, %v1214
          %v1216 = vmul.f32 %v1213, %v1215
          %v1217 = vadd.f32 %v1213, %v1216
          %vm1218 = vweird.f32 %v1212
          %vm1219 = vweird.f32 %v1213
          %vm1220 = vmor %vm1218, %vm1219
          %v1221 = vsel %vm1220, %v1213, %v1217
          %v1222 = vand.u32 2147483647, %v1212
          %vm1223 = vcmp.eq.f32.partialorder %v1222, 8.507059e+37
          %v1224 = vand.u32 %v1212, 2147483648
          %v1225 = vor.u32 1.1754944e-38, %v1224
          %v1226 = vsel %vm1223, %v1225, %v1221
          %v1227 = vmul.f32 %v1202, %v1226
          %v1228 = vmin.f32 %v1227, 1.0
          %v1229 = vmax.f32 %v1228, -1.0
          %v1230 = vmul.f32 %v847, %v847
          %v1231 = vmin.f32 16.0, %v1230
          %v1232 = vmul.f32 %v1231, 2.1237322e-06
          %v1233 = vadd.f32 %v1232, 0.00028619796
          %v1234 = vmul.f32 %v1231, %v1233
          %v1235 = vadd.f32 %v1234, 0.0036580483
          %v1236 = vmul.f32 %v1231, %v1235
          %v1237 = vadd.f32 %v1236, 0.05243302
          %v1238 = vmul.f32 %v1231, %v1237
          %v1239 = vadd.f32 %v1238, 0.18741608
          %v1240 = vmul.f32 %v1231, %v1239
          %v1241 = vadd.f32 %v1240, 1.1283791
          %v1242 = vmul.f32 %v847, %v1241
          %v1243 = vmul.f32 %v1231, 3.8918573e-05
          %v1244 = vadd.f32 %v1243, 0.001143296
          %v1245 = vmul.f32 %v1231, %v1244
          %v1246 = vadd.f32 %v1245, 0.014752088
          %v1247 = vmul.f32 %v1231, %v1246
          %v1248 = vadd.f32 %v1247, 0.112945676
          %v1249 = vmul.f32 %v1231, %v1248
          %v1250 = vadd.f32 %v1249, 0.4994258
          %v1251 = vmul.f32 %v1231, %v1250
          %v1252 = vadd.f32 %v1251, 1.0
          %v1253 = vrcp.pop %v1252
          %v1254 = vmul.f32 %v1252, %v1253
          %v1255 = vsub.f32 1.0, %v1254
          %v1256 = vmul.f32 %v1253, %v1255
          %v1257 = vadd.f32 %v1253, %v1256
          %vm1258 = vweird.f32 %v1252
          %vm1259 = vweird.f32 %v1253
          %vm1260 = vmor %vm1258, %vm1259
          %v1261 = vsel %vm1260, %v1253, %v1257
          %v1262 = vand.u32 2147483647, %v1252
          %vm1263 = vcmp.eq.f32.partialorder %v1262, 8.507059e+37
          %v1264 = vand.u32 %v1252, 2147483648
          %v1265 = vor.u32 1.1754944e-38, %v1264
          %v1266 = vsel %vm1263, %v1265, %v1261
          %v1267 = vmul.f32 %v1242, %v1266
          %v1268 = vmin.f32 %v1267, 1.0
          %v1269 = vmax.f32 %v1268, -1.0
          %v1270 = vmul.f32 %v848, %v848
          %v1271 = vmin.f32 16.0, %v1270
          %v1272 = vmul.f32 %v1271, 2.1237322e-06
          %v1273 = vadd.f32 %v1272, 0.00028619796
          %v1274 = vmul.f32 %v1271, %v1273
          %v1275 = vadd.f32 %v1274, 0.0036580483
          %v1276 = vmul.f32 %v1271, %v1275
          %v1277 = vadd.f32 %v1276, 0.05243302
          %v1278 = vmul.f32 %v1271, %v1277
          %v1279 = vadd.f32 %v1278, 0.18741608
          %v1280 = vmul.f32 %v1271, %v1279
          %v1281 = vadd.f32 %v1280, 1.1283791
          %v1282 = vmul.f32 %v848, %v1281
          %v1283 = vmul.f32 %v1271, 3.8918573e-05
          %v1284 = vadd.f32 %v1283, 0.001143296
          %v1285 = vmul.f32 %v1271, %v1284
          %v1286 = vadd.f32 %v1285, 0.014752088
          %v1287 = vmul.f32 %v1271, %v1286
          %v1288 = vadd.f32 %v1287, 0.112945676
          %v1289 = vmul.f32 %v1271, %v1288
          %v1290 = vadd.f32 %v1289, 0.4994258
          %v1291 = vmul.f32 %v1271, %v1290
          %v1292 = vadd.f32 %v1291, 1.0
          %v1293 = vrcp.pop %v1292
          %v1294 = vmul.f32 %v1292, %v1293
          %v1295 = vsub.f32 1.0, %v1294
          %v1296 = vmul.f32 %v1293, %v1295
          %v1297 = vadd.f32 %v1293, %v1296
          %vm1298 = vweird.f32 %v1292
          %vm1299 = vweird.f32 %v1293
          %vm1300 = vmor %vm1298, %vm1299
          %v1301 = vsel %vm1300, %v1293, %v1297
          %v1302 = vand.u32 2147483647, %v1292
          %vm1303 = vcmp.eq.f32.partialorder %v1302, 8.507059e+37
          %v1304 = vand.u32 %v1292, 2147483648
          %v1305 = vor.u32 1.1754944e-38, %v1304
          %v1306 = vsel %vm1303, %v1305, %v1301
          %v1307 = vmul.f32 %v1282, %v1306
          %v1308 = vmin.f32 %v1307, 1.0
          %v1309 = vmax.f32 %v1308, -1.0
          %v1310 = vmul.f32 %v849, %v849
          %v1311 = vmin.f32 16.0, %v1310
          %v1312 = vmul.f32 %v1311, 2.1237322e-06
          %v1313 = vadd.f32 %v1312, 0.00028619796
          %v1314 = vmul.f32 %v1311, %v1313
          %v1315 = vadd.f32 %v1314, 0.0036580483
          %v1316 = vmul.f32 %v1311, %v1315
          %v1317 = vadd.f32 %v1316, 0.05243302
          %v1318 = vmul.f32 %v1311, %v1317
          %v1319 = vadd.f32 %v1318, 0.18741608
          %v1320 = vmul.f32 %v1311, %v1319
          %v1321 = vadd.f32 %v1320, 1.1283791
          %v1322 = vmul.f32 %v849, %v1321
          %v1323 = vmul.f32 %v1311, 3.8918573e-05
          %v1324 = vadd.f32 %v1323, 0.001143296
          %v1325 = vmul.f32 %v1311, %v1324
          %v1326 = vadd.f32 %v1325, 0.014752088
          %v1327 = vmul.f32 %v1311, %v1326
          %v1328 = vadd.f32 %v1327, 0.112945676
          %v1329 = vmul.f32 %v1311, %v1328
          %v1330 = vadd.f32 %v1329, 0.4994258
          %v1331 = vmul.f32 %v1311, %v1330
          %v1332 = vadd.f32 %v1331, 1.0
          %v1333 = vrcp.pop %v1332
          %v1334 = vmul.f32 %v1332, %v1333
          %v1335 = vsub.f32 1.0, %v1334
          %v1336 = vmul.f32 %v1333, %v1335
          %v1337 = vadd.f32 %v1333, %v1336
          %vm1338 = vweird.f32 %v1332
          %vm1339 = vweird.f32 %v1333
          %vm1340 = vmor %vm1338, %vm1339
          %v1341 = vsel %vm1340, %v1333, %v1337
          %v1342 = vand.u32 2147483647, %v1332
          %vm1343 = vcmp.eq.f32.partialorder %v1342, 8.507059e+37
          %v1344 = vand.u32 %v1332, 2147483648
          %v1345 = vor.u32 1.1754944e-38, %v1344
          %v1346 = vsel %vm1343, %v1345, %v1341
          %v1347 = vmul.f32 %v1322, %v1346
          %v1348 = vmin.f32 %v1347, 1.0
          %v1349 = vmax.f32 %v1348, -1.0
          %v1350 = vmul.f32 %v850, %v850
          %v1351 = vmin.f32 16.0, %v1350
          %v1352 = vmul.f32 %v1351, 2.1237322e-06
          %v1353 = vadd.f32 %v1352, 0.00028619796
          %v1354 = vmul.f32 %v1351, %v1353
          %v1355 = vadd.f32 %v1354, 0.0036580483
          %v1356 = vmul.f32 %v1351, %v1355
          %v1357 = vadd.f32 %v1356, 0.05243302
          %v1358 = vmul.f32 %v1351, %v1357
          %v1359 = vadd.f32 %v1358, 0.18741608
          %v1360 = vmul.f32 %v1351, %v1359
          %v1361 = vadd.f32 %v1360, 1.1283791
          %v1362 = vmul.f32 %v850, %v1361
          %v1363 = vmul.f32 %v1351, 3.8918573e-05
          %v1364 = vadd.f32 %v1363, 0.001143296
          %v1365 = vmul.f32 %v1351, %v1364
          %v1366 = vadd.f32 %v1365, 0.014752088
          %v1367 = vmul.f32 %v1351, %v1366
          %v1368 = vadd.f32 %v1367, 0.112945676
          %v1369 = vmul.f32 %v1351, %v1368
          %v1370 = vadd.f32 %v1369, 0.4994258
          %v1371 = vmul.f32 %v1351, %v1370
          %v1372 = vadd.f32 %v1371, 1.0
          %v1373 = vrcp.pop %v1372
          %v1374 = vmul.f32 %v1372, %v1373
          %v1375 = vsub.f32 1.0, %v1374
          %v1376 = vmul.f32 %v1373, %v1375
          %v1377 = vadd.f32 %v1373, %v1376
          %vm1378 = vweird.f32 %v1372
          %vm1379 = vweird.f32 %v1373
          %vm1380 = vmor %vm1378, %vm1379
          %v1381 = vsel %vm1380, %v1373, %v1377
          %v1382 = vand.u32 2147483647, %v1372
          %vm1383 = vcmp.eq.f32.partialorder %v1382, 8.507059e+37
          %v1384 = vand.u32 %v1372, 2147483648
          %v1385 = vor.u32 1.1754944e-38, %v1384
          %v1386 = vsel %vm1383, %v1385, %v1381
          %v1387 = vmul.f32 %v1362, %v1386
          %v1388 = vmin.f32 %v1387, 1.0
          %v1389 = vmax.f32 %v1388, -1.0
          %v1390 = vmul.f32 %v851, %v851
          %v1391 = vmin.f32 16.0, %v1390
          %v1392 = vmul.f32 %v1391, 2.1237322e-06
          %v1393 = vadd.f32 %v1392, 0.00028619796
          %v1394 = vmul.f32 %v1391, %v1393
          %v1395 = vadd.f32 %v1394, 0.0036580483
          %v1396 = vmul.f32 %v1391, %v1395
          %v1397 = vadd.f32 %v1396, 0.05243302
          %v1398 = vmul.f32 %v1391, %v1397
          %v1399 = vadd.f32 %v1398, 0.18741608
          %v1400 = vmul.f32 %v1391, %v1399
          %v1401 = vadd.f32 %v1400, 1.1283791
          %v1402 = vmul.f32 %v851, %v1401
          %v1403 = vmul.f32 %v1391, 3.8918573e-05
          %v1404 = vadd.f32 %v1403, 0.001143296
          %v1405 = vmul.f32 %v1391, %v1404
          %v1406 = vadd.f32 %v1405, 0.014752088
          %v1407 = vmul.f32 %v1391, %v1406
          %v1408 = vadd.f32 %v1407, 0.112945676
          %v1409 = vmul.f32 %v1391, %v1408
          %v1410 = vadd.f32 %v1409, 0.4994258
          %v1411 = vmul.f32 %v1391, %v1410
          %v1412 = vadd.f32 %v1411, 1.0
          %v1413 = vrcp.pop %v1412
          %v1414 = vmul.f32 %v1412, %v1413
          %v1415 = vsub.f32 1.0, %v1414
          %v1416 = vmul.f32 %v1413, %v1415
          %v1417 = vadd.f32 %v1413, %v1416
          %vm1418 = vweird.f32 %v1412
          %vm1419 = vweird.f32 %v1413
          %vm1420 = vmor %vm1418, %vm1419
          %v1421 = vsel %vm1420, %v1413, %v1417
          %v1422 = vand.u32 2147483647, %v1412
          %vm1423 = vcmp.eq.f32.partialorder %v1422, 8.507059e+37
          %v1424 = vand.u32 %v1412, 2147483648
          %v1425 = vor.u32 1.1754944e-38, %v1424
          %v1426 = vsel %vm1423, %v1425, %v1421
          %v1427 = vmul.f32 %v1402, %v1426
          %v1428 = vmin.f32 %v1427, 1.0
          %v1429 = vmax.f32 %v1428, -1.0
          %v1430 = vmul.f32 %v852, %v852
          %v1431 = vmin.f32 16.0, %v1430
          %v1432 = vmul.f32 %v1431, 2.1237322e-06
          %v1433 = vadd.f32 %v1432, 0.00028619796
          %v1434 = vmul.f32 %v1431, %v1433
          %v1435 = vadd.f32 %v1434, 0.0036580483
          %v1436 = vmul.f32 %v1431, %v1435
          %v1437 = vadd.f32 %v1436, 0.05243302
          %v1438 = vmul.f32 %v1431, %v1437
          %v1439 = vadd.f32 %v1438, 0.18741608
          %v1440 = vmul.f32 %v1431, %v1439
          %v1441 = vadd.f32 %v1440, 1.1283791
          %v1442 = vmul.f32 %v852, %v1441
          %v1443 = vmul.f32 %v1431, 3.8918573e-05
          %v1444 = vadd.f32 %v1443, 0.001143296
          %v1445 = vmul.f32 %v1431, %v1444
          %v1446 = vadd.f32 %v1445, 0.014752088
          %v1447 = vmul.f32 %v1431, %v1446
          %v1448 = vadd.f32 %v1447, 0.112945676
          %v1449 = vmul.f32 %v1431, %v1448
          %v1450 = vadd.f32 %v1449, 0.4994258
          %v1451 = vmul.f32 %v1431, %v1450
          %v1452 = vadd.f32 %v1451, 1.0
          %v1453 = vrcp.pop %v1452
          %v1454 = vmul.f32 %v1452, %v1453
          %v1455 = vsub.f32 1.0, %v1454
          %v1456 = vmul.f32 %v1453, %v1455
          %v1457 = vadd.f32 %v1453, %v1456
          %vm1458 = vweird.f32 %v1452
          %vm1459 = vweird.f32 %v1453
          %vm1460 = vmor %vm1458, %vm1459
          %v1461 = vsel %vm1460, %v1453, %v1457
          %v1462 = vand.u32 2147483647, %v1452
          %vm1463 = vcmp.eq.f32.partialorder %v1462, 8.507059e+37
          %v1464 = vand.u32 %v1452, 2147483648
          %v1465 = vor.u32 1.1754944e-38, %v1464
          %v1466 = vsel %vm1463, %v1465, %v1461
          %v1467 = vmul.f32 %v1442, %v1466
          %v1468 = vmin.f32 %v1467, 1.0
          %v1469 = vmax.f32 %v1468, -1.0
          %v1470 = vmul.f32 %v853, %v853
          %v1471 = vmin.f32 16.0, %v1470
          %v1472 = vmul.f32 %v1471, 2.1237322e-06
          %v1473 = vadd.f32 %v1472, 0.00028619796
          %v1474 = vmul.f32 %v1471, %v1473
          %v1475 = vadd.f32 %v1474, 0.0036580483
          %v1476 = vmul.f32 %v1471, %v1475
          %v1477 = vadd.f32 %v1476, 0.05243302
          %v1478 = vmul.f32 %v1471, %v1477
          %v1479 = vadd.f32 %v1478, 0.18741608
          %v1480 = vmul.f32 %v1471, %v1479
          %v1481 = vadd.f32 %v1480, 1.1283791
          %v1482 = vmul.f32 %v853, %v1481
          %v1483 = vmul.f32 %v1471, 3.8918573e-05
          %v1484 = vadd.f32 %v1483, 0.001143296
          %v1485 = vmul.f32 %v1471, %v1484
          %v1486 = vadd.f32 %v1485, 0.014752088
          %v1487 = vmul.f32 %v1471, %v1486
          %v1488 = vadd.f32 %v1487, 0.112945676
          %v1489 = vmul.f32 %v1471, %v1488
          %v1490 = vadd.f32 %v1489, 0.4994258
          %v1491 = vmul.f32 %v1471, %v1490
          %v1492 = vadd.f32 %v1491, 1.0
          %v1493 = vrcp.pop %v1492
          %v1494 = vmul.f32 %v1492, %v1493
          %v1495 = vsub.f32 1.0, %v1494
          %v1496 = vmul.f32 %v1493, %v1495
          %v1497 = vadd.f32 %v1493, %v1496
          %vm1498 = vweird.f32 %v1492
          %vm1499 = vweird.f32 %v1493
          %vm1500 = vmor %vm1498, %vm1499
          %v1501 = vsel %vm1500, %v1493, %v1497
          %v1502 = vand.u32 2147483647, %v1492
          %vm1503 = vcmp.eq.f32.partialorder %v1502, 8.507059e+37
          %v1504 = vand.u32 %v1492, 2147483648
          %v1505 = vor.u32 1.1754944e-38, %v1504
          %v1506 = vsel %vm1503, %v1505, %v1501
          %v1507 = vmul.f32 %v1482, %v1506
          %v1508 = vmin.f32 %v1507, 1.0
          %v1509 = vmax.f32 %v1508, -1.0
          %v1510 = vmul.f32 %v854, %v854
          %v1511 = vmin.f32 16.0, %v1510
          %v1512 = vmul.f32 %v1511, 2.1237322e-06
          %v1513 = vadd.f32 %v1512, 0.00028619796
          %v1514 = vmul.f32 %v1511, %v1513
          %v1515 = vadd.f32 %v1514, 0.0036580483
          %v1516 = vmul.f32 %v1511, %v1515
          %v1517 = vadd.f32 %v1516, 0.05243302
          %v1518 = vmul.f32 %v1511, %v1517
          %v1519 = vadd.f32 %v1518, 0.18741608
          %v1520 = vmul.f32 %v1511, %v1519
          %v1521 = vadd.f32 %v1520, 1.1283791
          %v1522 = vmul.f32 %v854, %v1521
          %v1523 = vmul.f32 %v1511, 3.8918573e-05
          %v1524 = vadd.f32 %v1523, 0.001143296
          %v1525 = vmul.f32 %v1511, %v1524
          %v1526 = vadd.f32 %v1525, 0.014752088
          %v1527 = vmul.f32 %v1511, %v1526
          %v1528 = vadd.f32 %v1527, 0.112945676
          %v1529 = vmul.f32 %v1511, %v1528
          %v1530 = vadd.f32 %v1529, 0.4994258
          %v1531 = vmul.f32 %v1511, %v1530
          %v1532 = vadd.f32 %v1531, 1.0
          %v1533 = vrcp.pop %v1532
          %v1534 = vmul.f32 %v1532, %v1533
          %v1535 = vsub.f32 1.0, %v1534
          %v1536 = vmul.f32 %v1533, %v1535
          %v1537 = vadd.f32 %v1533, %v1536
          %vm1538 = vweird.f32 %v1532
          %vm1539 = vweird.f32 %v1533
          %vm1540 = vmor %vm1538, %vm1539
          %v1541 = vsel %vm1540, %v1533, %v1537
          %v1542 = vand.u32 2147483647, %v1532
          %vm1543 = vcmp.eq.f32.partialorder %v1542, 8.507059e+37
          %v1544 = vand.u32 %v1532, 2147483648
          %v1545 = vor.u32 1.1754944e-38, %v1544
          %v1546 = vsel %vm1543, %v1545, %v1541
          %v1547 = vmul.f32 %v1522, %v1546
          %v1548 = vmin.f32 %v1547, 1.0
          %v1549 = vmax.f32 %v1548, -1.0
          %v1550 = vmul.f32 %v855, %v855
          %v1551 = vmin.f32 16.0, %v1550
          %v1552 = vmul.f32 %v1551, 2.1237322e-06
          %v1553 = vadd.f32 %v1552, 0.00028619796
          %v1554 = vmul.f32 %v1551, %v1553
          %v1555 = vadd.f32 %v1554, 0.0036580483
          %v1556 = vmul.f32 %v1551, %v1555
          %v1557 = vadd.f32 %v1556, 0.05243302
          %v1558 = vmul.f32 %v1551, %v1557
          %v1559 = vadd.f32 %v1558, 0.18741608
          %v1560 = vmul.f32 %v1551, %v1559
          %v1561 = vadd.f32 %v1560, 1.1283791
          %v1562 = vmul.f32 %v855, %v1561
          %v1563 = vmul.f32 %v1551, 3.8918573e-05
          %v1564 = vadd.f32 %v1563, 0.001143296
          %v1565 = vmul.f32 %v1551, %v1564
          %v1566 = vadd.f32 %v1565, 0.014752088
          %v1567 = vmul.f32 %v1551, %v1566
          %v1568 = vadd.f32 %v1567, 0.112945676
          %v1569 = vmul.f32 %v1551, %v1568
          %v1570 = vadd.f32 %v1569, 0.4994258
          %v1571 = vmul.f32 %v1551, %v1570
          %v1572 = vadd.f32 %v1571, 1.0
          %v1573 = vrcp.pop %v1572
          %v1574 = vmul.f32 %v1572, %v1573
          %v1575 = vsub.f32 1.0, %v1574
          %v1576 = vmul.f32 %v1573, %v1575
          %v1577 = vadd.f32 %v1573, %v1576
          %vm1578 = vweird.f32 %v1572
          %vm1579 = vweird.f32 %v1573
          %vm1580 = vmor %vm1578, %vm1579
          %v1581 = vsel %vm1580, %v1573, %v1577
          %v1582 = vand.u32 2147483647, %v1572
          %vm1583 = vcmp.eq.f32.partialorder %v1582, 8.507059e+37
          %v1584 = vand.u32 %v1572, 2147483648
          %v1585 = vor.u32 1.1754944e-38, %v1584
          %v1586 = vsel %vm1583, %v1585, %v1581
          %v1587 = vmul.f32 %v1562, %v1586
          %v1588 = vmin.f32 %v1587, 1.0
          %v1589 = vmax.f32 %v1588, -1.0
          %v1590 = vmul.f32 %v856, %v856
          %v1591 = vmin.f32 16.0, %v1590
          %v1592 = vmul.f32 %v1591, 2.1237322e-06
          %v1593 = vadd.f32 %v1592, 0.00028619796
          %v1594 = vmul.f32 %v1591, %v1593
          %v1595 = vadd.f32 %v1594, 0.0036580483
          %v1596 = vmul.f32 %v1591, %v1595
          %v1597 = vadd.f32 %v1596, 0.05243302
          %v1598 = vmul.f32 %v1591, %v1597
          %v1599 = vadd.f32 %v1598, 0.18741608
          %v1600 = vmul.f32 %v1591, %v1599
          %v1601 = vadd.f32 %v1600, 1.1283791
          %v1602 = vmul.f32 %v856, %v1601
          %v1603 = vmul.f32 %v1591, 3.8918573e-05
          %v1604 = vadd.f32 %v1603, 0.001143296
          %v1605 = vmul.f32 %v1591, %v1604
          %v1606 = vadd.f32 %v1605, 0.014752088
          %v1607 = vmul.f32 %v1591, %v1606
          %v1608 = vadd.f32 %v1607, 0.112945676
          %v1609 = vmul.f32 %v1591, %v1608
          %v1610 = vadd.f32 %v1609, 0.4994258
          %v1611 = vmul.f32 %v1591, %v1610
          %v1612 = vadd.f32 %v1611, 1.0
          %v1613 = vrcp.pop %v1612
          %v1614 = vmul.f32 %v1612, %v1613
          %v1615 = vsub.f32 1.0, %v1614
          %v1616 = vmul.f32 %v1613, %v1615
          %v1617 = vadd.f32 %v1613, %v1616
          %vm1618 = vweird.f32 %v1612
          %vm1619 = vweird.f32 %v1613
          %vm1620 = vmor %vm1618, %vm1619
          %v1621 = vsel %vm1620, %v1613, %v1617
          %v1622 = vand.u32 2147483647, %v1612
          %vm1623 = vcmp.eq.f32.partialorder %v1622, 8.507059e+37
          %v1624 = vand.u32 %v1612, 2147483648
          %v1625 = vor.u32 1.1754944e-38, %v1624
          %v1626 = vsel %vm1623, %v1625, %v1621
          %v1627 = vmul.f32 %v1602, %v1626
          %v1628 = vmin.f32 %v1627, 1.0
          %v1629 = vmax.f32 %v1628, -1.0
          %v1630 = vmul.f32 %v857, %v857
          %v1631 = vmin.f32 16.0, %v1630
          %v1632 = vmul.f32 %v1631, 2.1237322e-06
          %v1633 = vadd.f32 %v1632, 0.00028619796
          %v1634 = vmul.f32 %v1631, %v1633
          %v1635 = vadd.f32 %v1634, 0.0036580483
          %v1636 = vmul.f32 %v1631, %v1635
          %v1637 = vadd.f32 %v1636, 0.05243302
          %v1638 = vmul.f32 %v1631, %v1637
          %v1639 = vadd.f32 %v1638, 0.18741608
          %v1640 = vmul.f32 %v1631, %v1639
          %v1641 = vadd.f32 %v1640, 1.1283791
          %v1642 = vmul.f32 %v857, %v1641
          %v1643 = vmul.f32 %v1631, 3.8918573e-05
          %v1644 = vadd.f32 %v1643, 0.001143296
          %v1645 = vmul.f32 %v1631, %v1644
          %v1646 = vadd.f32 %v1645, 0.014752088
          %v1647 = vmul.f32 %v1631, %v1646
          %v1648 = vadd.f32 %v1647, 0.112945676
          %v1649 = vmul.f32 %v1631, %v1648
          %v1650 = vadd.f32 %v1649, 0.4994258
          %v1651 = vmul.f32 %v1631, %v1650
          %v1652 = vadd.f32 %v1651, 1.0
          %v1653 = vrcp.pop %v1652
          %v1654 = vmul.f32 %v1652, %v1653
          %v1655 = vsub.f32 1.0, %v1654
          %v1656 = vmul.f32 %v1653, %v1655
          %v1657 = vadd.f32 %v1653, %v1656
          %vm1658 = vweird.f32 %v1652
          %vm1659 = vweird.f32 %v1653
          %vm1660 = vmor %vm1658, %vm1659
          %v1661 = vsel %vm1660, %v1653, %v1657
          %v1662 = vand.u32 2147483647, %v1652
          %vm1663 = vcmp.eq.f32.partialorder %v1662, 8.507059e+37
          %v1664 = vand.u32 %v1652, 2147483648
          %v1665 = vor.u32 1.1754944e-38, %v1664
          %v1666 = vsel %vm1663, %v1665, %v1661
          %v1667 = vmul.f32 %v1642, %v1666
          %v1668 = vmin.f32 %v1667, 1.0
          %v1669 = vmax.f32 %v1668, -1.0
          %v1670 = vmul.f32 %v858, %v858
          %v1671 = vmin.f32 16.0, %v1670
          %v1672 = vmul.f32 %v1671, 2.1237322e-06
          %v1673 = vadd.f32 %v1672, 0.00028619796
          %v1674 = vmul.f32 %v1671, %v1673
          %v1675 = vadd.f32 %v1674, 0.0036580483
          %v1676 = vmul.f32 %v1671, %v1675
          %v1677 = vadd.f32 %v1676, 0.05243302
          %v1678 = vmul.f32 %v1671, %v1677
          %v1679 = vadd.f32 %v1678, 0.18741608
          %v1680 = vmul.f32 %v1671, %v1679
          %v1681 = vadd.f32 %v1680, 1.1283791
          %v1682 = vmul.f32 %v858, %v1681
          %v1683 = vmul.f32 %v1671, 3.8918573e-05
          %v1684 = vadd.f32 %v1683, 0.001143296
          %v1685 = vmul.f32 %v1671, %v1684
          %v1686 = vadd.f32 %v1685, 0.014752088
          %v1687 = vmul.f32 %v1671, %v1686
          %v1688 = vadd.f32 %v1687, 0.112945676
          %v1689 = vmul.f32 %v1671, %v1688
          %v1690 = vadd.f32 %v1689, 0.4994258
          %v1691 = vmul.f32 %v1671, %v1690
          %v1692 = vadd.f32 %v1691, 1.0
          %v1693 = vrcp.pop %v1692
          %v1694 = vmul.f32 %v1692, %v1693
          %v1695 = vsub.f32 1.0, %v1694
          %v1696 = vmul.f32 %v1693, %v1695
          %v1697 = vadd.f32 %v1693, %v1696
          %vm1698 = vweird.f32 %v1692
          %vm1699 = vweird.f32 %v1693
          %vm1700 = vmor %vm1698, %vm1699
          %v1701 = vsel %vm1700, %v1693, %v1697
          %v1702 = vand.u32 2147483647, %v1692
          %vm1703 = vcmp.eq.f32.partialorder %v1702, 8.507059e+37
          %v1704 = vand.u32 %v1692, 2147483648
          %v1705 = vor.u32 1.1754944e-38, %v1704
          %v1706 = vsel %vm1703, %v1705, %v1701
          %v1707 = vmul.f32 %v1682, %v1706
          %v1708 = vmin.f32 %v1707, 1.0
          %v1709 = vmax.f32 %v1708, -1.0
          %v1710 = vmul.f32 %v859, %v859
          %v1711 = vmin.f32 16.0, %v1710
          %v1712 = vmul.f32 %v1711, 2.1237322e-06
          %v1713 = vadd.f32 %v1712, 0.00028619796
          %v1714 = vmul.f32 %v1711, %v1713
          %v1715 = vadd.f32 %v1714, 0.0036580483
          %v1716 = vmul.f32 %v1711, %v1715
          %v1717 = vadd.f32 %v1716, 0.05243302
          %v1718 = vmul.f32 %v1711, %v1717
          %v1719 = vadd.f32 %v1718, 0.18741608
          %v1720 = vmul.f32 %v1711, %v1719
          %v1721 = vadd.f32 %v1720, 1.1283791
          %v1722 = vmul.f32 %v859, %v1721
          %v1723 = vmul.f32 %v1711, 3.8918573e-05
          %v1724 = vadd.f32 %v1723, 0.001143296
          %v1725 = vmul.f32 %v1711, %v1724
          %v1726 = vadd.f32 %v1725, 0.014752088
          %v1727 = vmul.f32 %v1711, %v1726
          %v1728 = vadd.f32 %v1727, 0.112945676
          %v1729 = vmul.f32 %v1711, %v1728
          %v1730 = vadd.f32 %v1729, 0.4994258
          %v1731 = vmul.f32 %v1711, %v1730
          %v1732 = vadd.f32 %v1731, 1.0
          %v1733 = vrcp.pop %v1732
          %v1734 = vmul.f32 %v1732, %v1733
          %v1735 = vsub.f32 1.0, %v1734
          %v1736 = vmul.f32 %v1733, %v1735
          %v1737 = vadd.f32 %v1733, %v1736
          %vm1738 = vweird.f32 %v1732
          %vm1739 = vweird.f32 %v1733
          %vm1740 = vmor %vm1738, %vm1739
          %v1741 = vsel %vm1740, %v1733, %v1737
          %v1742 = vand.u32 2147483647, %v1732
          %vm1743 = vcmp.eq.f32.partialorder %v1742, 8.507059e+37
          %v1744 = vand.u32 %v1732, 2147483648
          %v1745 = vor.u32 1.1754944e-38, %v1744
          %v1746 = vsel %vm1743, %v1745, %v1741
          %v1747 = vmul.f32 %v1722, %v1746
          %v1748 = vmin.f32 %v1747, 1.0
          %v1749 = vmax.f32 %v1748, -1.0
          %v1750 = vmul.f32 %v860, %v860
          %v1751 = vmin.f32 16.0, %v1750
          %v1752 = vmul.f32 %v1751, 2.1237322e-06
          %v1753 = vadd.f32 %v1752, 0.00028619796
          %v1754 = vmul.f32 %v1751, %v1753
          %v1755 = vadd.f32 %v1754, 0.0036580483
          %v1756 = vmul.f32 %v1751, %v1755
          %v1757 = vadd.f32 %v1756, 0.05243302
          %v1758 = vmul.f32 %v1751, %v1757
          %v1759 = vadd.f32 %v1758, 0.18741608
          %v1760 = vmul.f32 %v1751, %v1759
          %v1761 = vadd.f32 %v1760, 1.1283791
          %v1762 = vmul.f32 %v860, %v1761
          %v1763 = vmul.f32 %v1751, 3.8918573e-05
          %v1764 = vadd.f32 %v1763, 0.001143296
          %v1765 = vmul.f32 %v1751, %v1764
          %v1766 = vadd.f32 %v1765, 0.014752088
          %v1767 = vmul.f32 %v1751, %v1766
          %v1768 = vadd.f32 %v1767, 0.112945676
          %v1769 = vmul.f32 %v1751, %v1768
          %v1770 = vadd.f32 %v1769, 0.4994258
          %v1771 = vmul.f32 %v1751, %v1770
          %v1772 = vadd.f32 %v1771, 1.0
          %v1773 = vrcp.pop %v1772
          %v1774 = vmul.f32 %v1772, %v1773
          %v1775 = vsub.f32 1.0, %v1774
          %v1776 = vmul.f32 %v1773, %v1775
          %v1777 = vadd.f32 %v1773, %v1776
          %vm1778 = vweird.f32 %v1772
          %vm1779 = vweird.f32 %v1773
          %vm1780 = vmor %vm1778, %vm1779
          %v1781 = vsel %vm1780, %v1773, %v1777
          %v1782 = vand.u32 2147483647, %v1772
          %vm1783 = vcmp.eq.f32.partialorder %v1782, 8.507059e+37
          %v1784 = vand.u32 %v1772, 2147483648
          %v1785 = vor.u32 1.1754944e-38, %v1784
          %v1786 = vsel %vm1783, %v1785, %v1781
          %v1787 = vmul.f32 %v1762, %v1786
          %v1788 = vmin.f32 %v1787, 1.0
          %v1789 = vmax.f32 %v1788, -1.0
          %v1790 = vmul.f32 %v861, %v861
          %v1791 = vmin.f32 16.0, %v1790
          %v1792 = vmul.f32 %v1791, 2.1237322e-06
          %v1793 = vadd.f32 %v1792, 0.00028619796
          %v1794 = vmul.f32 %v1791, %v1793
          %v1795 = vadd.f32 %v1794, 0.0036580483
          %v1796 = vmul.f32 %v1791, %v1795
          %v1797 = vadd.f32 %v1796, 0.05243302
          %v1798 = vmul.f32 %v1791, %v1797
          %v1799 = vadd.f32 %v1798, 0.18741608
          %v1800 = vmul.f32 %v1791, %v1799
          %v1801 = vadd.f32 %v1800, 1.1283791
          %v1802 = vmul.f32 %v861, %v1801
          %v1803 = vmul.f32 %v1791, 3.8918573e-05
          %v1804 = vadd.f32 %v1803, 0.001143296
          %v1805 = vmul.f32 %v1791, %v1804
          %v1806 = vadd.f32 %v1805, 0.014752088
          %v1807 = vmul.f32 %v1791, %v1806
          %v1808 = vadd.f32 %v1807, 0.112945676
          %v1809 = vmul.f32 %v1791, %v1808
          %v1810 = vadd.f32 %v1809, 0.4994258
          %v1811 = vmul.f32 %v1791, %v1810
          %v1812 = vadd.f32 %v1811, 1.0
          %v1813 = vrcp.pop %v1812
          %v1814 = vmul.f32 %v1812, %v1813
          %v1815 = vsub.f32 1.0, %v1814
          %v1816 = vmul.f32 %v1813, %v1815
          %v1817 = vadd.f32 %v1813, %v1816
          %vm1818 = vweird.f32 %v1812
          %vm1819 = vweird.f32 %v1813
          %vm1820 = vmor %vm1818, %vm1819
          %v1821 = vsel %vm1820, %v1813, %v1817
          %v1822 = vand.u32 2147483647, %v1812
          %vm1823 = vcmp.eq.f32.partialorder %v1822, 8.507059e+37
          %v1824 = vand.u32 %v1812, 2147483648
          %v1825 = vor.u32 1.1754944e-38, %v1824
          %v1826 = vsel %vm1823, %v1825, %v1821
          %v1827 = vmul.f32 %v1802, %v1826
          %v1828 = vmin.f32 %v1827, 1.0
          %v1829 = vmax.f32 %v1828, -1.0
          %v1830 = vmul.f32 %v862, %v862
          %v1831 = vmin.f32 16.0, %v1830
          %v1832 = vmul.f32 %v1831, 2.1237322e-06
          %v1833 = vadd.f32 %v1832, 0.00028619796
          %v1834 = vmul.f32 %v1831, %v1833
          %v1835 = vadd.f32 %v1834, 0.0036580483
          %v1836 = vmul.f32 %v1831, %v1835
          %v1837 = vadd.f32 %v1836, 0.05243302
          %v1838 = vmul.f32 %v1831, %v1837
          %v1839 = vadd.f32 %v1838, 0.18741608
          %v1840 = vmul.f32 %v1831, %v1839
          %v1841 = vadd.f32 %v1840, 1.1283791
          %v1842 = vmul.f32 %v862, %v1841
          %v1843 = vmul.f32 %v1831, 3.8918573e-05
          %v1844 = vadd.f32 %v1843, 0.001143296
          %v1845 = vmul.f32 %v1831, %v1844
          %v1846 = vadd.f32 %v1845, 0.014752088
          %v1847 = vmul.f32 %v1831, %v1846
          %v1848 = vadd.f32 %v1847, 0.112945676
          %v1849 = vmul.f32 %v1831, %v1848
          %v1850 = vadd.f32 %v1849, 0.4994258
          %v1851 = vmul.f32 %v1831, %v1850
          %v1852 = vadd.f32 %v1851, 1.0
          %v1853 = vrcp.pop %v1852
          %v1854 = vmul.f32 %v1852, %v1853
          %v1855 = vsub.f32 1.0, %v1854
          %v1856 = vmul.f32 %v1853, %v1855
          %v1857 = vadd.f32 %v1853, %v1856
          %vm1858 = vweird.f32 %v1852
          %vm1859 = vweird.f32 %v1853
          %vm1860 = vmor %vm1858, %vm1859
          %v1861 = vsel %vm1860, %v1853, %v1857
          %v1862 = vand.u32 2147483647, %v1852
          %vm1863 = vcmp.eq.f32.partialorder %v1862, 8.507059e+37
          %v1864 = vand.u32 %v1852, 2147483648
          %v1865 = vor.u32 1.1754944e-38, %v1864
          %v1866 = vsel %vm1863, %v1865, %v1861
          %v1867 = vmul.f32 %v1842, %v1866
          %v1868 = vmin.f32 %v1867, 1.0
          %v1869 = vmax.f32 %v1868, -1.0
          %v1870 = vmul.f32 %v863, %v863
          %v1871 = vmin.f32 16.0, %v1870
          %v1872 = vmul.f32 %v1871, 2.1237322e-06
          %v1873 = vadd.f32 %v1872, 0.00028619796
          %v1874 = vmul.f32 %v1871, %v1873
          %v1875 = vadd.f32 %v1874, 0.0036580483
          %v1876 = vmul.f32 %v1871, %v1875
          %v1877 = vadd.f32 %v1876, 0.05243302
          %v1878 = vmul.f32 %v1871, %v1877
          %v1879 = vadd.f32 %v1878, 0.18741608
          %v1880 = vmul.f32 %v1871, %v1879
          %v1881 = vadd.f32 %v1880, 1.1283791
          %v1882 = vmul.f32 %v863, %v1881
          %v1883 = vmul.f32 %v1871, 3.8918573e-05
          %v1884 = vadd.f32 %v1883, 0.001143296
          %v1885 = vmul.f32 %v1871, %v1884
          %v1886 = vadd.f32 %v1885, 0.014752088
          %v1887 = vmul.f32 %v1871, %v1886
          %v1888 = vadd.f32 %v1887, 0.112945676
          %v1889 = vmul.f32 %v1871, %v1888
          %v1890 = vadd.f32 %v1889, 0.4994258
          %v1891 = vmul.f32 %v1871, %v1890
          %v1892 = vadd.f32 %v1891, 1.0
          %v1893 = vrcp.pop %v1892
          %v1894 = vmul.f32 %v1892, %v1893
          %v1895 = vsub.f32 1.0, %v1894
          %v1896 = vmul.f32 %v1893, %v1895
          %v1897 = vadd.f32 %v1893, %v1896
          %vm1898 = vweird.f32 %v1892
          %vm1899 = vweird.f32 %v1893
          %vm1900 = vmor %vm1898, %vm1899
          %v1901 = vsel %vm1900, %v1893, %v1897
          %v1902 = vand.u32 2147483647, %v1892
          %vm1903 = vcmp.eq.f32.partialorder %v1902, 8.507059e+37
          %v1904 = vand.u32 %v1892, 2147483648
          %v1905 = vor.u32 1.1754944e-38, %v1904
          %v1906 = vsel %vm1903, %v1905, %v1901
          %v1907 = vmul.f32 %v1882, %v1906
          %v1908 = vmin.f32 %v1907, 1.0
          %v1909 = vmax.f32 %v1908, -1.0
          %v1910 = vmul.f32 %v864, %v864
          %v1911 = vmin.f32 16.0, %v1910
          %v1912 = vmul.f32 %v1911, 2.1237322e-06
          %v1913 = vadd.f32 %v1912, 0.00028619796
          %v1914 = vmul.f32 %v1911, %v1913
          %v1915 = vadd.f32 %v1914, 0.0036580483
          %v1916 = vmul.f32 %v1911, %v1915
          %v1917 = vadd.f32 %v1916, 0.05243302
          %v1918 = vmul.f32 %v1911, %v1917
          %v1919 = vadd.f32 %v1918, 0.18741608
          %v1920 = vmul.f32 %v1911, %v1919
          %v1921 = vadd.f32 %v1920, 1.1283791
          %v1922 = vmul.f32 %v864, %v1921
          %v1923 = vmul.f32 %v1911, 3.8918573e-05
          %v1924 = vadd.f32 %v1923, 0.001143296
          %v1925 = vmul.f32 %v1911, %v1924
          %v1926 = vadd.f32 %v1925, 0.014752088
          %v1927 = vmul.f32 %v1911, %v1926
          %v1928 = vadd.f32 %v1927, 0.112945676
          %v1929 = vmul.f32 %v1911, %v1928
          %v1930 = vadd.f32 %v1929, 0.4994258
          %v1931 = vmul.f32 %v1911, %v1930
          %v1932 = vadd.f32 %v1931, 1.0
          %v1933 = vrcp.pop %v1932
          %v1934 = vmul.f32 %v1932, %v1933
          %v1935 = vsub.f32 1.0, %v1934
          %v1936 = vmul.f32 %v1933, %v1935
          %v1937 = vadd.f32 %v1933, %v1936
          %vm1938 = vweird.f32 %v1932
          %vm1939 = vweird.f32 %v1933
          %vm1940 = vmor %vm1938, %vm1939
          %v1941 = vsel %vm1940, %v1933, %v1937
          %v1942 = vand.u32 2147483647, %v1932
          %vm1943 = vcmp.eq.f32.partialorder %v1942, 8.507059e+37
          %v1944 = vand.u32 %v1932, 2147483648
          %v1945 = vor.u32 1.1754944e-38, %v1944
          %v1946 = vsel %vm1943, %v1945, %v1941
          %v1947 = vmul.f32 %v1922, %v1946
          %v1948 = vmin.f32 %v1947, 1.0
          %v1949 = vmax.f32 %v1948, -1.0
          %v1950 = vmul.f32 %v865, %v865
          %v1951 = vmin.f32 16.0, %v1950
          %v1952 = vmul.f32 %v1951, 2.1237322e-06
          %v1953 = vadd.f32 %v1952, 0.00028619796
          %v1954 = vmul.f32 %v1951, %v1953
          %v1955 = vadd.f32 %v1954, 0.0036580483
          %v1956 = vmul.f32 %v1951, %v1955
          %v1957 = vadd.f32 %v1956, 0.05243302
          %v1958 = vmul.f32 %v1951, %v1957
          %v1959 = vadd.f32 %v1958, 0.18741608
          %v1960 = vmul.f32 %v1951, %v1959
          %v1961 = vadd.f32 %v1960, 1.1283791
          %v1962 = vmul.f32 %v865, %v1961
          %v1963 = vmul.f32 %v1951, 3.8918573e-05
          %v1964 = vadd.f32 %v1963, 0.001143296
          %v1965 = vmul.f32 %v1951, %v1964
          %v1966 = vadd.f32 %v1965, 0.014752088
          %v1967 = vmul.f32 %v1951, %v1966
          %v1968 = vadd.f32 %v1967, 0.112945676
          %v1969 = vmul.f32 %v1951, %v1968
          %v1970 = vadd.f32 %v1969, 0.4994258
          %v1971 = vmul.f32 %v1951, %v1970
          %v1972 = vadd.f32 %v1971, 1.0
          %v1973 = vrcp.pop %v1972
          %v1974 = vmul.f32 %v1972, %v1973
          %v1975 = vsub.f32 1.0, %v1974
          %v1976 = vmul.f32 %v1973, %v1975
          %v1977 = vadd.f32 %v1973, %v1976
          %vm1978 = vweird.f32 %v1972
          %vm1979 = vweird.f32 %v1973
          %vm1980 = vmor %vm1978, %vm1979
          %v1981 = vsel %vm1980, %v1973, %v1977
          %v1982 = vand.u32 2147483647, %v1972
          %vm1983 = vcmp.eq.f32.partialorder %v1982, 8.507059e+37
          %v1984 = vand.u32 %v1972, 2147483648
          %v1985 = vor.u32 1.1754944e-38, %v1984
          %v1986 = vsel %vm1983, %v1985, %v1981
          %v1987 = vmul.f32 %v1962, %v1986
          %v1988 = vmin.f32 %v1987, 1.0
          %v1989 = vmax.f32 %v1988, -1.0
          %v1990 = vmul.f32 %v866, %v866
          %v1991 = vmin.f32 16.0, %v1990
          %v1992 = vmul.f32 %v1991, 2.1237322e-06
          %v1993 = vadd.f32 %v1992, 0.00028619796
          %v1994 = vmul.f32 %v1991, %v1993
          %v1995 = vadd.f32 %v1994, 0.0036580483
          %v1996 = vmul.f32 %v1991, %v1995
          %v1997 = vadd.f32 %v1996, 0.05243302
          %v1998 = vmul.f32 %v1991, %v1997
          %v1999 = vadd.f32 %v1998, 0.18741608
          %v2000 = vmul.f32 %v1991, %v1999
          %v2001 = vadd.f32 %v2000, 1.1283791
          %v2002 = vmul.f32 %v866, %v2001
          %v2003 = vmul.f32 %v1991, 3.8918573e-05
          %v2004 = vadd.f32 %v2003, 0.001143296
          %v2005 = vmul.f32 %v1991, %v2004
          %v2006 = vadd.f32 %v2005, 0.014752088
          %v2007 = vmul.f32 %v1991, %v2006
          %v2008 = vadd.f32 %v2007, 0.112945676
          %v2009 = vmul.f32 %v1991, %v2008
          %v2010 = vadd.f32 %v2009, 0.4994258
          %v2011 = vmul.f32 %v1991, %v2010
          %v2012 = vadd.f32 %v2011, 1.0
          %v2013 = vrcp.pop %v2012
          %v2014 = vmul.f32 %v2012, %v2013
          %v2015 = vsub.f32 1.0, %v2014
          %v2016 = vmul.f32 %v2013, %v2015
          %v2017 = vadd.f32 %v2013, %v2016
          %vm2018 = vweird.f32 %v2012
          %vm2019 = vweird.f32 %v2013
          %vm2020 = vmor %vm2018, %vm2019
          %v2021 = vsel %vm2020, %v2013, %v2017
          %v2022 = vand.u32 2147483647, %v2012
          %vm2023 = vcmp.eq.f32.partialorder %v2022, 8.507059e+37
          %v2024 = vand.u32 %v2012, 2147483648
          %v2025 = vor.u32 1.1754944e-38, %v2024
          %v2026 = vsel %vm2023, %v2025, %v2021
          %v2027 = vmul.f32 %v2002, %v2026
          %v2028 = vmin.f32 %v2027, 1.0
          %v2029 = vmax.f32 %v2028, -1.0
          %v2030 = vmul.f32 %v867, %v867
          %v2031 = vmin.f32 16.0, %v2030
          %v2032 = vmul.f32 %v2031, 2.1237322e-06
          %v2033 = vadd.f32 %v2032, 0.00028619796
          %v2034 = vmul.f32 %v2031, %v2033
          %v2035 = vadd.f32 %v2034, 0.0036580483
          %v2036 = vmul.f32 %v2031, %v2035
          %v2037 = vadd.f32 %v2036, 0.05243302
          %v2038 = vmul.f32 %v2031, %v2037
          %v2039 = vadd.f32 %v2038, 0.18741608
          %v2040 = vmul.f32 %v2031, %v2039
          %v2041 = vadd.f32 %v2040, 1.1283791
          %v2042 = vmul.f32 %v867, %v2041
          %v2043 = vmul.f32 %v2031, 3.8918573e-05
          %v2044 = vadd.f32 %v2043, 0.001143296
          %v2045 = vmul.f32 %v2031, %v2044
          %v2046 = vadd.f32 %v2045, 0.014752088
          %v2047 = vmul.f32 %v2031, %v2046
          %v2048 = vadd.f32 %v2047, 0.112945676
          %v2049 = vmul.f32 %v2031, %v2048
          %v2050 = vadd.f32 %v2049, 0.4994258
          %v2051 = vmul.f32 %v2031, %v2050
          %v2052 = vadd.f32 %v2051, 1.0
          %v2053 = vrcp.pop %v2052
          %v2054 = vmul.f32 %v2052, %v2053
          %v2055 = vsub.f32 1.0, %v2054
          %v2056 = vmul.f32 %v2053, %v2055
          %v2057 = vadd.f32 %v2053, %v2056
          %vm2058 = vweird.f32 %v2052
          %vm2059 = vweird.f32 %v2053
          %vm2060 = vmor %vm2058, %vm2059
          %v2061 = vsel %vm2060, %v2053, %v2057
          %v2062 = vand.u32 2147483647, %v2052
          %vm2063 = vcmp.eq.f32.partialorder %v2062, 8.507059e+37
          %v2064 = vand.u32 %v2052, 2147483648
          %v2065 = vor.u32 1.1754944e-38, %v2064
          %v2066 = vsel %vm2063, %v2065, %v2061
          %v2067 = vmul.f32 %v2042, %v2066
          %v2068 = vmin.f32 %v2067, 1.0
          %v2069 = vmax.f32 %v2068, -1.0
          %v2070 = vmul.f32 %v868, %v868
          %v2071 = vmin.f32 16.0, %v2070
          %v2072 = vmul.f32 %v2071, 2.1237322e-06
          %v2073 = vadd.f32 %v2072, 0.00028619796
          %v2074 = vmul.f32 %v2071, %v2073
          %v2075 = vadd.f32 %v2074, 0.0036580483
          %v2076 = vmul.f32 %v2071, %v2075
          %v2077 = vadd.f32 %v2076, 0.05243302
          %v2078 = vmul.f32 %v2071, %v2077
          %v2079 = vadd.f32 %v2078, 0.18741608
          %v2080 = vmul.f32 %v2071, %v2079
          %v2081 = vadd.f32 %v2080, 1.1283791
          %v2082 = vmul.f32 %v868, %v2081
          %v2083 = vmul.f32 %v2071, 3.8918573e-05
          %v2084 = vadd.f32 %v2083, 0.001143296
          %v2085 = vmul.f32 %v2071, %v2084
          %v2086 = vadd.f32 %v2085, 0.014752088
          %v2087 = vmul.f32 %v2071, %v2086
          %v2088 = vadd.f32 %v2087, 0.112945676
          %v2089 = vmul.f32 %v2071, %v2088
          %v2090 = vadd.f32 %v2089, 0.4994258
          %v2091 = vmul.f32 %v2071, %v2090
          %v2092 = vadd.f32 %v2091, 1.0
          %v2093 = vrcp.pop %v2092
          %v2094 = vmul.f32 %v2092, %v2093
          %v2095 = vsub.f32 1.0, %v2094
          %v2096 = vmul.f32 %v2093, %v2095
          %v2097 = vadd.f32 %v2093, %v2096
          %vm2098 = vweird.f32 %v2092
          %vm2099 = vweird.f32 %v2093
          %vm2100 = vmor %vm2098, %vm2099
          %v2101 = vsel %vm2100, %v2093, %v2097
          %v2102 = vand.u32 2147483647, %v2092
          %vm2103 = vcmp.eq.f32.partialorder %v2102, 8.507059e+37
          %v2104 = vand.u32 %v2092, 2147483648
          %v2105 = vor.u32 1.1754944e-38, %v2104
          %v2106 = vsel %vm2103, %v2105, %v2101
          %v2107 = vmul.f32 %v2082, %v2106
          %v2108 = vmin.f32 %v2107, 1.0
          %v2109 = vmax.f32 %v2108, -1.0
          %v2110 = vmul.f32 %v869, %v869
          %v2111 = vmin.f32 16.0, %v2110
          %v2112 = vmul.f32 %v2111, 2.1237322e-06
          %v2113 = vadd.f32 %v2112, 0.00028619796
          %v2114 = vmul.f32 %v2111, %v2113
          %v2115 = vadd.f32 %v2114, 0.0036580483
          %v2116 = vmul.f32 %v2111, %v2115
          %v2117 = vadd.f32 %v2116, 0.05243302
          %v2118 = vmul.f32 %v2111, %v2117
          %v2119 = vadd.f32 %v2118, 0.18741608
          %v2120 = vmul.f32 %v2111, %v2119
          %v2121 = vadd.f32 %v2120, 1.1283791
          %v2122 = vmul.f32 %v869, %v2121
          %v2123 = vmul.f32 %v2111, 3.8918573e-05
          %v2124 = vadd.f32 %v2123, 0.001143296
          %v2125 = vmul.f32 %v2111, %v2124
          %v2126 = vadd.f32 %v2125, 0.014752088
          %v2127 = vmul.f32 %v2111, %v2126
          %v2128 = vadd.f32 %v2127, 0.112945676
          %v2129 = vmul.f32 %v2111, %v2128
          %v2130 = vadd.f32 %v2129, 0.4994258
          %v2131 = vmul.f32 %v2111, %v2130
          %v2132 = vadd.f32 %v2131, 1.0
          %v2133 = vrcp.pop %v2132
          %v2134 = vmul.f32 %v2132, %v2133
          %v2135 = vsub.f32 1.0, %v2134
          %v2136 = vmul.f32 %v2133, %v2135
          %v2137 = vadd.f32 %v2133, %v2136
          %vm2138 = vweird.f32 %v2132
          %vm2139 = vweird.f32 %v2133
          %vm2140 = vmor %vm2138, %vm2139
          %v2141 = vsel %vm2140, %v2133, %v2137
          %v2142 = vand.u32 2147483647, %v2132
          %vm2143 = vcmp.eq.f32.partialorder %v2142, 8.507059e+37
          %v2144 = vand.u32 %v2132, 2147483648
          %v2145 = vor.u32 1.1754944e-38, %v2144
          %v2146 = vsel %vm2143, %v2145, %v2141
          %v2147 = vmul.f32 %v2122, %v2146
          %v2148 = vmin.f32 %v2147, 1.0
          %v2149 = vmax.f32 %v2148, -1.0
          %v2150 = vadd.f32 %v909, 1.0
          %v2151 = vadd.f32 %v949, 1.0
          %v2152 = vadd.f32 %v989, 1.0
          %v2153 = vadd.f32 %v1029, 1.0
          %v2154 = vadd.f32 %v1069, 1.0
          %v2155 = vadd.f32 %v1109, 1.0
          %v2156 = vadd.f32 %v1149, 1.0
          %v2157 = vadd.f32 %v1189, 1.0
          %v2158 = vadd.f32 %v1229, 1.0
          %v2159 = vadd.f32 %v1269, 1.0
          %v2160 = vadd.f32 %v1309, 1.0
          %v2161 = vadd.f32 %v1349, 1.0
          %v2162 = vadd.f32 %v1389, 1.0
          %v2163 = vadd.f32 %v1429, 1.0
          %v2164 = vadd.f32 %v1469, 1.0
          %v2165 = vadd.f32 %v1509, 1.0
          %v2166 = vadd.f32 %v1549, 1.0
          %v2167 = vadd.f32 %v1589, 1.0
          %v2168 = vadd.f32 %v1629, 1.0
          %v2169 = vadd.f32 %v1669, 1.0
          %v2170 = vadd.f32 %v1709, 1.0
          %v2171 = vadd.f32 %v1749, 1.0
          %v2172 = vadd.f32 %v1789, 1.0
          %v2173 = vadd.f32 %v1829, 1.0
          %v2174 = vadd.f32 %v1869, 1.0
          %v2175 = vadd.f32 %v1909, 1.0
          %v2176 = vadd.f32 %v1949, 1.0
          %v2177 = vadd.f32 %v1989, 1.0
          %v2178 = vadd.f32 %v2029, 1.0
          %v2179 = vadd.f32 %v2069, 1.0
          %v2180 = vadd.f32 %v2109, 1.0
          %v2181 = vadd.f32 %v2149, 1.0
          %v2182 = vmul.f32 %v806, %v2150
          %v2183 = vmul.f32 %v807, %v2151
          %v2184 = vmul.f32 %v808, %v2152
          %v2185 = vmul.f32 %v809, %v2153
          %v2186 = vmul.f32 %v810, %v2154
          %v2187 = vmul.f32 %v811, %v2155
          %v2188 = vmul.f32 %v812, %v2156
          %v2189 = vmul.f32 %v813, %v2157
          %v2190 = vmul.f32 %v814, %v2158
          %v2191 = vmul.f32 %v815, %v2159
          %v2192 = vmul.f32 %v816, %v2160
          %v2193 = vmul.f32 %v817, %v2161
          %v2194 = vmul.f32 %v818, %v2162
          %v2195 = vmul.f32 %v819, %v2163
          %v2196 = vmul.f32 %v820, %v2164
          %v2197 = vmul.f32 %v821, %v2165
          %v2198 = vmul.f32 %v822, %v2166
          %v2199 = vmul.f32 %v823, %v2167
          %v2200 = vmul.f32 %v824, %v2168
          %v2201 = vmul.f32 %v825, %v2169
          %v2202 = vmul.f32 %v826, %v2170
          %v2203 = vmul.f32 %v827, %v2171
          %v2204 = vmul.f32 %v828, %v2172
          %v2205 = vmul.f32 %v829, %v2173
          %v2206 = vmul.f32 %v830, %v2174
          %v2207 = vmul.f32 %v831, %v2175
          %v2208 = vmul.f32 %v832, %v2176
          %v2209 = vmul.f32 %v833, %v2177
          %v2210 = vmul.f32 %v834, %v2178
          %v2211 = vmul.f32 %v835, %v2179
          %v2212 = vmul.f32 %v836, %v2180
          %v2213 = vmul.f32 %v837, %v2181
          %v2214 = vadd.f32 %v2182, %v2183
          %2215 = vadd.xlane.f32.xlu0 %v2214
          %v2216 = vpop.xlane.xlu0 %2215
          %v2217 = vadd.f32 %v2184, %v2185
          %2218 = vadd.xlane.f32.xlu0 %v2217
          %v2219 = vpop.xlane.xlu0 %2218
          %v2220 = vadd.f32 %v2186, %v2187
          %2221 = vadd.xlane.f32.xlu0 %v2220
          %v2222 = vpop.xlane.xlu0 %2221
          %v2223 = vadd.f32 %v2188, %v2189
          %2224 = vadd.xlane.f32.xlu0 %v2223
          %v2225 = vpop.xlane.xlu0 %2224
          %v2226 = vadd.f32 %v2190, %v2191
          %2227 = vadd.xlane.f32.xlu0 %v2226
          %v2228 = vpop.xlane.xlu0 %2227
          %v2229 = vadd.f32 %v2192, %v2193
          %2230 = vadd.xlane.f32.xlu0 %v2229
          %v2231 = vpop.xlane.xlu0 %2230
          %v2232 = vadd.f32 %v2194, %v2195
          %2233 = vadd.xlane.f32.xlu0 %v2232
          %v2234 = vpop.xlane.xlu0 %2233
          %v2235 = vadd.f32 %v2196, %v2197
          %2236 = vadd.xlane.f32.xlu0 %v2235
          %v2237 = vpop.xlane.xlu0 %2236
          %v2238 = vadd.f32 %v2198, %v2199
          %2239 = vadd.xlane.f32.xlu0 %v2238
          %v2240 = vpop.xlane.xlu0 %2239
          %v2241 = vadd.f32 %v2200, %v2201
          %2242 = vadd.xlane.f32.xlu0 %v2241
          %v2243 = vpop.xlane.xlu0 %2242
          %v2244 = vadd.f32 %v2202, %v2203
          %2245 = vadd.xlane.f32.xlu0 %v2244
          %v2246 = vpop.xlane.xlu0 %2245
          %v2247 = vadd.f32 %v2204, %v2205
          %2248 = vadd.xlane.f32.xlu0 %v2247
          %v2249 = vpop.xlane.xlu0 %2248
          %v2250 = vadd.f32 %v2206, %v2207
          %2251 = vadd.xlane.f32.xlu0 %v2250
          %v2252 = vpop.xlane.xlu0 %2251
          %v2253 = vadd.f32 %v2208, %v2209
          %2254 = vadd.xlane.f32.xlu0 %v2253
          %v2255 = vpop.xlane.xlu0 %2254
          %v2256 = vadd.f32 %v2210, %v2211
          %2257 = vadd.xlane.f32.xlu0 %v2256
          %v2258 = vpop.xlane.xlu0 %2257
          %v2259 = vadd.f32 %v2212, %v2213
          %2260 = vadd.xlane.f32.xlu0 %v2259
          %v2261 = vpop.xlane.xlu0 %2260
          %v2262 = vrcp.pop 256.0
          %v2263 = vmul.f32 256.0, %v2262
          %v2264 = vsub.f32 1.0, %v2263
          %v2265 = vmul.f32 %v2262, %v2264
          %v2266 = vadd.f32 %v2262, %v2265
          %vm2267 = vweird.f32 %v2262
          %v2268 = vsel %vm2267, %v2262, %v2266
          %v2269 = vmul.f32 %v2216, %v2268
          %v2270 = vmul.f32 %v2219, %v2268
          %v2271 = vmul.f32 %v2222, %v2268
          %v2272 = vmul.f32 %v2225, %v2268
          %v2273 = vmul.f32 %v2228, %v2268
          %v2274 = vmul.f32 %v2231, %v2268
          %v2275 = vmul.f32 %v2234, %v2268
          %v2276 = vmul.f32 %v2237, %v2268
          %v2277 = vmul.f32 %v2240, %v2268
          %v2278 = vmul.f32 %v2243, %v2268
          %v2279 = vmul.f32 %v2246, %v2268
          %v2280 = vmul.f32 %v2249, %v2268
          %v2281 = vmul.f32 %v2252, %v2268
          %v2282 = vmul.f32 %v2255, %v2268
          %v2283 = vmul.f32 %v2258, %v2268
          %v2284 = vmul.f32 %v2261, %v2268
          %v2285 = vsub.f32 %v2182, %v2269
          %v2286 = vsub.f32 %v2183, %v2269
          %v2287 = vsub.f32 %v2184, %v2270
          %v2288 = vsub.f32 %v2185, %v2270
          %v2289 = vsub.f32 %v2186, %v2271
          %v2290 = vsub.f32 %v2187, %v2271
          %v2291 = vsub.f32 %v2188, %v2272
          %v2292 = vsub.f32 %v2189, %v2272
          %v2293 = vsub.f32 %v2190, %v2273
          %v2294 = vsub.f32 %v2191, %v2273
          %v2295 = vsub.f32 %v2192, %v2274
          %v2296 = vsub.f32 %v2193, %v2274
          %v2297 = vsub.f32 %v2194, %v2275
          %v2298 = vsub.f32 %v2195, %v2275
          %v2299 = vsub.f32 %v2196, %v2276
          %v2300 = vsub.f32 %v2197, %v2276
          %v2301 = vsub.f32 %v2198, %v2277
          %v2302 = vsub.f32 %v2199, %v2277
          %v2303 = vsub.f32 %v2200, %v2278
          %v2304 = vsub.f32 %v2201, %v2278
          %v2305 = vsub.f32 %v2202, %v2279
          %v2306 = vsub.f32 %v2203, %v2279
          %v2307 = vsub.f32 %v2204, %v2280
          %v2308 = vsub.f32 %v2205, %v2280
          %v2309 = vsub.f32 %v2206, %v2281
          %v2310 = vsub.f32 %v2207, %v2281
          %v2311 = vsub.f32 %v2208, %v2282
          %v2312 = vsub.f32 %v2209, %v2282
          %v2313 = vsub.f32 %v2210, %v2283
          %v2314 = vsub.f32 %v2211, %v2283
          %v2315 = vsub.f32 %v2212, %v2284
          %v2316 = vsub.f32 %v2213, %v2284
          %v2317 = vmul.f32 %v2285, %v2285
          %v2318 = vmul.f32 %v2286, %v2286
          %v2319 = vmul.f32 %v2287, %v2287
          %v2320 = vmul.f32 %v2288, %v2288
          %v2321 = vmul.f32 %v2289, %v2289
          %v2322 = vmul.f32 %v2290, %v2290
          %v2323 = vmul.f32 %v2291, %v2291
          %v2324 = vmul.f32 %v2292, %v2292
          %v2325 = vmul.f32 %v2293, %v2293
          %v2326 = vmul.f32 %v2294, %v2294
          %v2327 = vmul.f32 %v2295, %v2295
          %v2328 = vmul.f32 %v2296, %v2296
          %v2329 = vmul.f32 %v2297, %v2297
          %v2330 = vmul.f32 %v2298, %v2298
          %v2331 = vmul.f32 %v2299, %v2299
          %v2332 = vmul.f32 %v2300, %v2300
          %v2333 = vmul.f32 %v2301, %v2301
          %v2334 = vmul.f32 %v2302, %v2302
          %v2335 = vmul.f32 %v2303, %v2303
          %v2336 = vmul.f32 %v2304, %v2304
          %v2337 = vmul.f32 %v2305, %v2305
          %v2338 = vmul.f32 %v2306, %v2306
          %v2339 = vmul.f32 %v2307, %v2307
          %v2340 = vmul.f32 %v2308, %v2308
          %v2341 = vmul.f32 %v2309, %v2309
          %v2342 = vmul.f32 %v2310, %v2310
          %v2343 = vmul.f32 %v2311, %v2311
          %v2344 = vmul.f32 %v2312, %v2312
          %v2345 = vmul.f32 %v2313, %v2313
          %v2346 = vmul.f32 %v2314, %v2314
          %v2347 = vmul.f32 %v2315, %v2315
          %v2348 = vmul.f32 %v2316, %v2316
          %v2349 = vadd.f32 %v2317, %v2318
          %2350 = vadd.xlane.f32.xlu0 %v2349
          %v2351 = vpop.xlane.xlu0 %2350
          %v2352 = vadd.f32 %v2319, %v2320
          %2353 = vadd.xlane.f32.xlu0 %v2352
          %v2354 = vpop.xlane.xlu0 %2353
          %v2355 = vadd.f32 %v2321, %v2322
          %2356 = vadd.xlane.f32.xlu0 %v2355
          %v2357 = vpop.xlane.xlu0 %2356
          %v2358 = vadd.f32 %v2323, %v2324
          %2359 = vadd.xlane.f32.xlu0 %v2358
          %v2360 = vpop.xlane.xlu0 %2359
          %v2361 = vadd.f32 %v2325, %v2326
          %2362 = vadd.xlane.f32.xlu0 %v2361
          %v2363 = vpop.xlane.xlu0 %2362
          %v2364 = vadd.f32 %v2327, %v2328
          %2365 = vadd.xlane.f32.xlu0 %v2364
          %v2366 = vpop.xlane.xlu0 %2365
          %v2367 = vadd.f32 %v2329, %v2330
          %2368 = vadd.xlane.f32.xlu0 %v2367
          %v2369 = vpop.xlane.xlu0 %2368
          %v2370 = vadd.f32 %v2331, %v2332
          %2371 = vadd.xlane.f32.xlu0 %v2370
          %v2372 = vpop.xlane.xlu0 %2371
          %v2373 = vadd.f32 %v2333, %v2334
          %2374 = vadd.xlane.f32.xlu0 %v2373
          %v2375 = vpop.xlane.xlu0 %2374
          %v2376 = vadd.f32 %v2335, %v2336
          %2377 = vadd.xlane.f32.xlu0 %v2376
          %v2378 = vpop.xlane.xlu0 %2377
          %v2379 = vadd.f32 %v2337, %v2338
          %2380 = vadd.xlane.f32.xlu0 %v2379
          %v2381 = vpop.xlane.xlu0 %2380
          %v2382 = vadd.f32 %v2339, %v2340
          %2383 = vadd.xlane.f32.xlu0 %v2382
          %v2384 = vpop.xlane.xlu0 %2383
          %v2385 = vadd.f32 %v2341, %v2342
          %2386 = vadd.xlane.f32.xlu0 %v2385
          %v2387 = vpop.xlane.xlu0 %2386
          %v2388 = vadd.f32 %v2343, %v2344
          %2389 = vadd.xlane.f32.xlu0 %v2388
          %v2390 = vpop.xlane.xlu0 %2389
          %v2391 = vadd.f32 %v2345, %v2346
          %2392 = vadd.xlane.f32.xlu0 %v2391
          %v2393 = vpop.xlane.xlu0 %2392
          %v2394 = vadd.f32 %v2347, %v2348
          %2395 = vadd.xlane.f32.xlu0 %v2394
          %v2396 = vpop.xlane.xlu0 %2395
          %v2397 = vmul.f32 %v2351, %v2268
          %v2398 = vmul.f32 %v2354, %v2268
          %v2399 = vmul.f32 %v2357, %v2268
          %v2400 = vmul.f32 %v2360, %v2268
          %v2401 = vmul.f32 %v2363, %v2268
          %v2402 = vmul.f32 %v2366, %v2268
          %v2403 = vmul.f32 %v2369, %v2268
          %v2404 = vmul.f32 %v2372, %v2268
          %v2405 = vmul.f32 %v2375, %v2268
          %v2406 = vmul.f32 %v2378, %v2268
          %v2407 = vmul.f32 %v2381, %v2268
          %v2408 = vmul.f32 %v2384, %v2268
          %v2409 = vmul.f32 %v2387, %v2268
          %v2410 = vmul.f32 %v2390, %v2268
          %v2411 = vmul.f32 %v2393, %v2268
          %v2412 = vmul.f32 %v2396, %v2268
          %v2413 = vadd.f32 %v2397, 1e-12
          %v2414 = vadd.f32 %v2398, 1e-12
          %v2415 = vadd.f32 %v2399, 1e-12
          %v2416 = vadd.f32 %v2400, 1e-12
          %v2417 = vadd.f32 %v2401, 1e-12
          %v2418 = vadd.f32 %v2402, 1e-12
          %v2419 = vadd.f32 %v2403, 1e-12
          %v2420 = vadd.f32 %v2404, 1e-12
          %v2421 = vadd.f32 %v2405, 1e-12
          %v2422 = vadd.f32 %v2406, 1e-12
          %v2423 = vadd.f32 %v2407, 1e-12
          %v2424 = vadd.f32 %v2408, 1e-12
          %v2425 = vadd.f32 %v2409, 1e-12
          %v2426 = vadd.f32 %v2410, 1e-12
          %v2427 = vadd.f32 %v2411, 1e-12
          %v2428 = vadd.f32 %v2412, 1e-12
          %v2429 = vrsqrt.pop %v2413
          %v2430 = vmul.f32 %v2429, %v2413
          %v2431 = vmul.f32 %v2430, %v2429
          %v2432 = vmul.f32 0.5, %v2431
          %v2433 = vsub.f32 1.5, %v2432
          %v2434 = vmul.f32 %v2429, %v2433
          %vm2435 = vweird.f32 %v2413
          %vm2436 = vweird.f32 %v2429
          %vm2437 = vmor %vm2435, %vm2436
          %v2438 = vsel %vm2437, %v2429, %v2434
          %v2439 = vrsqrt.pop %v2414
          %v2440 = vmul.f32 %v2439, %v2414
          %v2441 = vmul.f32 %v2440, %v2439
          %v2442 = vmul.f32 0.5, %v2441
          %v2443 = vsub.f32 1.5, %v2442
          %v2444 = vmul.f32 %v2439, %v2443
          %vm2445 = vweird.f32 %v2414
          %vm2446 = vweird.f32 %v2439
          %vm2447 = vmor %vm2445, %vm2446
          %v2448 = vsel %vm2447, %v2439, %v2444
          %v2449 = vrsqrt.pop %v2415
          %v2450 = vmul.f32 %v2449, %v2415
          %v2451 = vmul.f32 %v2450, %v2449
          %v2452 = vmul.f32 0.5, %v2451
          %v2453 = vsub.f32 1.5, %v2452
          %v2454 = vmul.f32 %v2449, %v2453
          %vm2455 = vweird.f32 %v2415
          %vm2456 = vweird.f32 %v2449
          %vm2457 = vmor %vm2455, %vm2456
          %v2458 = vsel %vm2457, %v2449, %v2454
          %v2459 = vrsqrt.pop %v2416
          %v2460 = vmul.f32 %v2459, %v2416
          %v2461 = vmul.f32 %v2460, %v2459
          %v2462 = vmul.f32 0.5, %v2461
          %v2463 = vsub.f32 1.5, %v2462
          %v2464 = vmul.f32 %v2459, %v2463
          %vm2465 = vweird.f32 %v2416
          %vm2466 = vweird.f32 %v2459
          %vm2467 = vmor %vm2465, %vm2466
          %v2468 = vsel %vm2467, %v2459, %v2464
          %v2469 = vrsqrt.pop %v2417
          %v2470 = vmul.f32 %v2469, %v2417
          %v2471 = vmul.f32 %v2470, %v2469
          %v2472 = vmul.f32 0.5, %v2471
          %v2473 = vsub.f32 1.5, %v2472
          %v2474 = vmul.f32 %v2469, %v2473
          %vm2475 = vweird.f32 %v2417
          %vm2476 = vweird.f32 %v2469
          %vm2477 = vmor %vm2475, %vm2476
          %v2478 = vsel %vm2477, %v2469, %v2474
          %v2479 = vrsqrt.pop %v2418
          %v2480 = vmul.f32 %v2479, %v2418
          %v2481 = vmul.f32 %v2480, %v2479
          %v2482 = vmul.f32 0.5, %v2481
          %v2483 = vsub.f32 1.5, %v2482
          %v2484 = vmul.f32 %v2479, %v2483
          %vm2485 = vweird.f32 %v2418
          %vm2486 = vweird.f32 %v2479
          %vm2487 = vmor %vm2485, %vm2486
          %v2488 = vsel %vm2487, %v2479, %v2484
          %v2489 = vrsqrt.pop %v2419
          %v2490 = vmul.f32 %v2489, %v2419
          %v2491 = vmul.f32 %v2490, %v2489
          %v2492 = vmul.f32 0.5, %v2491
          %v2493 = vsub.f32 1.5, %v2492
          %v2494 = vmul.f32 %v2489, %v2493
          %vm2495 = vweird.f32 %v2419
          %vm2496 = vweird.f32 %v2489
          %vm2497 = vmor %vm2495, %vm2496
          %v2498 = vsel %vm2497, %v2489, %v2494
          %v2499 = vrsqrt.pop %v2420
          %v2500 = vmul.f32 %v2499, %v2420
          %v2501 = vmul.f32 %v2500, %v2499
          %v2502 = vmul.f32 0.5, %v2501
          %v2503 = vsub.f32 1.5, %v2502
          %v2504 = vmul.f32 %v2499, %v2503
          %vm2505 = vweird.f32 %v2420
          %vm2506 = vweird.f32 %v2499
          %vm2507 = vmor %vm2505, %vm2506
          %v2508 = vsel %vm2507, %v2499, %v2504
          %v2509 = vrsqrt.pop %v2421
          %v2510 = vmul.f32 %v2509, %v2421
          %v2511 = vmul.f32 %v2510, %v2509
          %v2512 = vmul.f32 0.5, %v2511
          %v2513 = vsub.f32 1.5, %v2512
          %v2514 = vmul.f32 %v2509, %v2513
          %vm2515 = vweird.f32 %v2421
          %vm2516 = vweird.f32 %v2509
          %vm2517 = vmor %vm2515, %vm2516
          %v2518 = vsel %vm2517, %v2509, %v2514
          %v2519 = vrsqrt.pop %v2422
          %v2520 = vmul.f32 %v2519, %v2422
          %v2521 = vmul.f32 %v2520, %v2519
          %v2522 = vmul.f32 0.5, %v2521
          %v2523 = vsub.f32 1.5, %v2522
          %v2524 = vmul.f32 %v2519, %v2523
          %vm2525 = vweird.f32 %v2422
          %vm2526 = vweird.f32 %v2519
          %vm2527 = vmor %vm2525, %vm2526
          %v2528 = vsel %vm2527, %v2519, %v2524
          %v2529 = vrsqrt.pop %v2423
          %v2530 = vmul.f32 %v2529, %v2423
          %v2531 = vmul.f32 %v2530, %v2529
          %v2532 = vmul.f32 0.5, %v2531
          %v2533 = vsub.f32 1.5, %v2532
          %v2534 = vmul.f32 %v2529, %v2533
          %vm2535 = vweird.f32 %v2423
          %vm2536 = vweird.f32 %v2529
          %vm2537 = vmor %vm2535, %vm2536
          %v2538 = vsel %vm2537, %v2529, %v2534
          %v2539 = vrsqrt.pop %v2424
          %v2540 = vmul.f32 %v2539, %v2424
          %v2541 = vmul.f32 %v2540, %v2539
          %v2542 = vmul.f32 0.5, %v2541
          %v2543 = vsub.f32 1.5, %v2542
          %v2544 = vmul.f32 %v2539, %v2543
          %vm2545 = vweird.f32 %v2424
          %vm2546 = vweird.f32 %v2539
          %vm2547 = vmor %vm2545, %vm2546
          %v2548 = vsel %vm2547, %v2539, %v2544
          %v2549 = vrsqrt.pop %v2425
          %v2550 = vmul.f32 %v2549, %v2425
          %v2551 = vmul.f32 %v2550, %v2549
          %v2552 = vmul.f32 0.5, %v2551
          %v2553 = vsub.f32 1.5, %v2552
          %v2554 = vmul.f32 %v2549, %v2553
          %vm2555 = vweird.f32 %v2425
          %vm2556 = vweird.f32 %v2549
          %vm2557 = vmor %vm2555, %vm2556
          %v2558 = vsel %vm2557, %v2549, %v2554
          %v2559 = vrsqrt.pop %v2426
          %v2560 = vmul.f32 %v2559, %v2426
          %v2561 = vmul.f32 %v2560, %v2559
          %v2562 = vmul.f32 0.5, %v2561
          %v2563 = vsub.f32 1.5, %v2562
          %v2564 = vmul.f32 %v2559, %v2563
          %vm2565 = vweird.f32 %v2426
          %vm2566 = vweird.f32 %v2559
          %vm2567 = vmor %vm2565, %vm2566
          %v2568 = vsel %vm2567, %v2559, %v2564
          %v2569 = vrsqrt.pop %v2427
          %v2570 = vmul.f32 %v2569, %v2427
          %v2571 = vmul.f32 %v2570, %v2569
          %v2572 = vmul.f32 0.5, %v2571
          %v2573 = vsub.f32 1.5, %v2572
          %v2574 = vmul.f32 %v2569, %v2573
          %vm2575 = vweird.f32 %v2427
          %vm2576 = vweird.f32 %v2569
          %vm2577 = vmor %vm2575, %vm2576
          %v2578 = vsel %vm2577, %v2569, %v2574
          %v2579 = vrsqrt.pop %v2428
          %v2580 = vmul.f32 %v2579, %v2428
          %v2581 = vmul.f32 %v2580, %v2579
          %v2582 = vmul.f32 0.5, %v2581
          %v2583 = vsub.f32 1.5, %v2582
          %v2584 = vmul.f32 %v2579, %v2583
          %vm2585 = vweird.f32 %v2428
          %vm2586 = vweird.f32 %v2579
          %vm2587 = vmor %vm2585, %vm2586
          %v2588 = vsel %vm2587, %v2579, %v2584
          %v2589 = vmul.f32 %v2285, %v2438
          %v2590 = vmul.f32 %v2286, %v2438
          %v2591 = vmul.f32 %v2287, %v2448
          %v2592 = vmul.f32 %v2288, %v2448
          %v2593 = vmul.f32 %v2289, %v2458
          %v2594 = vmul.f32 %v2290, %v2458
          %v2595 = vmul.f32 %v2291, %v2468
          %v2596 = vmul.f32 %v2292, %v2468
          %v2597 = vmul.f32 %v2293, %v2478
          %v2598 = vmul.f32 %v2294, %v2478
          %v2599 = vmul.f32 %v2295, %v2488
          %v2600 = vmul.f32 %v2296, %v2488
          %v2601 = vmul.f32 %v2297, %v2498
          %v2602 = vmul.f32 %v2298, %v2498
          %v2603 = vmul.f32 %v2299, %v2508
          %v2604 = vmul.f32 %v2300, %v2508
          %v2605 = vmul.f32 %v2301, %v2518
          %v2606 = vmul.f32 %v2302, %v2518
          %v2607 = vmul.f32 %v2303, %v2528
          %v2608 = vmul.f32 %v2304, %v2528
          %v2609 = vmul.f32 %v2305, %v2538
          %v2610 = vmul.f32 %v2306, %v2538
          %v2611 = vmul.f32 %v2307, %v2548
          %v2612 = vmul.f32 %v2308, %v2548
          %v2613 = vmul.f32 %v2309, %v2558
          %v2614 = vmul.f32 %v2310, %v2558
          %v2615 = vmul.f32 %v2311, %v2568
          %v2616 = vmul.f32 %v2312, %v2568
          %v2617 = vmul.f32 %v2313, %v2578
          %v2618 = vmul.f32 %v2314, %v2578
          %v2619 = vmul.f32 %v2315, %v2588
          %v2620 = vmul.f32 %v2316, %v2588
          %v2621 = vld [vmem:[%s3] sm:$0x3]
          %v2623 = vperm.slane %v2621, 0
          %v2624 = vperm.slane %v2621, 1
          %v2627 = vmul.f32 %v2589, %v2623
          %v2628 = vmul.f32 %v2590, %v2624
          %v2629 = vmul.f32 %v2591, %v2623
          %v2630 = vmul.f32 %v2592, %v2624
          %v2631 = vmul.f32 %v2593, %v2623
          %v2632 = vmul.f32 %v2594, %v2624
          %v2633 = vmul.f32 %v2595, %v2623
          %v2634 = vmul.f32 %v2596, %v2624
          %v2635 = vmul.f32 %v2597, %v2623
          %v2636 = vmul.f32 %v2598, %v2624
          %v2637 = vmul.f32 %v2599, %v2623
          %v2638 = vmul.f32 %v2600, %v2624
          %v2639 = vmul.f32 %v2601, %v2623
          %v2640 = vmul.f32 %v2602, %v2624
          %v2641 = vmul.f32 %v2603, %v2623
          %v2642 = vmul.f32 %v2604, %v2624
          %v2643 = vmul.f32 %v2605, %v2623
          %v2644 = vmul.f32 %v2606, %v2624
          %v2645 = vmul.f32 %v2607, %v2623
          %v2646 = vmul.f32 %v2608, %v2624
          %v2647 = vmul.f32 %v2609, %v2623
          %v2648 = vmul.f32 %v2610, %v2624
          %v2649 = vmul.f32 %v2611, %v2623
          %v2650 = vmul.f32 %v2612, %v2624
          %v2651 = vmul.f32 %v2613, %v2623
          %v2652 = vmul.f32 %v2614, %v2624
          %v2653 = vmul.f32 %v2615, %v2623
          %v2654 = vmul.f32 %v2616, %v2624
          %v2655 = vmul.f32 %v2617, %v2623
          %v2656 = vmul.f32 %v2618, %v2624
          %v2657 = vmul.f32 %v2619, %v2623
          %v2658 = vmul.f32 %v2620, %v2624
          %v2659 = vld [vmem:[#allocation9] sm:$0x3]
          %v2661 = vperm.slane %v2659, 0
          %v2662 = vperm.slane %v2659, 1
          %v2665 = vadd.f32 %v2627, %v2661
          %v2666 = vadd.f32 %v2628, %v2662
          %v2667 = vadd.f32 %v2629, %v2661
          %v2668 = vadd.f32 %v2630, %v2662
          %v2669 = vadd.f32 %v2631, %v2661
          %v2670 = vadd.f32 %v2632, %v2662
          %v2671 = vadd.f32 %v2633, %v2661
          %v2672 = vadd.f32 %v2634, %v2662
          %v2673 = vadd.f32 %v2635, %v2661
          %v2674 = vadd.f32 %v2636, %v2662
          %v2675 = vadd.f32 %v2637, %v2661
          %v2676 = vadd.f32 %v2638, %v2662
          %v2677 = vadd.f32 %v2639, %v2661
          %v2678 = vadd.f32 %v2640, %v2662
          %v2679 = vadd.f32 %v2641, %v2661
          %v2680 = vadd.f32 %v2642, %v2662
          %v2681 = vadd.f32 %v2643, %v2661
          %v2682 = vadd.f32 %v2644, %v2662
          %v2683 = vadd.f32 %v2645, %v2661
          %v2684 = vadd.f32 %v2646, %v2662
          %v2685 = vadd.f32 %v2647, %v2661
          %v2686 = vadd.f32 %v2648, %v2662
          %v2687 = vadd.f32 %v2649, %v2661
          %v2688 = vadd.f32 %v2650, %v2662
          %v2689 = vadd.f32 %v2651, %v2661
          %v2690 = vadd.f32 %v2652, %v2662
          %v2691 = vadd.f32 %v2653, %v2661
          %v2692 = vadd.f32 %v2654, %v2662
          %v2693 = vadd.f32 %v2655, %v2661
          %v2694 = vadd.f32 %v2656, %v2662
          %v2695 = vadd.f32 %v2657, %v2661
          %v2696 = vadd.f32 %v2658, %v2662
          %v2697 = vpack.c.bf16 %v2666, %v2665
          %v2698 = vpack.c.bf16 %v2668, %v2667
          %v2699 = vpack.c.bf16 %v2670, %v2669
          %v2700 = vpack.c.bf16 %v2672, %v2671
          %v2701 = vpack.c.bf16 %v2674, %v2673
          %v2702 = vpack.c.bf16 %v2676, %v2675
          %v2703 = vpack.c.bf16 %v2678, %v2677
          %v2704 = vpack.c.bf16 %v2680, %v2679
          %v2705 = vpack.c.bf16 %v2682, %v2681
          %v2706 = vpack.c.bf16 %v2684, %v2683
          %v2707 = vpack.c.bf16 %v2686, %v2685
          %v2708 = vpack.c.bf16 %v2688, %v2687
          %v2709 = vpack.c.bf16 %v2690, %v2689
          %v2710 = vpack.c.bf16 %v2692, %v2691
          %v2711 = vpack.c.bf16 %v2694, %v2693
          %v2712 = vpack.c.bf16 %v2696, %v2695
          %2713 = vst [vmem:[#allocation2] sm:$0xff] %v2697
          %2714 = vst [vmem:[#allocation2 + $0x8] sm:$0xff] %v2698
          %2715 = vst [vmem:[#allocation2 + $0x10] sm:$0xff] %v2699
          %2716 = vst [vmem:[#allocation2 + $0x18] sm:$0xff] %v2700
          %2717 = vst [vmem:[#allocation2 + $0x20] sm:$0xff] %v2701
          %2718 = vst [vmem:[#allocation2 + $0x28] sm:$0xff] %v2702
          %2719 = vst [vmem:[#allocation2 + $0x30] sm:$0xff] %v2703
          %2720 = vst [vmem:[#allocation2 + $0x38] sm:$0xff] %v2704
          %2721 = vst [vmem:[#allocation2 + $0x40] sm:$0xff] %v2705
          %2722 = vst [vmem:[#allocation2 + $0x48] sm:$0xff] %v2706
          %2723 = vst [vmem:[#allocation2 + $0x50] sm:$0xff] %v2707
          %2724 = vst [vmem:[#allocation2 + $0x58] sm:$0xff] %v2708
          %2725 = vst [vmem:[#allocation2 + $0x60] sm:$0xff] %v2709
          %2726 = vst [vmem:[#allocation2 + $0x68] sm:$0xff] %v2710
          %2727 = vst [vmem:[#allocation2 + $0x70] sm:$0xff] %v2711
          %2728 = vst [vmem:[#allocation2 + $0x78] sm:$0xff] %v2712
        $region76: #{tpu_custom_call.1} parent=47 // pred_fallthru
          _
        %v2729 = vld [vmem:[#allocation2] sm:$0xff]
        %v2730 = vld [vmem:[#allocation2 + $0x8] sm:$0xff]
        %v2731 = vld [vmem:[#allocation2 + $0x10] sm:$0xff]
        %v2732 = vld [vmem:[#allocation2 + $0x18] sm:$0xff]
        %v2733 = vld [vmem:[#allocation2 + $0x20] sm:$0xff]
        %v2734 = vld [vmem:[#allocation2 + $0x28] sm:$0xff]
        %v2735 = vld [vmem:[#allocation2 + $0x30] sm:$0xff]
        %v2736 = vld [vmem:[#allocation2 + $0x38] sm:$0xff]
        %v2737 = vld [vmem:[#allocation2 + $0x40] sm:$0xff]
        %v2738 = vld [vmem:[#allocation2 + $0x48] sm:$0xff]
        %v2739 = vld [vmem:[#allocation2 + $0x50] sm:$0xff]
        %v2740 = vld [vmem:[#allocation2 + $0x58] sm:$0xff]
        %v2741 = vld [vmem:[#allocation2 + $0x60] sm:$0xff]
        %v2742 = vld [vmem:[#allocation2 + $0x68] sm:$0xff]
        %v2743 = vld [vmem:[#allocation2 + $0x70] sm:$0xff]
        %v2744 = vld [vmem:[#allocation2 + $0x78] sm:$0xff]
        %v2745 = vld [vmem:[%s383] sm:$0xff]
        %v2746 = vld [vmem:[%s383 + $0x8] sm:$0xff]
        %v2747 = vld [vmem:[%s383 + $0x10] sm:$0xff]
        %v2748 = vld [vmem:[%s383 + $0x18] sm:$0xff]
        %v2749 = vld [vmem:[%s383 + $0x20] sm:$0xff]
        %v2750 = vld [vmem:[%s383 + $0x28] sm:$0xff]
        %v2751 = vld [vmem:[%s383 + $0x30] sm:$0xff]
        %v2752 = vld [vmem:[%s383 + $0x38] sm:$0xff]
        %v2753 = vld [vmem:[%s383 + $0x40] sm:$0xff]
        %v2754 = vld [vmem:[%s383 + $0x48] sm:$0xff]
        %v2755 = vld [vmem:[%s383 + $0x50] sm:$0xff]
        %v2756 = vld [vmem:[%s383 + $0x58] sm:$0xff]
        %v2757 = vld [vmem:[%s383 + $0x60] sm:$0xff]
        %v2758 = vld [vmem:[%s383 + $0x68] sm:$0xff]
        %v2759 = vld [vmem:[%s383 + $0x70] sm:$0xff]
        %v2760 = vld [vmem:[%s383 + $0x78] sm:$0xff]
        %v2761 = vld [vmem:[%s383 + $0x80] sm:$0xff]
        %v2762 = vld [vmem:[%s383 + $0x88] sm:$0xff]
        %v2763 = vld [vmem:[%s383 + $0x90] sm:$0xff]
        %v2764 = vld [vmem:[%s383 + $0x98] sm:$0xff]
        %v2765 = vld [vmem:[%s383 + $0xa0] sm:$0xff]
        %v2766 = vld [vmem:[%s383 + $0xa8] sm:$0xff]
        %v2767 = vld [vmem:[%s383 + $0xb0] sm:$0xff]
        %v2768 = vld [vmem:[%s383 + $0xb8] sm:$0xff]
        %v2769 = vld [vmem:[%s383 + $0xc0] sm:$0xff]
        %v2770 = vld [vmem:[%s383 + $0xc8] sm:$0xff]
        %v2771 = vld [vmem:[%s383 + $0xd0] sm:$0xff]
        %v2772 = vld [vmem:[%s383 + $0xd8] sm:$0xff]
        %v2773 = vld [vmem:[%s383 + $0xe0] sm:$0xff]
        %v2774 = vld [vmem:[%s383 + $0xe8] sm:$0xff]
        %v2775 = vld [vmem:[%s383 + $0xf0] sm:$0xff]
        %v2776 = vld [vmem:[%s383 + $0xf8] sm:$0xff]
        %v2777 = vld [vmem:[%s383 + $0x100] sm:$0xff]
        %v2778 = vld [vmem:[%s383 + $0x108] sm:$0xff]
        %v2779 = vld [vmem:[%s383 + $0x110] sm:$0xff]
        %v2780 = vld [vmem:[%s383 + $0x118] sm:$0xff]
        %v2781 = vld [vmem:[%s383 + $0x120] sm:$0xff]
        %v2782 = vld [vmem:[%s383 + $0x128] sm:$0xff]
        %v2783 = vld [vmem:[%s383 + $0x130] sm:$0xff]
        %v2784 = vld [vmem:[%s383 + $0x138] sm:$0xff]
        %v2785 = vld [vmem:[%s383 + $0x140] sm:$0xff]
        %v2786 = vld [vmem:[%s383 + $0x148] sm:$0xff]
        %v2787 = vld [vmem:[%s383 + $0x150] sm:$0xff]
        %v2788 = vld [vmem:[%s383 + $0x158] sm:$0xff]
        %v2789 = vld [vmem:[%s383 + $0x160] sm:$0xff]
        %v2790 = vld [vmem:[%s383 + $0x168] sm:$0xff]
        %v2791 = vld [vmem:[%s383 + $0x170] sm:$0xff]
        %v2792 = vld [vmem:[%s383 + $0x178] sm:$0xff]
        %v2793 = vld [vmem:[%s383 + $0x180] sm:$0xff]
        %v2794 = vld [vmem:[%s383 + $0x188] sm:$0xff]
        %v2795 = vld [vmem:[%s383 + $0x190] sm:$0xff]
        %v2796 = vld [vmem:[%s383 + $0x198] sm:$0xff]
        %v2797 = vld [vmem:[%s383 + $0x1a0] sm:$0xff]
        %v2798 = vld [vmem:[%s383 + $0x1a8] sm:$0xff]
        %v2799 = vld [vmem:[%s383 + $0x1b0] sm:$0xff]
        %v2800 = vld [vmem:[%s383 + $0x1b8] sm:$0xff]
        %v2801 = vld [vmem:[%s383 + $0x1c0] sm:$0xff]
        %v2802 = vld [vmem:[%s383 + $0x1c8] sm:$0xff]
        %v2803 = vld [vmem:[%s383 + $0x1d0] sm:$0xff]
        %v2804 = vld [vmem:[%s383 + $0x1d8] sm:$0xff]
        %v2805 = vld [vmem:[%s383 + $0x1e0] sm:$0xff]
        %v2806 = vld [vmem:[%s383 + $0x1e8] sm:$0xff]
        %v2807 = vld [vmem:[%s383 + $0x1f0] sm:$0xff]
        %v2808 = vld [vmem:[%s383 + $0x1f8] sm:$0xff]
        %v2809 = vld [vmem:[%s393] sm:$0xf]
        %v2811 = vperm.slane %v2809, 0
        %v2812 = vperm.slane %v2809, 1
        %v2813 = vperm.slane %v2809, 2
        %v2814 = vperm.slane %v2809, 3
        %v2835 = vunpack.c.l.b16 %v2729
        %v2836 = vunpack.c.h.b16 %v2729
        %v2837 = vunpack.c.l.b16 %v2730
        %v2838 = vunpack.c.h.b16 %v2730
        %v2839 = vunpack.c.l.b16 %v2731
        %v2840 = vunpack.c.h.b16 %v2731
        %v2841 = vunpack.c.l.b16 %v2732
        %v2842 = vunpack.c.h.b16 %v2732
        %v2843 = vunpack.c.l.b16 %v2733
        %v2844 = vunpack.c.h.b16 %v2733
        %v2845 = vunpack.c.l.b16 %v2734
        %v2846 = vunpack.c.h.b16 %v2734
        %v2847 = vunpack.c.l.b16 %v2735
        %v2848 = vunpack.c.h.b16 %v2735
        %v2849 = vunpack.c.l.b16 %v2736
        %v2850 = vunpack.c.h.b16 %v2736
        %v2851 = vunpack.c.l.b16 %v2737
        %v2852 = vunpack.c.h.b16 %v2737
        %v2853 = vunpack.c.l.b16 %v2738
        %v2854 = vunpack.c.h.b16 %v2738
        %v2855 = vunpack.c.l.b16 %v2739
        %v2856 = vunpack.c.h.b16 %v2739
        %v2857 = vunpack.c.l.b16 %v2740
        %v2858 = vunpack.c.h.b16 %v2740
        %v2859 = vunpack.c.l.b16 %v2741
        %v2860 = vunpack.c.h.b16 %v2741
        %v2861 = vunpack.c.l.b16 %v2742
        %v2862 = vunpack.c.h.b16 %v2742
        %v2863 = vunpack.c.l.b16 %v2743
        %v2864 = vunpack.c.h.b16 %v2743
        %v2865 = vunpack.c.l.b16 %v2744
        %v2866 = vunpack.c.h.b16 %v2744
        %v2867 = vpack.c.b16 %v2837, %v2835
        %v2868 = vpack.c.b16 %v2838, %v2836
        %v2869 = vpack.c.b16 %v2841, %v2839
        %v2870 = vpack.c.b16 %v2842, %v2840
        %v2871 = vpack.c.b16 %v2845, %v2843
        %v2872 = vpack.c.b16 %v2846, %v2844
        %v2873 = vpack.c.b16 %v2849, %v2847
        %v2874 = vpack.c.b16 %v2850, %v2848
        %v2875 = vpack.c.b16 %v2853, %v2851
        %v2876 = vpack.c.b16 %v2854, %v2852
        %v2877 = vpack.c.b16 %v2857, %v2855
        %v2878 = vpack.c.b16 %v2858, %v2856
        %v2879 = vpack.c.b16 %v2861, %v2859
        %v2880 = vpack.c.b16 %v2862, %v2860
        %v2881 = vpack.c.b16 %v2865, %v2863
        %v2882 = vpack.c.b16 %v2866, %v2864
        %v2963 = vunpack.c.l.b16 %v2745
        %v2964 = vunpack.c.h.b16 %v2745
        %v2965 = vunpack.c.l.b16 %v2746
        %v2966 = vunpack.c.h.b16 %v2746
        %v2967 = vunpack.c.l.b16 %v2747
        %v2968 = vunpack.c.h.b16 %v2747
        %v2969 = vunpack.c.l.b16 %v2748
        %v2970 = vunpack.c.h.b16 %v2748
        %v2971 = vunpack.c.l.b16 %v2749
        %v2972 = vunpack.c.h.b16 %v2749
        %v2973 = vunpack.c.l.b16 %v2750
        %v2974 = vunpack.c.h.b16 %v2750
        %v2975 = vunpack.c.l.b16 %v2751
        %v2976 = vunpack.c.h.b16 %v2751
        %v2977 = vunpack.c.l.b16 %v2752
        %v2978 = vunpack.c.h.b16 %v2752
        %v2979 = vunpack.c.l.b16 %v2753
        %v2980 = vunpack.c.h.b16 %v2753
        %v2981 = vunpack.c.l.b16 %v2754
        %v2982 = vunpack.c.h.b16 %v2754
        %v2983 = vunpack.c.l.b16 %v2755
        %v2984 = vunpack.c.h.b16 %v2755
        %v2985 = vunpack.c.l.b16 %v2756
        %v2986 = vunpack.c.h.b16 %v2756
        %v2987 = vunpack.c.l.b16 %v2757
        %v2988 = vunpack.c.h.b16 %v2757
        %v2989 = vunpack.c.l.b16 %v2758
        %v2990 = vunpack.c.h.b16 %v2758
        %v2991 = vunpack.c.l.b16 %v2759
        %v2992 = vunpack.c.h.b16 %v2759
        %v2993 = vunpack.c.l.b16 %v2760
        %v2994 = vunpack.c.h.b16 %v2760
        %v2995 = vunpack.c.l.b16 %v2761
        %v2996 = vunpack.c.h.b16 %v2761
        %v2997 = vunpack.c.l.b16 %v2762
        %v2998 = vunpack.c.h.b16 %v2762
        %v2999 = vunpack.c.l.b16 %v2763
        %v3000 = vunpack.c.h.b16 %v2763
        %v3001 = vunpack.c.l.b16 %v2764
        %v3002 = vunpack.c.h.b16 %v2764
        %v3003 = vunpack.c.l.b16 %v2765
        %v3004 = vunpack.c.h.b16 %v2765
        %v3005 = vunpack.c.l.b16 %v2766
        %v3006 = vunpack.c.h.b16 %v2766
        %v3007 = vunpack.c.l.b16 %v2767
        %v3008 = vunpack.c.h.b16 %v2767
        %v3009 = vunpack.c.l.b16 %v2768
        %v3010 = vunpack.c.h.b16 %v2768
        %v3011 = vunpack.c.l.b16 %v2769
        %v3012 = vunpack.c.h.b16 %v2769
        %v3013 = vunpack.c.l.b16 %v2770
        %v3014 = vunpack.c.h.b16 %v2770
        %v3015 = vunpack.c.l.b16 %v2771
        %v3016 = vunpack.c.h.b16 %v2771
        %v3017 = vunpack.c.l.b16 %v2772
        %v3018 = vunpack.c.h.b16 %v2772
        %v3019 = vunpack.c.l.b16 %v2773
        %v3020 = vunpack.c.h.b16 %v2773
        %v3021 = vunpack.c.l.b16 %v2774
        %v3022 = vunpack.c.h.b16 %v2774
        %v3023 = vunpack.c.l.b16 %v2775
        %v3024 = vunpack.c.h.b16 %v2775
        %v3025 = vunpack.c.l.b16 %v2776
        %v3026 = vunpack.c.h.b16 %v2776
        %v3027 = vunpack.c.l.b16 %v2777
        %v3028 = vunpack.c.h.b16 %v2777
        %v3029 = vunpack.c.l.b16 %v2778
        %v3030 = vunpack.c.h.b16 %v2778
        %v3031 = vunpack.c.l.b16 %v2779
        %v3032 = vunpack.c.h.b16 %v2779
        %v3033 = vunpack.c.l.b16 %v2780
        %v3034 = vunpack.c.h.b16 %v2780
        %v3035 = vunpack.c.l.b16 %v2781
        %v3036 = vunpack.c.h.b16 %v2781
        %v3037 = vunpack.c.l.b16 %v2782
        %v3038 = vunpack.c.h.b16 %v2782
        %v3039 = vunpack.c.l.b16 %v2783
        %v3040 = vunpack.c.h.b16 %v2783
        %v3041 = vunpack.c.l.b16 %v2784
        %v3042 = vunpack.c.h.b16 %v2784
        %v3043 = vunpack.c.l.b16 %v2785
        %v3044 = vunpack.c.h.b16 %v2785
        %v3045 = vunpack.c.l.b16 %v2786
        %v3046 = vunpack.c.h.b16 %v2786
        %v3047 = vunpack.c.l.b16 %v2787
        %v3048 = vunpack.c.h.b16 %v2787
        %v3049 = vunpack.c.l.b16 %v2788
        %v3050 = vunpack.c.h.b16 %v2788
        %v3051 = vunpack.c.l.b16 %v2789
        %v3052 = vunpack.c.h.b16 %v2789
        %v3053 = vunpack.c.l.b16 %v2790
        %v3054 = vunpack.c.h.b16 %v2790
        %v3055 = vunpack.c.l.b16 %v2791
        %v3056 = vunpack.c.h.b16 %v2791
        %v3057 = vunpack.c.l.b16 %v2792
        %v3058 = vunpack.c.h.b16 %v2792
        %v3059 = vunpack.c.l.b16 %v2793
        %v3060 = vunpack.c.h.b16 %v2793
        %v3061 = vunpack.c.l.b16 %v2794
        %v3062 = vunpack.c.h.b16 %v2794
        %v3063 = vunpack.c.l.b16 %v2795
        %v3064 = vunpack.c.h.b16 %v2795
        %v3065 = vunpack.c.l.b16 %v2796
        %v3066 = vunpack.c.h.b16 %v2796
        %v3067 = vunpack.c.l.b16 %v2797
        %v3068 = vunpack.c.h.b16 %v2797
        %v3069 = vunpack.c.l.b16 %v2798
        %v3070 = vunpack.c.h.b16 %v2798
        %v3071 = vunpack.c.l.b16 %v2799
        %v3072 = vunpack.c.h.b16 %v2799
        %v3073 = vunpack.c.l.b16 %v2800
        %v3074 = vunpack.c.h.b16 %v2800
        %v3075 = vunpack.c.l.b16 %v2801
        %v3076 = vunpack.c.h.b16 %v2801
        %v3077 = vunpack.c.l.b16 %v2802
        %v3078 = vunpack.c.h.b16 %v2802
        %v3079 = vunpack.c.l.b16 %v2803
        %v3080 = vunpack.c.h.b16 %v2803
        %v3081 = vunpack.c.l.b16 %v2804
        %v3082 = vunpack.c.h.b16 %v2804
        %v3083 = vunpack.c.l.b16 %v2805
        %v3084 = vunpack.c.h.b16 %v2805
        %v3085 = vunpack.c.l.b16 %v2806
        %v3086 = vunpack.c.h.b16 %v2806
        %v3087 = vunpack.c.l.b16 %v2807
        %v3088 = vunpack.c.h.b16 %v2807
        %v3089 = vunpack.c.l.b16 %v2808
        %v3090 = vunpack.c.h.b16 %v2808
        %v3091 = vpack.c.b16 %v2967, %v2963
        %v3092 = vpack.c.b16 %v2968, %v2964
        %v3093 = vpack.c.b16 %v2969, %v2965
        %v3094 = vpack.c.b16 %v2970, %v2966
        %v3095 = vpack.c.b16 %v2975, %v2971
        %v3096 = vpack.c.b16 %v2976, %v2972
        %v3097 = vpack.c.b16 %v2977, %v2973
        %v3098 = vpack.c.b16 %v2978, %v2974
        %v3099 = vpack.c.b16 %v2983, %v2979
        %v3100 = vpack.c.b16 %v2984, %v2980
        %v3101 = vpack.c.b16 %v2985, %v2981
        %v3102 = vpack.c.b16 %v2986, %v2982
        %v3103 = vpack.c.b16 %v2991, %v2987
        %v3104 = vpack.c.b16 %v2992, %v2988
        %v3105 = vpack.c.b16 %v2993, %v2989
        %v3106 = vpack.c.b16 %v2994, %v2990
        %v3107 = vpack.c.b16 %v2999, %v2995
        %v3108 = vpack.c.b16 %v3000, %v2996
        %v3109 = vpack.c.b16 %v3001, %v2997
        %v3110 = vpack.c.b16 %v3002, %v2998
        %v3111 = vpack.c.b16 %v3007, %v3003
        %v3112 = vpack.c.b16 %v3008, %v3004
        %v3113 = vpack.c.b16 %v3009, %v3005
        %v3114 = vpack.c.b16 %v3010, %v3006
        %v3115 = vpack.c.b16 %v3015, %v3011
        %v3116 = vpack.c.b16 %v3016, %v3012
        %v3117 = vpack.c.b16 %v3017, %v3013
        %v3118 = vpack.c.b16 %v3018, %v3014
        %v3119 = vpack.c.b16 %v3023, %v3019
        %v3120 = vpack.c.b16 %v3024, %v3020
        %v3121 = vpack.c.b16 %v3025, %v3021
        %v3122 = vpack.c.b16 %v3026, %v3022
        %v3123 = vpack.c.b16 %v3031, %v3027
        %v3124 = vpack.c.b16 %v3032, %v3028
        %v3125 = vpack.c.b16 %v3033, %v3029
        %v3126 = vpack.c.b16 %v3034, %v3030
        %v3127 = vpack.c.b16 %v3039, %v3035
        %v3128 = vpack.c.b16 %v3040, %v3036
        %v3129 = vpack.c.b16 %v3041, %v3037
        %v3130 = vpack.c.b16 %v3042, %v3038
        %v3131 = vpack.c.b16 %v3047, %v3043
        %v3132 = vpack.c.b16 %v3048, %v3044
        %v3133 = vpack.c.b16 %v3049, %v3045
        %v3134 = vpack.c.b16 %v3050, %v3046
        %v3135 = vpack.c.b16 %v3055, %v3051
        %v3136 = vpack.c.b16 %v3056, %v3052
        %v3137 = vpack.c.b16 %v3057, %v3053
        %v3138 = vpack.c.b16 %v3058, %v3054
        %v3139 = vpack.c.b16 %v3063, %v3059
        %v3140 = vpack.c.b16 %v3064, %v3060
        %v3141 = vpack.c.b16 %v3065, %v3061
        %v3142 = vpack.c.b16 %v3066, %v3062
        %v3143 = vpack.c.b16 %v3071, %v3067
        %v3144 = vpack.c.b16 %v3072, %v3068
        %v3145 = vpack.c.b16 %v3073, %v3069
        %v3146 = vpack.c.b16 %v3074, %v3070
        %v3147 = vpack.c.b16 %v3079, %v3075
        %v3148 = vpack.c.b16 %v3080, %v3076
        %v3149 = vpack.c.b16 %v3081, %v3077
        %v3150 = vpack.c.b16 %v3082, %v3078
        %v3151 = vpack.c.b16 %v3087, %v3083
        %v3152 = vpack.c.b16 %v3088, %v3084
        %v3153 = vpack.c.b16 %v3089, %v3085
        %v3154 = vpack.c.b16 %v3090, %v3086
        %3219 = vmatpush.bf16.msra.mxu0 %v3119
        %3220 = vmatpush.bf16.msra.mxu0 %v3115
        %3221 = vmatpush.bf16.msra.mxu0 %v3111
        %3222 = vmatpush.bf16.msra.mxu0 %v3107
        %3223 = vmatpush.bf16.msra.mxu0 %v3103
        %3224 = vmatpush.bf16.msra.mxu0 %v3099
        %3225 = vmatpush.bf16.msra.mxu0 %v3095
        %3226 = vmatpush.bf16.msra.mxu0 %v3091
        %3227 = vmatmul.bf16.gmra.mxu0 %v2867
        %v3228 = vpop.f32.mrf.mxu0
        %v3229 = vadd.f32 %v2811, %v3228
        %v3230 = vpop.f32.mrf.mxu0
        %v3231 = vadd.f32 %v2811, %v3230
        %3232 = vmatmul.bf16.gmra.mxu0 %v2869
        %v3233 = vpop.f32.mrf.mxu0
        %v3234 = vadd.f32 %v2811, %v3233
        %v3235 = vpop.f32.mrf.mxu0
        %v3236 = vadd.f32 %v2811, %v3235
        %3237 = vmatmul.bf16.gmra.mxu0 %v2871
        %v3238 = vpop.f32.mrf.mxu0
        %v3239 = vadd.f32 %v2811, %v3238
        %v3240 = vpop.f32.mrf.mxu0
        %v3241 = vadd.f32 %v2811, %v3240
        %3242 = vmatmul.bf16.gmra.mxu0 %v2873
        %v3243 = vpop.f32.mrf.mxu0
        %v3244 = vadd.f32 %v2811, %v3243
        %v3245 = vpop.f32.mrf.mxu0
        %v3246 = vadd.f32 %v2811, %v3245
        %3247 = vmatmul.bf16.gmra.mxu0 %v2875
        %v3248 = vpop.f32.mrf.mxu0
        %v3249 = vadd.f32 %v2811, %v3248
        %v3250 = vpop.f32.mrf.mxu0
        %v3251 = vadd.f32 %v2811, %v3250
        %3252 = vmatmul.bf16.gmra.mxu0 %v2877
        %v3253 = vpop.f32.mrf.mxu0
        %v3254 = vadd.f32 %v2811, %v3253
        %v3255 = vpop.f32.mrf.mxu0
        %v3256 = vadd.f32 %v2811, %v3255
        %3257 = vmatmul.bf16.gmra.mxu0 %v2879
        %v3258 = vpop.f32.mrf.mxu0
        %v3259 = vadd.f32 %v2811, %v3258
        %v3260 = vpop.f32.mrf.mxu0
        %v3261 = vadd.f32 %v2811, %v3260
        %3262 = vmatmul.bf16.gmra.mxu0 %v2881
        %v3263 = vpop.f32.mrf.mxu0
        %v3264 = vadd.f32 %v2811, %v3263
        %v3265 = vpop.f32.mrf.mxu0
        %v3266 = vadd.f32 %v2811, %v3265
        %3267 = vdwg.mxu0
        %3268 = vmatpush.bf16.msra.mxu0 %v3151
        %3269 = vmatpush.bf16.msra.mxu0 %v3147
        %3270 = vmatpush.bf16.msra.mxu0 %v3143
        %3271 = vmatpush.bf16.msra.mxu0 %v3139
        %3272 = vmatpush.bf16.msra.mxu0 %v3135
        %3273 = vmatpush.bf16.msra.mxu0 %v3131
        %3274 = vmatpush.bf16.msra.mxu0 %v3127
        %3275 = vmatpush.bf16.msra.mxu0 %v3123
        %3276 = vmatmul.bf16.gmra.mxu0 %v2868
        %v3277 = vpop.f32.mrf.mxu0
        %v3278 = vadd.f32 %v3229, %v3277
        %v3279 = vpop.f32.mrf.mxu0
        %v3280 = vadd.f32 %v3231, %v3279
        %3281 = vmatmul.bf16.gmra.mxu0 %v2870
        %v3282 = vpop.f32.mrf.mxu0
        %v3283 = vadd.f32 %v3234, %v3282
        %v3284 = vpop.f32.mrf.mxu0
        %v3285 = vadd.f32 %v3236, %v3284
        %3286 = vmatmul.bf16.gmra.mxu0 %v2872
        %v3287 = vpop.f32.mrf.mxu0
        %v3288 = vadd.f32 %v3239, %v3287
        %v3289 = vpop.f32.mrf.mxu0
        %v3290 = vadd.f32 %v3241, %v3289
        %3291 = vmatmul.bf16.gmra.mxu0 %v2874
        %v3292 = vpop.f32.mrf.mxu0
        %v3293 = vadd.f32 %v3244, %v3292
        %v3294 = vpop.f32.mrf.mxu0
        %v3295 = vadd.f32 %v3246, %v3294
        %3296 = vmatmul.bf16.gmra.mxu0 %v2876
        %v3297 = vpop.f32.mrf.mxu0
        %v3298 = vadd.f32 %v3249, %v3297
        %v3299 = vpop.f32.mrf.mxu0
        %v3300 = vadd.f32 %v3251, %v3299
        %3301 = vmatmul.bf16.gmra.mxu0 %v2878
        %v3302 = vpop.f32.mrf.mxu0
        %v3303 = vadd.f32 %v3254, %v3302
        %v3304 = vpop.f32.mrf.mxu0
        %v3305 = vadd.f32 %v3256, %v3304
        %3306 = vmatmul.bf16.gmra.mxu0 %v2880
        %v3307 = vpop.f32.mrf.mxu0
        %v3308 = vadd.f32 %v3259, %v3307
        %v3309 = vpop.f32.mrf.mxu0
        %v3310 = vadd.f32 %v3261, %v3309
        %3311 = vmatmul.bf16.gmra.mxu0 %v2882
        %v3312 = vpop.f32.mrf.mxu0
        %v3313 = vadd.f32 %v3264, %v3312
        %v3314 = vpop.f32.mrf.mxu0
        %v3315 = vadd.f32 %v3266, %v3314
        %3316 = vdwg.mxu0
        %3317 = vmatpush.bf16.msra.mxu0 %v3120
        %3318 = vmatpush.bf16.msra.mxu0 %v3116
        %3319 = vmatpush.bf16.msra.mxu0 %v3112
        %3320 = vmatpush.bf16.msra.mxu0 %v3108
        %3321 = vmatpush.bf16.msra.mxu0 %v3104
        %3322 = vmatpush.bf16.msra.mxu0 %v3100
        %3323 = vmatpush.bf16.msra.mxu0 %v3096
        %3324 = vmatpush.bf16.msra.mxu0 %v3092
        %3325 = vmatmul.bf16.gmra.mxu0 %v2867
        %v3326 = vpop.f32.mrf.mxu0
        %v3327 = vadd.f32 %v2812, %v3326
        %v3328 = vpop.f32.mrf.mxu0
        %v3329 = vadd.f32 %v2812, %v3328
        %3330 = vmatmul.bf16.gmra.mxu0 %v2869
        %v3331 = vpop.f32.mrf.mxu0
        %v3332 = vadd.f32 %v2812, %v3331
        %v3333 = vpop.f32.mrf.mxu0
        %v3334 = vadd.f32 %v2812, %v3333
        %3335 = vmatmul.bf16.gmra.mxu0 %v2871
        %v3336 = vpop.f32.mrf.mxu0
        %v3337 = vadd.f32 %v2812, %v3336
        %v3338 = vpop.f32.mrf.mxu0
        %v3339 = vadd.f32 %v2812, %v3338
        %3340 = vmatmul.bf16.gmra.mxu0 %v2873
        %v3341 = vpop.f32.mrf.mxu0
        %v3342 = vadd.f32 %v2812, %v3341
        %v3343 = vpop.f32.mrf.mxu0
        %v3344 = vadd.f32 %v2812, %v3343
        %3345 = vmatmul.bf16.gmra.mxu0 %v2875
        %v3346 = vpop.f32.mrf.mxu0
        %v3347 = vadd.f32 %v2812, %v3346
        %v3348 = vpop.f32.mrf.mxu0
        %v3349 = vadd.f32 %v2812, %v3348
        %3350 = vmatmul.bf16.gmra.mxu0 %v2877
        %v3351 = vpop.f32.mrf.mxu0
        %v3352 = vadd.f32 %v2812, %v3351
        %v3353 = vpop.f32.mrf.mxu0
        %v3354 = vadd.f32 %v2812, %v3353
        %3355 = vmatmul.bf16.gmra.mxu0 %v2879
        %v3356 = vpop.f32.mrf.mxu0
        %v3357 = vadd.f32 %v2812, %v3356
        %v3358 = vpop.f32.mrf.mxu0
        %v3359 = vadd.f32 %v2812, %v3358
        %3360 = vmatmul.bf16.gmra.mxu0 %v2881
        %v3361 = vpop.f32.mrf.mxu0
        %v3362 = vadd.f32 %v2812, %v3361
        %v3363 = vpop.f32.mrf.mxu0
        %v3364 = vadd.f32 %v2812, %v3363
        %3365 = vdwg.mxu0
        %3366 = vmatpush.bf16.msra.mxu0 %v3152
        %3367 = vmatpush.bf16.msra.mxu0 %v3148
        %3368 = vmatpush.bf16.msra.mxu0 %v3144
        %3369 = vmatpush.bf16.msra.mxu0 %v3140
        %3370 = vmatpush.bf16.msra.mxu0 %v3136
        %3371 = vmatpush.bf16.msra.mxu0 %v3132
        %3372 = vmatpush.bf16.msra.mxu0 %v3128
        %3373 = vmatpush.bf16.msra.mxu0 %v3124
        %3374 = vmatmul.bf16.gmra.mxu0 %v2868
        %v3375 = vpop.f32.mrf.mxu0
        %v3376 = vadd.f32 %v3327, %v3375
        %v3377 = vpop.f32.mrf.mxu0
        %v3378 = vadd.f32 %v3329, %v3377
        %3379 = vmatmul.bf16.gmra.mxu0 %v2870
        %v3380 = vpop.f32.mrf.mxu0
        %v3381 = vadd.f32 %v3332, %v3380
        %v3382 = vpop.f32.mrf.mxu0
        %v3383 = vadd.f32 %v3334, %v3382
        %3384 = vmatmul.bf16.gmra.mxu0 %v2872
        %v3385 = vpop.f32.mrf.mxu0
        %v3386 = vadd.f32 %v3337, %v3385
        %v3387 = vpop.f32.mrf.mxu0
        %v3388 = vadd.f32 %v3339, %v3387
        %3389 = vmatmul.bf16.gmra.mxu0 %v2874
        %v3390 = vpop.f32.mrf.mxu0
        %v3391 = vadd.f32 %v3342, %v3390
        %v3392 = vpop.f32.mrf.mxu0
        %v3393 = vadd.f32 %v3344, %v3392
        %3394 = vmatmul.bf16.gmra.mxu0 %v2876
        %v3395 = vpop.f32.mrf.mxu0
        %v3396 = vadd.f32 %v3347, %v3395
        %v3397 = vpop.f32.mrf.mxu0
        %v3398 = vadd.f32 %v3349, %v3397
        %3399 = vmatmul.bf16.gmra.mxu0 %v2878
        %v3400 = vpop.f32.mrf.mxu0
        %v3401 = vadd.f32 %v3352, %v3400
        %v3402 = vpop.f32.mrf.mxu0
        %v3403 = vadd.f32 %v3354, %v3402
        %3404 = vmatmul.bf16.gmra.mxu0 %v2880
        %v3405 = vpop.f32.mrf.mxu0
        %v3406 = vadd.f32 %v3357, %v3405
        %v3407 = vpop.f32.mrf.mxu0
        %v3408 = vadd.f32 %v3359, %v3407
        %3409 = vmatmul.bf16.gmra.mxu0 %v2882
        %v3410 = vpop.f32.mrf.mxu0
        %v3411 = vadd.f32 %v3362, %v3410
        %v3412 = vpop.f32.mrf.mxu0
        %v3413 = vadd.f32 %v3364, %v3412
        %3414 = vdwg.mxu0
        %3415 = vmatpush.bf16.msra.mxu0 %v3121
        %3416 = vmatpush.bf16.msra.mxu0 %v3117
        %3417 = vmatpush.bf16.msra.mxu0 %v3113
        %3418 = vmatpush.bf16.msra.mxu0 %v3109
        %3419 = vmatpush.bf16.msra.mxu0 %v3105
        %3420 = vmatpush.bf16.msra.mxu0 %v3101
        %3421 = vmatpush.bf16.msra.mxu0 %v3097
        %3422 = vmatpush.bf16.msra.mxu0 %v3093
        %3423 = vmatmul.bf16.gmra.mxu0 %v2867
        %v3424 = vpop.f32.mrf.mxu0
        %v3425 = vadd.f32 %v2813, %v3424
        %v3426 = vpop.f32.mrf.mxu0
        %v3427 = vadd.f32 %v2813, %v3426
        %3428 = vmatmul.bf16.gmra.mxu0 %v2869
        %v3429 = vpop.f32.mrf.mxu0
        %v3430 = vadd.f32 %v2813, %v3429
        %v3431 = vpop.f32.mrf.mxu0
        %v3432 = vadd.f32 %v2813, %v3431
        %3433 = vmatmul.bf16.gmra.mxu0 %v2871
        %v3434 = vpop.f32.mrf.mxu0
        %v3435 = vadd.f32 %v2813, %v3434
        %v3436 = vpop.f32.mrf.mxu0
        %v3437 = vadd.f32 %v2813, %v3436
        %3438 = vmatmul.bf16.gmra.mxu0 %v2873
        %v3439 = vpop.f32.mrf.mxu0
        %v3440 = vadd.f32 %v2813, %v3439
        %v3441 = vpop.f32.mrf.mxu0
        %v3442 = vadd.f32 %v2813, %v3441
        %3443 = vmatmul.bf16.gmra.mxu0 %v2875
        %v3444 = vpop.f32.mrf.mxu0
        %v3445 = vadd.f32 %v2813, %v3444
        %v3446 = vpop.f32.mrf.mxu0
        %v3447 = vadd.f32 %v2813, %v3446
        %3448 = vmatmul.bf16.gmra.mxu0 %v2877
        %v3449 = vpop.f32.mrf.mxu0
        %v3450 = vadd.f32 %v2813, %v3449
        %v3451 = vpop.f32.mrf.mxu0
        %v3452 = vadd.f32 %v2813, %v3451
        %3453 = vmatmul.bf16.gmra.mxu0 %v2879
        %v3454 = vpop.f32.mrf.mxu0
        %v3455 = vadd.f32 %v2813, %v3454
        %v3456 = vpop.f32.mrf.mxu0
        %v3457 = vadd.f32 %v2813, %v3456
        %3458 = vmatmul.bf16.gmra.mxu0 %v2881
        %v3459 = vpop.f32.mrf.mxu0
        %v3460 = vadd.f32 %v2813, %v3459
        %v3461 = vpop.f32.mrf.mxu0
        %v3462 = vadd.f32 %v2813, %v3461
        %3463 = vdwg.mxu0
        %3464 = vmatpush.bf16.msra.mxu0 %v3153
        %3465 = vmatpush.bf16.msra.mxu0 %v3149
        %3466 = vmatpush.bf16.msra.mxu0 %v3145
        %3467 = vmatpush.bf16.msra.mxu0 %v3141
        %3468 = vmatpush.bf16.msra.mxu0 %v3137
        %3469 = vmatpush.bf16.msra.mxu0 %v3133
        %3470 = vmatpush.bf16.msra.mxu0 %v3129
        %3471 = vmatpush.bf16.msra.mxu0 %v3125
        %3472 = vmatmul.bf16.gmra.mxu0 %v2868
        %v3473 = vpop.f32.mrf.mxu0
        %v3474 = vadd.f32 %v3425, %v3473
        %v3475 = vpop.f32.mrf.mxu0
        %v3476 = vadd.f32 %v3427, %v3475
        %3477 = vmatmul.bf16.gmra.mxu0 %v2870
        %v3478 = vpop.f32.mrf.mxu0
        %v3479 = vadd.f32 %v3430, %v3478
        %v3480 = vpop.f32.mrf.mxu0
        %v3481 = vadd.f32 %v3432, %v3480
        %3482 = vmatmul.bf16.gmra.mxu0 %v2872
        %v3483 = vpop.f32.mrf.mxu0
        %v3484 = vadd.f32 %v3435, %v3483
        %v3485 = vpop.f32.mrf.mxu0
        %v3486 = vadd.f32 %v3437, %v3485
        %3487 = vmatmul.bf16.gmra.mxu0 %v2874
        %v3488 = vpop.f32.mrf.mxu0
        %v3489 = vadd.f32 %v3440, %v3488
        %v3490 = vpop.f32.mrf.mxu0
        %v3491 = vadd.f32 %v3442, %v3490
        %3492 = vmatmul.bf16.gmra.mxu0 %v2876
        %v3493 = vpop.f32.mrf.mxu0
        %v3494 = vadd.f32 %v3445, %v3493
        %v3495 = vpop.f32.mrf.mxu0
        %v3496 = vadd.f32 %v3447, %v3495
        %3497 = vmatmul.bf16.gmra.mxu0 %v2878
        %v3498 = vpop.f32.mrf.mxu0
        %v3499 = vadd.f32 %v3450, %v3498
        %v3500 = vpop.f32.mrf.mxu0
        %v3501 = vadd.f32 %v3452, %v3500
        %3502 = vmatmul.bf16.gmra.mxu0 %v2880
        %v3503 = vpop.f32.mrf.mxu0
        %v3504 = vadd.f32 %v3455, %v3503
        %v3505 = vpop.f32.mrf.mxu0
        %v3506 = vadd.f32 %v3457, %v3505
        %3507 = vmatmul.bf16.gmra.mxu0 %v2882
        %v3508 = vpop.f32.mrf.mxu0
        %v3509 = vadd.f32 %v3460, %v3508
        %v3510 = vpop.f32.mrf.mxu0
        %v3511 = vadd.f32 %v3462, %v3510
        %3512 = vdwg.mxu0
        %3513 = vmatpush.bf16.msra.mxu0 %v3122
        %3514 = vmatpush.bf16.msra.mxu0 %v3118
        %3515 = vmatpush.bf16.msra.mxu0 %v3114
        %3516 = vmatpush.bf16.msra.mxu0 %v3110
        %3517 = vmatpush.bf16.msra.mxu0 %v3106
        %3518 = vmatpush.bf16.msra.mxu0 %v3102
        %3519 = vmatpush.bf16.msra.mxu0 %v3098
        %3520 = vmatpush.bf16.msra.mxu0 %v3094
        %3521 = vmatmul.bf16.gmra.mxu0 %v2867
        %v3522 = vpop.f32.mrf.mxu0
        %v3523 = vadd.f32 %v2814, %v3522
        %v3524 = vpop.f32.mrf.mxu0
        %v3525 = vadd.f32 %v2814, %v3524
        %3526 = vmatmul.bf16.gmra.mxu0 %v2869
        %v3527 = vpop.f32.mrf.mxu0
        %v3528 = vadd.f32 %v2814, %v3527
        %v3529 = vpop.f32.mrf.mxu0
        %v3530 = vadd.f32 %v2814, %v3529
        %3531 = vmatmul.bf16.gmra.mxu0 %v2871
        %v3532 = vpop.f32.mrf.mxu0
        %v3533 = vadd.f32 %v2814, %v3532
        %v3534 = vpop.f32.mrf.mxu0
        %v3535 = vadd.f32 %v2814, %v3534
        %3536 = vmatmul.bf16.gmra.mxu0 %v2873
        %v3537 = vpop.f32.mrf.mxu0
        %v3538 = vadd.f32 %v2814, %v3537
        %v3539 = vpop.f32.mrf.mxu0
        %v3540 = vadd.f32 %v2814, %v3539
        %3541 = vmatmul.bf16.gmra.mxu0 %v2875
        %v3542 = vpop.f32.mrf.mxu0
        %v3543 = vadd.f32 %v2814, %v3542
        %v3544 = vpop.f32.mrf.mxu0
        %v3545 = vadd.f32 %v2814, %v3544
        %3546 = vmatmul.bf16.gmra.mxu0 %v2877
        %v3547 = vpop.f32.mrf.mxu0
        %v3548 = vadd.f32 %v2814, %v3547
        %v3549 = vpop.f32.mrf.mxu0
        %v3550 = vadd.f32 %v2814, %v3549
        %3551 = vmatmul.bf16.gmra.mxu0 %v2879
        %v3552 = vpop.f32.mrf.mxu0
        %v3553 = vadd.f32 %v2814, %v3552
        %v3554 = vpop.f32.mrf.mxu0
        %v3555 = vadd.f32 %v2814, %v3554
        %3556 = vmatmul.bf16.gmra.mxu0 %v2881
        %v3557 = vpop.f32.mrf.mxu0
        %v3558 = vadd.f32 %v2814, %v3557
        %v3559 = vpop.f32.mrf.mxu0
        %v3560 = vadd.f32 %v2814, %v3559
        %3561 = vdwg.mxu0
        %3562 = vmatpush.bf16.msra.mxu0 %v3154
        %3563 = vmatpush.bf16.msra.mxu0 %v3150
        %3564 = vmatpush.bf16.msra.mxu0 %v3146
        %3565 = vmatpush.bf16.msra.mxu0 %v3142
        %3566 = vmatpush.bf16.msra.mxu0 %v3138
        %3567 = vmatpush.bf16.msra.mxu0 %v3134
        %3568 = vmatpush.bf16.msra.mxu0 %v3130
        %3569 = vmatpush.bf16.msra.mxu0 %v3126
        %3570 = vmatmul.bf16.gmra.mxu0 %v2868
        %v3571 = vpop.f32.mrf.mxu0
        %v3572 = vadd.f32 %v3523, %v3571
        %v3573 = vpop.f32.mrf.mxu0
        %v3574 = vadd.f32 %v3525, %v3573
        %3575 = vmatmul.bf16.gmra.mxu0 %v2870
        %v3576 = vpop.f32.mrf.mxu0
        %v3577 = vadd.f32 %v3528, %v3576
        %v3578 = vpop.f32.mrf.mxu0
        %v3579 = vadd.f32 %v3530, %v3578
        %3580 = vmatmul.bf16.gmra.mxu0 %v2872
        %v3581 = vpop.f32.mrf.mxu0
        %v3582 = vadd.f32 %v3533, %v3581
        %v3583 = vpop.f32.mrf.mxu0
        %v3584 = vadd.f32 %v3535, %v3583
        %3585 = vmatmul.bf16.gmra.mxu0 %v2874
        %v3586 = vpop.f32.mrf.mxu0
        %v3587 = vadd.f32 %v3538, %v3586
        %v3588 = vpop.f32.mrf.mxu0
        %v3589 = vadd.f32 %v3540, %v3588
        %3590 = vmatmul.bf16.gmra.mxu0 %v2876
        %v3591 = vpop.f32.mrf.mxu0
        %v3592 = vadd.f32 %v3543, %v3591
        %v3593 = vpop.f32.mrf.mxu0
        %v3594 = vadd.f32 %v3545, %v3593
        %3595 = vmatmul.bf16.gmra.mxu0 %v2878
        %v3596 = vpop.f32.mrf.mxu0
        %v3597 = vadd.f32 %v3548, %v3596
        %v3598 = vpop.f32.mrf.mxu0
        %v3599 = vadd.f32 %v3550, %v3598
        %3600 = vmatmul.bf16.gmra.mxu0 %v2880
        %v3601 = vpop.f32.mrf.mxu0
        %v3602 = vadd.f32 %v3553, %v3601
        %v3603 = vpop.f32.mrf.mxu0
        %v3604 = vadd.f32 %v3555, %v3603
        %3605 = vmatmul.bf16.gmra.mxu0 %v2882
        %v3606 = vpop.f32.mrf.mxu0
        %v3607 = vadd.f32 %v3558, %v3606
        %v3608 = vpop.f32.mrf.mxu0
        %v3609 = vadd.f32 %v3560, %v3608
        %3610 = vdwg.mxu0
        %3611 = vst [vmem:[%s434] sm:$0xff] %v3278
        %3612 = vst [vmem:[%s434 + $0x8] sm:$0xff] %v3376
        %3613 = vst [vmem:[%s434 + $0x10] sm:$0xff] %v3474
        %3614 = vst [vmem:[%s434 + $0x18] sm:$0xff] %v3572
        %3615 = vst [vmem:[%s434 + $0x20] sm:$0xff] %v3280
        %3616 = vst [vmem:[%s434 + $0x28] sm:$0xff] %v3378
        %3617 = vst [vmem:[%s434 + $0x30] sm:$0xff] %v3476
        %3618 = vst [vmem:[%s434 + $0x38] sm:$0xff] %v3574
        %3619 = vst [vmem:[%s434 + $0x40] sm:$0xff] %v3283
        %3620 = vst [vmem:[%s434 + $0x48] sm:$0xff] %v3381
        %3621 = vst [vmem:[%s434 + $0x50] sm:$0xff] %v3479
        %3622 = vst [vmem:[%s434 + $0x58] sm:$0xff] %v3577
        %3623 = vst [vmem:[%s434 + $0x60] sm:$0xff] %v3285
        %3624 = vst [vmem:[%s434 + $0x68] sm:$0xff] %v3383
        %3625 = vst [vmem:[%s434 + $0x70] sm:$0xff] %v3481
        %3626 = vst [vmem:[%s434 + $0x78] sm:$0xff] %v3579
        %3627 = vst [vmem:[%s434 + $0x80] sm:$0xff] %v3288
        %3628 = vst [vmem:[%s434 + $0x88] sm:$0xff] %v3386
        %3629 = vst [vmem:[%s434 + $0x90] sm:$0xff] %v3484
        %3630 = vst [vmem:[%s434 + $0x98] sm:$0xff] %v3582
        %3631 = vst [vmem:[%s434 + $0xa0] sm:$0xff] %v3290
        %3632 = vst [vmem:[%s434 + $0xa8] sm:$0xff] %v3388
        %3633 = vst [vmem:[%s434 + $0xb0] sm:$0xff] %v3486
        %3634 = vst [vmem:[%s434 + $0xb8] sm:$0xff] %v3584
        %3635 = vst [vmem:[%s434 + $0xc0] sm:$0xff] %v3293
        %3636 = vst [vmem:[%s434 + $0xc8] sm:$0xff] %v3391
        %3637 = vst [vmem:[%s434 + $0xd0] sm:$0xff] %v3489
        %3638 = vst [vmem:[%s434 + $0xd8] sm:$0xff] %v3587
        %3639 = vst [vmem:[%s434 + $0xe0] sm:$0xff] %v3295
        %3640 = vst [vmem:[%s434 + $0xe8] sm:$0xff] %v3393
        %3641 = vst [vmem:[%s434 + $0xf0] sm:$0xff] %v3491
        %3642 = vst [vmem:[%s434 + $0xf8] sm:$0xff] %v3589
        %3643 = vst [vmem:[%s434 + $0x100] sm:$0xff] %v3298
        %3644 = vst [vmem:[%s434 + $0x108] sm:$0xff] %v3396
        %3645 = vst [vmem:[%s434 + $0x110] sm:$0xff] %v3494
        %3646 = vst [vmem:[%s434 + $0x118] sm:$0xff] %v3592
        %3647 = vst [vmem:[%s434 + $0x120] sm:$0xff] %v3300
        %3648 = vst [vmem:[%s434 + $0x128] sm:$0xff] %v3398
        %3649 = vst [vmem:[%s434 + $0x130] sm:$0xff] %v3496
        %3650 = vst [vmem:[%s434 + $0x138] sm:$0xff] %v3594
        %3651 = vst [vmem:[%s434 + $0x140] sm:$0xff] %v3303
        %3652 = vst [vmem:[%s434 + $0x148] sm:$0xff] %v3401
        %3653 = vst [vmem:[%s434 + $0x150] sm:$0xff] %v3499
        %3654 = vst [vmem:[%s434 + $0x158] sm:$0xff] %v3597
        %3655 = vst [vmem:[%s434 + $0x160] sm:$0xff] %v3305
        %3656 = vst [vmem:[%s434 + $0x168] sm:$0xff] %v3403
        %3657 = vst [vmem:[%s434 + $0x170] sm:$0xff] %v3501
        %3658 = vst [vmem:[%s434 + $0x178] sm:$0xff] %v3599
        %3659 = vst [vmem:[%s434 + $0x180] sm:$0xff] %v3308
        %3660 = vst [vmem:[%s434 + $0x188] sm:$0xff] %v3406
        %3661 = vst [vmem:[%s434 + $0x190] sm:$0xff] %v3504
        %3662 = vst [vmem:[%s434 + $0x198] sm:$0xff] %v3602
        %3663 = vst [vmem:[%s434 + $0x1a0] sm:$0xff] %v3310
        %3664 = vst [vmem:[%s434 + $0x1a8] sm:$0xff] %v3408
        %3665 = vst [vmem:[%s434 + $0x1b0] sm:$0xff] %v3506
        %3666 = vst [vmem:[%s434 + $0x1b8] sm:$0xff] %v3604
        %3667 = vst [vmem:[%s434 + $0x1c0] sm:$0xff] %v3313
        %3668 = vst [vmem:[%s434 + $0x1c8] sm:$0xff] %v3411
        %3669 = vst [vmem:[%s434 + $0x1d0] sm:$0xff] %v3509
        %3670 = vst [vmem:[%s434 + $0x1d8] sm:$0xff] %v3607
        %3671 = vst [vmem:[%s434 + $0x1e0] sm:$0xff] %v3315
        %3672 = vst [vmem:[%s434 + $0x1e8] sm:$0xff] %v3413
        %3673 = vst [vmem:[%s434 + $0x1f0] sm:$0xff] %v3511
        %3674 = vst [vmem:[%s434 + $0x1f8] sm:$0xff] %v3609
        %s3675 = sand.u32 %s210, 1
        %s3676 = scalar_lea.sflag [#allocation5], %s3675
        %s3677 = sand.u32 %s210, 1
        %s3678 = smul.addr %s3677, 512
        %s3679 = scalar_lea.vmem [#allocation13], %s3678
        // Predicated region
        $region77: #{tpu_custom_call.1} parent=47 // pred_check
          %p3680 = pneg %p220
        $region78: #{tpu_custom_call.1} parent=47 // pred_check_branch
          %3682 = sbr.rel (%p3680) target = $region80
        $region79: #{tpu_custom_call.1} parent=47 // pred_region
          %s3683 = smul.u32 16, %s30
          %s3684 = smul.u32 4, %s31
          %3686 = vsyncadd %s3676, 0
          %s3687 = smul.addr %s3683, 8
          %s3688 = sadd.s32 %s3684, %s3687
          %s3689 = smul.addr %s3688, 8
          %s3690 = scalar_lea.hbm %s7, %s3689
          %s3691 = sshll.u32 %s3679, 4
          %s3692 = int_to_ptr.vmem [resolvable:$true] %s3691
          %s3693 = sshll.u32 %s3690, 4
          %s3694 = int_to_ptr.hbm [resolvable:$true] %s3693
          %3699 = dma.vmem_to_hbm [thread:$0]  %s3692, 8192, %s3694, %s3676, 512, 1024, 32
        $region80: #{tpu_custom_call.1} parent=47 // pred_fallthru
          _
      $region48: #{tpu_custom_call.1} parent=5 // pred_fallthru
        _
      %p3700 = scmp.le.s32.totalorder 2, %s21
      // Predicated region
      $region81: #{tpu_custom_call.1} parent=5 // pred_check
        %p3701 = pneg %p3700
      $region82: #{tpu_custom_call.1} parent=5 // pred_check_branch
        %3703 = sbr.rel (%p3701) target = $region84
      $region83: #{tpu_custom_call.1} parent=5 // pred_region
        %s3704 = ssub.s32 %s21, 2
        // Predicated region
        $region85: #{tpu_custom_call.1} parent=83 // pred_check
          %p3705 = pneg %p226
        $region86: #{tpu_custom_call.1} parent=83 // pred_check_branch
          %3707 = sbr.rel (%p3705) target = $region88
        $region87: #{tpu_custom_call.1} parent=83 // pred_region
          %s3708 = sand.u32 %s211, 1
          %s3709 = scalar_lea.sflag [#allocation5], %s3708
          %s3710 = sand.u32 %s211, 1
          %s3711 = smul.addr %s3710, 512
          %s3712 = scalar_lea.vmem [#allocation13], %s3711
          %3714 = dma.done %s3709, 8192
        $region88: #{tpu_custom_call.1} parent=83 // pred_fallthru
          _
      $region84: #{tpu_custom_call.1} parent=5 // pred_fallthru
        _
    $region6: #{tpu_custom_call.1} parent=1 // loop_footer
      %s25 = sadd.s32 1, %s21
    $region7: #{tpu_custom_call.1} parent=1 // loop_footer_branch
      %20 = sbr.rel target = $region3
    $region8: #{tpu_custom_call.1} parent=1 // loop_exit
      _
    %3715 = vsyncpa [#allocation4], 1
    %s3716 = scalar_lea.sflag [#allocation4], 1
    %3717 = vsyncpa %s3716, 1
    %3718 = vsyncpa [#allocation7], 1
    %3719 = vsyncpa [#allocation10], 1
    %3720 = vsyncpa [#allocation5], 1
    %s3721 = scalar_lea.sflag [#allocation5], 1
    %3722 = vsyncpa %s3721, 1

</llo_original>
